<compile_context>
chip_gen: v7x
topology: tpu7x:2x2x1
jax: 0.10.0
libtpu: 0.0.40
codegen_flags: <defaults>
</compile_context>

<pallas_src>
from functools import partial

import jax
import jax.numpy as jnp
from jax import lax
from jax.experimental import pallas as pl
from jax.experimental.pallas import tpu as pltpu

LANE = 128
SUBLANE = 8


def _round_up(x, m):
    return (x + m - 1) // m * m


def bottleneck_kernel(x_ref, w1_ref, b1_ref, w2_ref, b2_ref, w3_ref, b3_ref,
                      o_ref, ypad_ref, *, H, W, C_p, P_top):
    HW = H * W
    rows = ypad_ref.shape[0]

    # ---- conv1 (1x1, BN1 scale pre-folded into weight) + bias + relu ---------
    x = x_ref[0]                                                # (HW, Cin_p) bf16
    y1 = jnp.dot(x, w1_ref[...], preferred_element_type=jnp.float32)
    y1 = jnp.maximum(y1 + b1_ref[...], 0.0)                     # (HW, C_p) f32

    # ---- stage y1 into the zero-padded scratch so all nine 3x3 taps become
    # plain static window reads.  Pad rows are re-zeroed every step on purpose:
    # guarding with program_id(0)==0 would be wrong under megacore (the
    # "parallel" axis is split across cores, core 1 never sees id 0), and the
    # cost is only ~2*(W+1) rows of stores per step.
    ypad_ref[pl.ds(0, P_top), :] = jnp.zeros((P_top, C_p), jnp.float32)
    ypad_ref[pl.ds(P_top + HW, rows - P_top - HW), :] = jnp.zeros(
        (rows - P_top - HW, C_p), jnp.float32)
    ypad_ref[pl.ds(P_top, HW), :] = y1

    # ---- hoisted (HW, 1) column masks (kill horizontal wrap on dx = +-1) -----
    col = lax.broadcasted_iota(jnp.int32, (HW, 1), 0) % W
    mask_l = col >= 1            # dx = -1
    mask_r = col <= W - 2        # dx = +1

    # ---- conv2 (3x3, pad=1, stride=1): 9 accumulating per-tap matmuls --------
    # Center tap (ky=1, kx=1) uses y1 directly; the other 8 are static window
    # reads from the padded scratch.  f32 accumulation throughout.
    acc = jnp.dot(y1.astype(jnp.bfloat16), w2_ref[4],
                  preferred_element_type=jnp.float32)            # (HW, C_p) f32
    for ky in range(3):
        for kx in range(3):
            if ky == 1 and kx == 1:
                continue
            dy, dx = ky - 1, kx - 1
            start = P_top + dy * W + dx                          # static, >= 0
            t = ypad_ref[pl.ds(start, HW), :]                    # (HW, C_p) f32
            if dx == -1:
                t = jnp.where(mask_l, t, 0.0)
            elif dx == 1:
                t = jnp.where(mask_r, t, 0.0)
            acc += jnp.dot(t.astype(jnp.bfloat16), w2_ref[ky * 3 + kx],
                           preferred_element_type=jnp.float32)
    y2 = jnp.maximum(acc + b2_ref[...], 0.0)                     # (HW, C_p) f32

    # ---- conv3 (1x1, BN3 scale pre-folded) + bias -----------------------------
    y3 = jnp.dot(y2.astype(jnp.bfloat16), w3_ref[...],
                 preferred_element_type=jnp.float32)
    y3 = y3 + b3_ref[...]                                        # (HW, C4_p) f32

    # ---- residual add (identity path, Cin == C4) + relu ----------------------
    # re-read x here (keeps the input slab out of the conv2 live range).
    out = jnp.maximum(y3 + x_ref[0].astype(jnp.float32), 0.0)
    o_ref[0] = out.astype(o_ref.dtype)


def bottleneck_forward(x_nhwc, params):
    """x_nhwc: (N, H, W, Cin) f32.  params = (w1, s1, b1, w2, s2, b2, w3, s3, b3):
    1x1 conv weights as (Cin, Cout), 3x3 weight HWIO, eval-mode BN folded to
    per-channel scale (1, C) and bias (1, C)."""
    N, H, W, Cin = x_nhwc.shape
    w1, s1, b1, w2, s2, b2, w3, s3, b3 = params
    C = w1.shape[1]
    C4 = w3.shape[1]
    assert Cin == C4, "identity path requires in_channels == out_channels * 4"
    HW = H * W

    # pad channel dims to lane (128) multiples -> lane-dense MXU / stores
    Cin_p = _round_up(Cin, LANE)
    C_p = _round_up(C, LANE)
    C4_p = _round_up(C4, LANE)

    def pad2(a, r, c):
        return jnp.pad(a, ((0, r - a.shape[0]), (0, c - a.shape[1])))

    # Fold BN scales into the conv weights in f32, pad channels, cast to bf16.
    w1p = pad2(w1 * s1, Cin_p, C_p).astype(jnp.bfloat16)            # (Cin_p, C_p)
    b1p = pad2(b1, 1, C_p)                                          # (1, C_p) f32
    w2f = jnp.pad(w2 * s2, ((0, 0), (0, 0),
                            (0, C_p - C), (0, C_p - C)))            # (3,3,C_p,C_p)
    w2p = w2f.reshape(9, C_p, C_p).astype(jnp.bfloat16)             # (9, C_p, C_p)
    b2p = pad2(b2, 1, C_p)
    w3p = pad2(w3 * s3, C_p, C4_p).astype(jnp.bfloat16)             # (C_p, C4_p)
    b3p = pad2(b3, 1, C4_p)

    # bf16 activations at the HBM boundary (block is HBM-bandwidth bound).
    x_flat = jnp.pad(
        x_nhwc, ((0, 0), (0, 0), (0, 0), (0, Cin_p - Cin))
    ).astype(jnp.bfloat16).reshape(N, HW, Cin_p)

    # padded-scratch geometry: top pad (sublane-aligned) covers the dy=-1 taps,
    # bottom pad covers dy=+1; every tap window stays inside [0, rows).
    P_top = _round_up(W + 1, SUBLANE)
    rows = _round_up(P_top + HW + W + 1, SUBLANE)

    # VMEM limit: ~3/4 of the chip's capacity, capped at 96 MiB
    # (v5e/v6e: 96 MiB of 128 MiB physical; v7x: 48 MiB of 64 MiB).
    try:
        vmem_cap = int(pltpu.get_tpu_info().vmem_capacity_bytes)
    except Exception:
        vmem_cap = 64 * 1024 * 1024
    vmem_limit = int(min(96 * 1024 * 1024, (vmem_cap * 3) // 4))

    kern = partial(bottleneck_kernel, H=H, W=W, C_p=C_p, P_top=P_top)

    def run(single_buffer_weights):
        def const_spec(shape):
            nd = len(shape)
            idx = lambda n, _nd=nd: (0,) * _nd
            if single_buffer_weights:
                # constant index_map -> never re-DMA'd; no point double-buffering
                return pl.BlockSpec(shape, idx, pipeline_mode=pl.Buffered(1))
            return pl.BlockSpec(shape, idx)

        return pl.pallas_call(
            kern,
            out_shape=jax.ShapeDtypeStruct((N, HW, C4_p), jnp.bfloat16),
            grid=(N,),
            in_specs=[
                pl.BlockSpec((1, HW, Cin_p), lambda n: (n, 0, 0)),
                const_spec(w1p.shape), const_spec(b1p.shape),
                const_spec(w2p.shape), const_spec(b2p.shape),
                const_spec(w3p.shape), const_spec(b3p.shape),
            ],
            out_specs=pl.BlockSpec((1, HW, C4_p), lambda n: (n, 0, 0)),
            scratch_shapes=[pltpu.VMEM((rows, C_p), jnp.float32)],
            compiler_params=pltpu.CompilerParams(
                dimension_semantics=("parallel",),
                vmem_limit_bytes=vmem_limit),
        )(x_flat, w1p, b1p, w2p, b2p, w3p, b3p)

    try:
        out_flat = run(True)      # single-buffered weight/bias blocks
    except Exception:
        out_flat = run(False)     # fall back to default double buffering

    out = out_flat.reshape(N, H, W, C4_p)[..., :C4]
    return out.astype(x_nhwc.dtype)


def bottleneck_reference(x_nhwc, params):
    """Pure-JAX f32 reference of the same forward pass (NHWC)."""
    w1, s1, b1, w2, s2, b2, w3, s3, b3 = params
    y = jnp.einsum('nhwc,cd->nhwd', x_nhwc, w1)
    y = jnp.maximum(y * s1 + b1, 0.0)
    y = lax.conv_general_dilated(y, w2, window_strides=(1, 1), padding='SAME',
                                 dimension_numbers=('NHWC', 'HWIO', 'NHWC'))
    y = jnp.maximum(y * s2 + b2, 0.0)
    y = jnp.einsum('nhwc,cd->nhwd', y, w3)
    y = y * s3 + b3
    return jnp.maximum(y + x_nhwc, 0.0)


if __name__ == "__main__":
    # Small shapes consistent with the module.  With i_downsample=None the
    # residual add requires in_channels == out_channels * expansion.
    N, H, W = 2, 8, 8
    out_channels = 8
    expansion = 4
    in_channels = out_channels * expansion   # 32
    C, C4 = out_channels, out_channels * expansion

    key = jax.random.PRNGKey(0)
    keys = jax.random.split(key, 16)

    # Module input is NCHW; transpose to the kernel's NHWC layout.
    x_nchw = jax.random.normal(keys[0], (N, in_channels, H, W), jnp.float32)
    x_nhwc = jnp.transpose(x_nchw, (0, 2, 3, 1))

    def bn_affine(kg, kb, km, kv, c, eps=1e-5):
        gamma = 1.0 + 0.1 * jax.random.normal(kg, (c,), jnp.float32)
        beta = 0.1 * jax.random.normal(kb, (c,), jnp.float32)
        run_mean = 0.1 * jax.random.normal(km, (c,), jnp.float32)
        run_var = jnp.abs(jax.random.normal(kv, (c,), jnp.float32)) + 0.5
        scale = gamma / jnp.sqrt(run_var + eps)
        bias = beta - run_mean * scale
        return scale.reshape(1, c), bias.reshape(1, c)

    # conv weights: 1x1 convs stored as (Cin, Cout), 3x3 conv stored HWIO.
    w1 = 0.1 * jax.random.normal(keys[1], (in_channels, C), jnp.float32)
    w2 = 0.1 * jax.random.normal(keys[2], (3, 3, C, C), jnp.float32)
    w3 = 0.1 * jax.random.normal(keys[3], (C, C4), jnp.float32)
    s1, b1 = bn_affine(keys[4], keys[5], keys[6], keys[7], C)
    s2, b2 = bn_affine(keys[8], keys[9], keys[10], keys[11], C)
    s3, b3 = bn_affine(keys[12], keys[13], keys[14], keys[15], C4)

    params = (w1, s1, b1, w2, s2, b2, w3, s3, b3)

    out = bottleneck_forward(x_nhwc, params)
    out = jax.block_until_ready(out)

    ref = jax.block_until_ready(bottleneck_reference(x_nhwc, params))
    assert out.shape == (N, H, W, C4)
    # matmuls run in bf16 (f32 accumulate) and activations are bf16 at the HBM
    # boundary -> loosened absolute tolerance vs the f32 reference.
    max_err = float(jnp.max(jnp.abs(out - ref)))
    assert max_err < 8e-2, f"mismatch vs reference, max_err={max_err}"

    print("KERNEL_OK")
</pallas_src>

<mosaic_0001>
module attributes {stable_mosaic.version = 11 : i64} {
  func.func @bottleneck_kernel(%arg0: i32, %arg1: memref<1x64x128xbf16, #tpu.memory_space<vmem>>, %arg2: memref<128x128xbf16, #tpu.memory_space<vmem>>, %arg3: memref<1x128xf32, #tpu.memory_space<vmem>>, %arg4: memref<9x128x128xbf16, #tpu.memory_space<vmem>>, %arg5: memref<1x128xf32, #tpu.memory_space<vmem>>, %arg6: memref<128x128xbf16, #tpu.memory_space<vmem>>, %arg7: memref<1x128xf32, #tpu.memory_space<vmem>>, %arg8: memref<1x64x128xbf16, #tpu.memory_space<vmem>>, %arg9: memref<96x128xf32, #tpu.memory_space<vmem>>) attributes {dimension_semantics = [#tpu.dimension_semantics<parallel>], iteration_bounds = array<i64: 2>, scalar_prefetch = 0 : i64, scratch_operands = 1 : i64, tpu.core_type = #tpu.core_type<tc>, window_params = [{transform_indices = @transform_0, window_bounds = array<i64: 1, 64, 128>}, {pipeline_mode = #tpu.pipeline_mode<synchronous>, transform_indices = @transform_1, window_bounds = array<i64: 128, 128>}, {pipeline_mode = #tpu.pipeline_mode<synchronous>, transform_indices = @transform_2, window_bounds = array<i64: 1, 128>}, {pipeline_mode = #tpu.pipeline_mode<synchronous>, transform_indices = @transform_3, window_bounds = array<i64: 9, 128, 128>}, {pipeline_mode = #tpu.pipeline_mode<synchronous>, transform_indices = @transform_4, window_bounds = array<i64: 1, 128>}, {pipeline_mode = #tpu.pipeline_mode<synchronous>, transform_indices = @transform_5, window_bounds = array<i64: 128, 128>}, {pipeline_mode = #tpu.pipeline_mode<synchronous>, transform_indices = @transform_6, window_bounds = array<i64: 1, 128>}, {transform_indices = @transform_7, window_bounds = array<i64: 1, 64, 128>}]} {
    %c0 = arith.constant 0 : index
    %c0_0 = arith.constant 0 : index
    %c0_1 = arith.constant 0 : index
    %0 = vector.load %arg1[%c0, %c0_0, %c0_1] : memref<1x64x128xbf16, #tpu.memory_space<vmem>>, vector<1x64x128xbf16>
    %1 = vector.shape_cast %0 : vector<1x64x128xbf16> to vector<64x128xbf16>
    %c0_2 = arith.constant 0 : index
    %c0_3 = arith.constant 0 : index
    %2 = vector.load %arg2[%c0_2, %c0_3] : memref<128x128xbf16, #tpu.memory_space<vmem>>, vector<128x128xbf16>
    %cst = arith.constant dense<0.000000e+00> : vector<64x128xf32>
    %3 = tpu.matmul %1, %2, %cst {dimension_numbers = #tpu.dot_dimension_numbers<[1], [0], [0], [1], [0, 0, 1, 1], [], []>} : vector<64x128xbf16>, vector<128x128xbf16>, vector<64x128xf32> -> vector<64x128xf32>
    %c0_4 = arith.constant 0 : index
    %c0_5 = arith.constant 0 : index
    %4 = vector.load %arg3[%c0_4, %c0_5] : memref<1x128xf32, #tpu.memory_space<vmem>>, vector<1x128xf32>
    %5 = vector.broadcast %4 : vector<1x128xf32> to vector<64x128xf32>
    %6 = arith.addf %3, %5 : vector<64x128xf32>
    %cst_6 = arith.constant 0.000000e+00 : f32
    %7 = vector.broadcast %cst_6 : f32 to vector<64x128xf32>
    %8 = arith.maximumf %6, %7 : vector<64x128xf32>
    %cst_7 = arith.constant 0.000000e+00 : f32
    %9 = vector.broadcast %cst_7 : f32 to vector<16x128xf32>
    %c0_8 = arith.constant 0 : index
    %c0_9 = arith.constant 0 : index
    %10 = vector.load %arg9[%c0_8, %c0_9] : memref<96x128xf32, #tpu.memory_space<vmem>>, vector<16x128xf32>
    tpu.vector_store %arg9[%c0_8, %c0_9], %9 {strides = array<i32>} : memref<96x128xf32, #tpu.memory_space<vmem>>, vector<16x128xf32>,
    %cst_10 = arith.constant 0.000000e+00 : f32
    %11 = vector.broadcast %cst_10 : f32 to vector<16x128xf32>
    %c80 = arith.constant 80 : index
    %c0_11 = arith.constant 0 : index
    %12 = vector.load %arg9[%c80, %c0_11] : memref<96x128xf32, #tpu.memory_space<vmem>>, vector<16x128xf32>
    tpu.vector_store %arg9[%c80, %c0_11], %11 {strides = array<i32>} : memref<96x128xf32, #tpu.memory_space<vmem>>, vector<16x128xf32>,
    %c16 = arith.constant 16 : index
    %c0_12 = arith.constant 0 : index
    %13 = vector.load %arg9[%c16, %c0_12] : memref<96x128xf32, #tpu.memory_space<vmem>>, vector<64x128xf32>
    tpu.vector_store %arg9[%c16, %c0_12], %8 {strides = array<i32>} : memref<96x128xf32, #tpu.memory_space<vmem>>, vector<64x128xf32>,
    %14 = tpu.iota {dimensions = array<i32: 0>} : vector<64x1xi32>
    %c8_i32 = arith.constant 8 : i32
    %c0_i32 = arith.constant 0 : i32
    %15 = arith.cmpi eq, %c8_i32, %c0_i32 : i32
    %c1_i32 = arith.constant 1 : i32
    %16 = arith.select %15, %c1_i32, %c8_i32 : i32
    %17 = vector.broadcast %16 : i32 to vector<64x1xi32>
    %18 = arith.remsi %14, %17 : vector<64x1xi32>
    %c0_i32_13 = arith.constant 0 : i32
    %19 = vector.broadcast %c0_i32_13 : i32 to vector<64x1xi32>
    %20 = arith.cmpi ne, %18, %19 : vector<64x1xi32>
    %c0_i32_14 = arith.constant 0 : i32
    %21 = vector.broadcast %c0_i32_14 : i32 to vector<64x1xi32>
    %22 = arith.cmpi slt, %18, %21 : vector<64x1xi32>
    %c0_i32_15 = arith.constant 0 : i32
    %23 = arith.cmpi slt, %16, %c0_i32_15 : i32
    %24 = vector.broadcast %23 : i1 to vector<64x1xi1>
    %25 = vector.broadcast %24 : vector<64x1xi1> to vector<64x1xi1>
    %26 = arith.xori %22, %25 : vector<64x1xi1>
    %27 = arith.andi %26, %20 : vector<64x1xi1>
    %28 = vector.broadcast %16 : i32 to vector<64x1xi32>
    %29 = arith.addi %18, %28 : vector<64x1xi32>
    %30 = arith.select %27, %29, %18 : vector<64x1xi1>, vector<64x1xi32>
    %c1_i32_16 = arith.constant 1 : i32
    %31 = vector.broadcast %c1_i32_16 : i32 to vector<64x1xi32>
    %32 = arith.cmpi sge, %30, %31 : vector<64x1xi32>
    %c6_i32 = arith.constant 6 : i32
    %33 = vector.broadcast %c6_i32 : i32 to vector<64x1xi32>
    %34 = arith.cmpi sle, %30, %33 : vector<64x1xi32>
    %35 = arith.truncf %8 : vector<64x128xf32> to vector<64x128xbf16>
    %c4 = arith.constant 4 : index
    %c0_17 = arith.constant 0 : index
    %c0_18 = arith.constant 0 : index
    %36 = vector.load %arg4[%c4, %c0_17, %c0_18] : memref<9x128x128xbf16, #tpu.memory_space<vmem>>, vector<1x128x128xbf16>
    %37 = vector.shape_cast %36 : vector<1x128x128xbf16> to vector<128x128xbf16>
    %cst_19 = arith.constant dense<0.000000e+00> : vector<64x128xf32>
    %38 = tpu.matmul %35, %37, %cst_19 {dimension_numbers = #tpu.dot_dimension_numbers<[1], [0], [0], [1], [0, 0, 1, 1], [], []>} : vector<64x128xbf16>, vector<128x128xbf16>, vector<64x128xf32> -> vector<64x128xf32>
    %c7 = arith.constant 7 : index
    %c0_20 = arith.constant 0 : index
    %39 = vector.load %arg9[%c7, %c0_20] : memref<96x128xf32, #tpu.memory_space<vmem>>, vector<64x128xf32>
    %cst_21 = arith.constant 0.000000e+00 : f32
    %40 = vector.shape_cast %32 : vector<64x1xi1> to vector<64x1xi1>
    %41 = vector.broadcast %40 : vector<64x1xi1> to vector<64x128xi1>
    %42 = vector.broadcast %cst_21 : f32 to vector<64x128xf32>
    %43 = arith.select %41, %39, %42 : vector<64x128xi1>, vector<64x128xf32>
    %44 = arith.truncf %43 : vector<64x128xf32> to vector<64x128xbf16>
    %c0_22 = arith.constant 0 : index
    %c0_23 = arith.constant 0 : index
    %c0_24 = arith.constant 0 : index
    %45 = vector.load %arg4[%c0_22, %c0_23, %c0_24] : memref<9x128x128xbf16, #tpu.memory_space<vmem>>, vector<1x128x128xbf16>
    %46 = vector.shape_cast %45 : vector<1x128x128xbf16> to vector<128x128xbf16>
    %cst_25 = arith.constant dense<0.000000e+00> : vector<64x128xf32>
    %47 = tpu.matmul %44, %46, %cst_25 {dimension_numbers = #tpu.dot_dimension_numbers<[1], [0], [0], [1], [0, 0, 1, 1], [], []>} : vector<64x128xbf16>, vector<128x128xbf16>, vector<64x128xf32> -> vector<64x128xf32>
    %48 = arith.addf %38, %47 : vector<64x128xf32>
    %c8 = arith.constant 8 : index
    %c0_26 = arith.constant 0 : index
    %49 = vector.load %arg9[%c8, %c0_26] : memref<96x128xf32, #tpu.memory_space<vmem>>, vector<64x128xf32>
    %50 = arith.truncf %49 : vector<64x128xf32> to vector<64x128xbf16>
    %c1 = arith.constant 1 : index
    %c0_27 = arith.constant 0 : index
    %c0_28 = arith.constant 0 : index
    %51 = vector.load %arg4[%c1, %c0_27, %c0_28] : memref<9x128x128xbf16, #tpu.memory_space<vmem>>, vector<1x128x128xbf16>
    %52 = vector.shape_cast %51 : vector<1x128x128xbf16> to vector<128x128xbf16>
    %cst_29 = arith.constant dense<0.000000e+00> : vector<64x128xf32>
    %53 = tpu.matmul %50, %52, %cst_29 {dimension_numbers = #tpu.dot_dimension_numbers<[1], [0], [0], [1], [0, 0, 1, 1], [], []>} : vector<64x128xbf16>, vector<128x128xbf16>, vector<64x128xf32> -> vector<64x128xf32>
    %54 = arith.addf %48, %53 : vector<64x128xf32>
    %c9 = arith.constant 9 : index
    %c0_30 = arith.constant 0 : index
    %55 = vector.load %arg9[%c9, %c0_30] : memref<96x128xf32, #tpu.memory_space<vmem>>, vector<64x128xf32>
    %cst_31 = arith.constant 0.000000e+00 : f32
    %56 = vector.shape_cast %34 : vector<64x1xi1> to vector<64x1xi1>
    %57 = vector.broadcast %56 : vector<64x1xi1> to vector<64x128xi1>
    %58 = vector.broadcast %cst_31 : f32 to vector<64x128xf32>
    %59 = arith.select %57, %55, %58 : vector<64x128xi1>, vector<64x128xf32>
    %60 = arith.truncf %59 : vector<64x128xf32> to vector<64x128xbf16>
    %c2 = arith.constant 2 : index
    %c0_32 = arith.constant 0 : index
    %c0_33 = arith.constant 0 : index
    %61 = vector.load %arg4[%c2, %c0_32, %c0_33] : memref<9x128x128xbf16, #tpu.memory_space<vmem>>, vector<1x128x128xbf16>
    %62 = vector.shape_cast %61 : vector<1x128x128xbf16> to vector<128x128xbf16>
    %cst_34 = arith.constant dense<0.000000e+00> : vector<64x128xf32>
    %63 = tpu.matmul %60, %62, %cst_34 {dimension_numbers = #tpu.dot_dimension_numbers<[1], [0], [0], [1], [0, 0, 1, 1], [], []>} : vector<64x128xbf16>, vector<128x128xbf16>, vector<64x128xf32> -> vector<64x128xf32>
    %64 = arith.addf %54, %63 : vector<64x128xf32>
    %c15 = arith.constant 15 : index
    %c0_35 = arith.constant 0 : index
    %65 = vector.load %arg9[%c15, %c0_35] : memref<96x128xf32, #tpu.memory_space<vmem>>, vector<64x128xf32>
    %cst_36 = arith.constant 0.000000e+00 : f32
    %66 = vector.shape_cast %32 : vector<64x1xi1> to vector<64x1xi1>
    %67 = vector.broadcast %66 : vector<64x1xi1> to vector<64x128xi1>
    %68 = vector.broadcast %cst_36 : f32 to vector<64x128xf32>
    %69 = arith.select %67, %65, %68 : vector<64x128xi1>, vector<64x128xf32>
    %70 = arith.truncf %69 : vector<64x128xf32> to vector<64x128xbf16>
    %c3 = arith.constant 3 : index
    %c0_37 = arith.constant 0 : index
    %c0_38 = arith.constant 0 : index
    %71 = vector.load %arg4[%c3, %c0_37, %c0_38] : memref<9x128x128xbf16, #tpu.memory_space<vmem>>, vector<1x128x128xbf16>
    %72 = vector.shape_cast %71 : vector<1x128x128xbf16> to vector<128x128xbf16>
    %cst_39 = arith.constant dense<0.000000e+00> : vector<64x128xf32>
    %73 = tpu.matmul %70, %72, %cst_39 {dimension_numbers = #tpu.dot_dimension_numbers<[1], [0], [0], [1], [0, 0, 1, 1], [], []>} : vector<64x128xbf16>, vector<128x128xbf16>, vector<64x128xf32> -> vector<64x128xf32>
    %74 = arith.addf %64, %73 : vector<64x128xf32>
    %c17 = arith.constant 17 : index
    %c0_40 = arith.constant 0 : index
    %75 = vector.load %arg9[%c17, %c0_40] : memref<96x128xf32, #tpu.memory_space<vmem>>, vector<64x128xf32>
    %cst_41 = arith.constant 0.000000e+00 : f32
    %76 = vector.shape_cast %34 : vector<64x1xi1> to vector<64x1xi1>
    %77 = vector.broadcast %76 : vector<64x1xi1> to vector<64x128xi1>
    %78 = vector.broadcast %cst_41 : f32 to vector<64x128xf32>
    %79 = arith.select %77, %75, %78 : vector<64x128xi1>, vector<64x128xf32>
    %80 = arith.truncf %79 : vector<64x128xf32> to vector<64x128xbf16>
    %c5 = arith.constant 5 : index
    %c0_42 = arith.constant 0 : index
    %c0_43 = arith.constant 0 : index
    %81 = vector.load %arg4[%c5, %c0_42, %c0_43] : memref<9x128x128xbf16, #tpu.memory_space<vmem>>, vector<1x128x128xbf16>
    %82 = vector.shape_cast %81 : vector<1x128x128xbf16> to vector<128x128xbf16>
    %cst_44 = arith.constant dense<0.000000e+00> : vector<64x128xf32>
    %83 = tpu.matmul %80, %82, %cst_44 {dimension_numbers = #tpu.dot_dimension_numbers<[1], [0], [0], [1], [0, 0, 1, 1], [], []>} : vector<64x128xbf16>, vector<128x128xbf16>, vector<64x128xf32> -> vector<64x128xf32>
    %84 = arith.addf %74, %83 : vector<64x128xf32>
    %c23 = arith.constant 23 : index
    %c0_45 = arith.constant 0 : index
    %85 = vector.load %arg9[%c23, %c0_45] : memref<96x128xf32, #tpu.memory_space<vmem>>, vector<64x128xf32>
    %cst_46 = arith.constant 0.000000e+00 : f32
    %86 = vector.shape_cast %32 : vector<64x1xi1> to vector<64x1xi1>
    %87 = vector.broadcast %86 : vector<64x1xi1> to vector<64x128xi1>
    %88 = vector.broadcast %cst_46 : f32 to vector<64x128xf32>
    %89 = arith.select %87, %85, %88 : vector<64x128xi1>, vector<64x128xf32>
    %90 = arith.truncf %89 : vector<64x128xf32> to vector<64x128xbf16>
    %c6 = arith.constant 6 : index
    %c0_47 = arith.constant 0 : index
    %c0_48 = arith.constant 0 : index
    %91 = vector.load %arg4[%c6, %c0_47, %c0_48] : memref<9x128x128xbf16, #tpu.memory_space<vmem>>, vector<1x128x128xbf16>
    %92 = vector.shape_cast %91 : vector<1x128x128xbf16> to vector<128x128xbf16>
    %cst_49 = arith.constant dense<0.000000e+00> : vector<64x128xf32>
    %93 = tpu.matmul %90, %92, %cst_49 {dimension_numbers = #tpu.dot_dimension_numbers<[1], [0], [0], [1], [0, 0, 1, 1], [], []>} : vector<64x128xbf16>, vector<128x128xbf16>, vector<64x128xf32> -> vector<64x128xf32>
    %94 = arith.addf %84, %93 : vector<64x128xf32>
    %c24 = arith.constant 24 : index
    %c0_50 = arith.constant 0 : index
    %95 = vector.load %arg9[%c24, %c0_50] : memref<96x128xf32, #tpu.memory_space<vmem>>, vector<64x128xf32>
    %96 = arith.truncf %95 : vector<64x128xf32> to vector<64x128xbf16>
    %c7_51 = arith.constant 7 : index
    %c0_52 = arith.constant 0 : index
    %c0_53 = arith.constant 0 : index
    %97 = vector.load %arg4[%c7_51, %c0_52, %c0_53] : memref<9x128x128xbf16, #tpu.memory_space<vmem>>, vector<1x128x128xbf16>
    %98 = vector.shape_cast %97 : vector<1x128x128xbf16> to vector<128x128xbf16>
    %cst_54 = arith.constant dense<0.000000e+00> : vector<64x128xf32>
    %99 = tpu.matmul %96, %98, %cst_54 {dimension_numbers = #tpu.dot_dimension_numbers<[1], [0], [0], [1], [0, 0, 1, 1], [], []>} : vector<64x128xbf16>, vector<128x128xbf16>, vector<64x128xf32> -> vector<64x128xf32>
    %100 = arith.addf %94, %99 : vector<64x128xf32>
    %c25 = arith.constant 25 : index
    %c0_55 = arith.constant 0 : index
    %101 = vector.load %arg9[%c25, %c0_55] : memref<96x128xf32, #tpu.memory_space<vmem>>, vector<64x128xf32>
    %cst_56 = arith.constant 0.000000e+00 : f32
    %102 = vector.shape_cast %34 : vector<64x1xi1> to vector<64x1xi1>
    %103 = vector.broadcast %102 : vector<64x1xi1> to vector<64x128xi1>
    %104 = vector.broadcast %cst_56 : f32 to vector<64x128xf32>
    %105 = arith.select %103, %101, %104 : vector<64x128xi1>, vector<64x128xf32>
    %106 = arith.truncf %105 : vector<64x128xf32> to vector<64x128xbf16>
    %c8_57 = arith.constant 8 : index
    %c0_58 = arith.constant 0 : index
    %c0_59 = arith.constant 0 : index
    %107 = vector.load %arg4[%c8_57, %c0_58, %c0_59] : memref<9x128x128xbf16, #tpu.memory_space<vmem>>, vector<1x128x128xbf16>
    %108 = vector.shape_cast %107 : vector<1x128x128xbf16> to vector<128x128xbf16>
    %cst_60 = arith.constant dense<0.000000e+00> : vector<64x128xf32>
    %109 = tpu.matmul %106, %108, %cst_60 {dimension_numbers = #tpu.dot_dimension_numbers<[1], [0], [0], [1], [0, 0, 1, 1], [], []>} : vector<64x128xbf16>, vector<128x128xbf16>, vector<64x128xf32> -> vector<64x128xf32>
    %110 = arith.addf %100, %109 : vector<64x128xf32>
    %c0_61 = arith.constant 0 : index
    %c0_62 = arith.constant 0 : index
    %111 = vector.load %arg5[%c0_61, %c0_62] : memref<1x128xf32, #tpu.memory_space<vmem>>, vector<1x128xf32>
    %112 = vector.broadcast %111 : vector<1x128xf32> to vector<64x128xf32>
    %113 = arith.addf %110, %112 : vector<64x128xf32>
    %cst_63 = arith.constant 0.000000e+00 : f32
    %114 = vector.broadcast %cst_63 : f32 to vector<64x128xf32>
    %115 = arith.maximumf %113, %114 : vector<64x128xf32>
    %116 = arith.truncf %115 : vector<64x128xf32> to vector<64x128xbf16>
    %c0_64 = arith.constant 0 : index
    %c0_65 = arith.constant 0 : index
    %117 = vector.load %arg6[%c0_64, %c0_65] : memref<128x128xbf16, #tpu.memory_space<vmem>>, vector<128x128xbf16>
    %cst_66 = arith.constant dense<0.000000e+00> : vector<64x128xf32>
    %118 = tpu.matmul %116, %117, %cst_66 {dimension_numbers = #tpu.dot_dimension_numbers<[1], [0], [0], [1], [0, 0, 1, 1], [], []>} : vector<64x128xbf16>, vector<128x128xbf16>, vector<64x128xf32> -> vector<64x128xf32>
    %c0_67 = arith.constant 0 : index
    %c0_68 = arith.constant 0 : index
    %119 = vector.load %arg7[%c0_67, %c0_68] : memref<1x128xf32, #tpu.memory_space<vmem>>, vector<1x128xf32>
    %120 = vector.broadcast %119 : vector<1x128xf32> to vector<64x128xf32>
    %121 = arith.addf %118, %120 : vector<64x128xf32>
    %c0_69 = arith.constant 0 : index
    %c0_70 = arith.constant 0 : index
    %c0_71 = arith.constant 0 : index
    %122 = vector.load %arg1[%c0_69, %c0_70, %c0_71] : memref<1x64x128xbf16, #tpu.memory_space<vmem>>, vector<1x64x128xbf16>
    %123 = vector.shape_cast %122 : vector<1x64x128xbf16> to vector<64x128xbf16>
    %124 = arith.extf %123 : vector<64x128xbf16> to vector<64x128xf32>
    %125 = arith.addf %121, %124 : vector<64x128xf32>
    %cst_72 = arith.constant 0.000000e+00 : f32
    %126 = vector.broadcast %cst_72 : f32 to vector<64x128xf32>
    %127 = arith.maximumf %125, %126 : vector<64x128xf32>
    %128 = arith.truncf %127 : vector<64x128xf32> to vector<64x128xbf16>
    %c0_73 = arith.constant 0 : index
    %c0_74 = arith.constant 0 : index
    %c0_75 = arith.constant 0 : index
    %129 = vector.load %arg8[%c0_73, %c0_74, %c0_75] : memref<1x64x128xbf16, #tpu.memory_space<vmem>>, vector<1x64x128xbf16>
    %130 = vector.shape_cast %129 : vector<1x64x128xbf16> to vector<64x128xbf16>
    %131 = vector.shape_cast %128 : vector<64x128xbf16> to vector<1x64x128xbf16>
    tpu.vector_store %arg8[%c0_73, %c0_74, %c0_75], %131 {strides = array<i32>} : memref<1x64x128xbf16, #tpu.memory_space<vmem>>, vector<1x64x128xbf16>,
    return
  }
  func.func @transform_0(%arg0: i32) -> (i32, i32, i32) {
    %c0_i32 = arith.constant 0 : i32
    %c0_i32_0 = arith.constant 0 : i32
    %c0_i32_1 = arith.constant 0 : i32
    return %arg0, %c0_i32, %c0_i32_0 : i32, i32, i32
  }
  func.func @transform_1(%arg0: i32) -> (i32, i32) {
    %c0_i32 = arith.constant 0 : i32
    %c0_i32_0 = arith.constant 0 : i32
    %c0_i32_1 = arith.constant 0 : i32
    return %c0_i32, %c0_i32_0 : i32, i32
  }
  func.func @transform_2(%arg0: i32) -> (i32, i32) {
    %c0_i32 = arith.constant 0 : i32
    %c0_i32_0 = arith.constant 0 : i32
    %c0_i32_1 = arith.constant 0 : i32
    return %c0_i32, %c0_i32_0 : i32, i32
  }
  func.func @transform_3(%arg0: i32) -> (i32, i32, i32) {
    %c0_i32 = arith.constant 0 : i32
    %c0_i32_0 = arith.constant 0 : i32
    %c0_i32_1 = arith.constant 0 : i32
    %c0_i32_2 = arith.constant 0 : i32
    return %c0_i32, %c0_i32_0, %c0_i32_1 : i32, i32, i32
  }
  func.func @transform_4(%arg0: i32) -> (i32, i32) {
    %c0_i32 = arith.constant 0 : i32
    %c0_i32_0 = arith.constant 0 : i32
    %c0_i32_1 = arith.constant 0 : i32
    return %c0_i32, %c0_i32_0 : i32, i32
  }
  func.func @transform_5(%arg0: i32) -> (i32, i32) {
    %c0_i32 = arith.constant 0 : i32
    %c0_i32_0 = arith.constant 0 : i32
    %c0_i32_1 = arith.constant 0 : i32
    return %c0_i32, %c0_i32_0 : i32, i32
  }
  func.func @transform_6(%arg0: i32) -> (i32, i32) {
    %c0_i32 = arith.constant 0 : i32
    %c0_i32_0 = arith.constant 0 : i32
    %c0_i32_1 = arith.constant 0 : i32
    return %c0_i32, %c0_i32_0 : i32, i32
  }
  func.func @transform_7(%arg0: i32) -> (i32, i32, i32) {
    %c0_i32 = arith.constant 0 : i32
    %c0_i32_0 = arith.constant 0 : i32
    %c0_i32_1 = arith.constant 0 : i32
    return %arg0, %c0_i32, %c0_i32_0 : i32, i32, i32
  }
}

module attributes {stable_mosaic.version = 11 : i64} {
  func.func @bottleneck_kernel(%arg0: i32, %arg1: memref<1x64x128xbf16, #tpu.memory_space<vmem>>, %arg2: memref<128x128xbf16, #tpu.memory_space<vmem>>, %arg3: memref<1x128xf32, #tpu.memory_space<vmem>>, %arg4: memref<9x128x128xbf16, #tpu.memory_space<vmem>>, %arg5: memref<1x128xf32, #tpu.memory_space<vmem>>, %arg6: memref<128x128xbf16, #tpu.memory_space<vmem>>, %arg7: memref<1x128xf32, #tpu.memory_space<vmem>>, %arg8: memref<1x64x128xbf16, #tpu.memory_space<vmem>>, %arg9: memref<96x128xf32, #tpu.memory_space<vmem>>) attributes {dimension_semantics = [#tpu.dimension_semantics<parallel>], iteration_bounds = array<i64: 2>, scalar_prefetch = 0 : i64, scratch_operands = 1 : i64, tpu.core_type = #tpu.core_type<tc>, window_params = [{transform_indices = @transform_0, window_bounds = array<i64: 1, 64, 128>}, {pipeline_mode = #tpu.pipeline_mode<synchronous>, transform_indices = @transform_1, window_bounds = array<i64: 128, 128>}, {pipeline_mode = #tpu.pipeline_mode<synchronous>, transform_indices = @transform_2, window_bounds = array<i64: 1, 128>}, {pipeline_mode = #tpu.pipeline_mode<synchronous>, transform_indices = @transform_3, window_bounds = array<i64: 9, 128, 128>}, {pipeline_mode = #tpu.pipeline_mode<synchronous>, transform_indices = @transform_4, window_bounds = array<i64: 1, 128>}, {pipeline_mode = #tpu.pipeline_mode<synchronous>, transform_indices = @transform_5, window_bounds = array<i64: 128, 128>}, {pipeline_mode = #tpu.pipeline_mode<synchronous>, transform_indices = @transform_6, window_bounds = array<i64: 1, 128>}, {transform_indices = @transform_7, window_bounds = array<i64: 1, 64, 128>}]} {
    %c0 = arith.constant 0 : index
    %c0_0 = arith.constant 0 : index
    %c0_1 = arith.constant 0 : index
    %0 = vector.load %arg1[%c0, %c0_0, %c0_1] : memref<1x64x128xbf16, #tpu.memory_space<vmem>>, vector<1x64x128xbf16>
    %1 = vector.shape_cast %0 : vector<1x64x128xbf16> to vector<64x128xbf16>
    %c0_2 = arith.constant 0 : index
    %c0_3 = arith.constant 0 : index
    %2 = vector.load %arg2[%c0_2, %c0_3] : memref<128x128xbf16, #tpu.memory_space<vmem>>, vector<128x128xbf16>
    %cst = arith.constant dense<0.000000e+00> : vector<64x128xf32>
    %3 = tpu.matmul %1, %2, %cst {dimension_numbers = #tpu.dot_dimension_numbers<[1], [0], [0], [1], [0, 0, 1, 1], [], []>} : vector<64x128xbf16>, vector<128x128xbf16>, vector<64x128xf32> -> vector<64x128xf32>
    %c0_4 = arith.constant 0 : index
    %c0_5 = arith.constant 0 : index
    %4 = vector.load %arg3[%c0_4, %c0_5] : memref<1x128xf32, #tpu.memory_space<vmem>>, vector<1x128xf32>
    %5 = vector.broadcast %4 : vector<1x128xf32> to vector<64x128xf32>
    %6 = arith.addf %3, %5 : vector<64x128xf32>
    %cst_6 = arith.constant 0.000000e+00 : f32
    %7 = vector.broadcast %cst_6 : f32 to vector<64x128xf32>
    %8 = arith.maximumf %6, %7 : vector<64x128xf32>
    %cst_7 = arith.constant 0.000000e+00 : f32
    %9 = vector.broadcast %cst_7 : f32 to vector<16x128xf32>
    %c0_8 = arith.constant 0 : index
    %c0_9 = arith.constant 0 : index
    %10 = vector.load %arg9[%c0_8, %c0_9] : memref<96x128xf32, #tpu.memory_space<vmem>>, vector<16x128xf32>
    tpu.vector_store %arg9[%c0_8, %c0_9], %9 {strides = array<i32>} : memref<96x128xf32, #tpu.memory_space<vmem>>, vector<16x128xf32>,
    %cst_10 = arith.constant 0.000000e+00 : f32
    %11 = vector.broadcast %cst_10 : f32 to vector<16x128xf32>
    %c80 = arith.constant 80 : index
    %c0_11 = arith.constant 0 : index
    %12 = vector.load %arg9[%c80, %c0_11] : memref<96x128xf32, #tpu.memory_space<vmem>>, vector<16x128xf32>
    tpu.vector_store %arg9[%c80, %c0_11], %11 {strides = array<i32>} : memref<96x128xf32, #tpu.memory_space<vmem>>, vector<16x128xf32>,
    %c16 = arith.constant 16 : index
    %c0_12 = arith.constant 0 : index
    %13 = vector.load %arg9[%c16, %c0_12] : memref<96x128xf32, #tpu.memory_space<vmem>>, vector<64x128xf32>
    tpu.vector_store %arg9[%c16, %c0_12], %8 {strides = array<i32>} : memref<96x128xf32, #tpu.memory_space<vmem>>, vector<64x128xf32>,
    %14 = tpu.iota {dimensions = array<i32: 0>} : vector<64x1xi32>
    %c8_i32 = arith.constant 8 : i32
    %c0_i32 = arith.constant 0 : i32
    %15 = arith.cmpi eq, %c8_i32, %c0_i32 : i32
    %c1_i32 = arith.constant 1 : i32
    %16 = arith.select %15, %c1_i32, %c8_i32 : i32
    %17 = vector.broadcast %16 : i32 to vector<64x1xi32>
    %18 = arith.remsi %14, %17 : vector<64x1xi32>
    %c0_i32_13 = arith.constant 0 : i32
    %19 = vector.broadcast %c0_i32_13 : i32 to vector<64x1xi32>
    %20 = arith.cmpi ne, %18, %19 : vector<64x1xi32>
    %c0_i32_14 = arith.constant 0 : i32
    %21 = vector.broadcast %c0_i32_14 : i32 to vector<64x1xi32>
    %22 = arith.cmpi slt, %18, %21 : vector<64x1xi32>
    %c0_i32_15 = arith.constant 0 : i32
    %23 = arith.cmpi slt, %16, %c0_i32_15 : i32
    %24 = vector.broadcast %23 : i1 to vector<64x1xi1>
    %25 = vector.broadcast %24 : vector<64x1xi1> to vector<64x1xi1>
    %26 = arith.xori %22, %25 : vector<64x1xi1>
    %27 = arith.andi %26, %20 : vector<64x1xi1>
    %28 = vector.broadcast %16 : i32 to vector<64x1xi32>
    %29 = arith.addi %18, %28 : vector<64x1xi32>
    %30 = arith.select %27, %29, %18 : vector<64x1xi1>, vector<64x1xi32>
    %c1_i32_16 = arith.constant 1 : i32
    %31 = vector.broadcast %c1_i32_16 : i32 to vector<64x1xi32>
    %32 = arith.cmpi sge, %30, %31 : vector<64x1xi32>
    %c6_i32 = arith.constant 6 : i32
    %33 = vector.broadcast %c6_i32 : i32 to vector<64x1xi32>
    %34 = arith.cmpi sle, %30, %33 : vector<64x1xi32>
    %35 = arith.truncf %8 : vector<64x128xf32> to vector<64x128xbf16>
    %c4 = arith.constant 4 : index
    %c0_17 = arith.constant 0 : index
    %c0_18 = arith.constant 0 : index
    %36 = vector.load %arg4[%c4, %c0_17, %c0_18] : memref<9x128x128xbf16, #tpu.memory_space<vmem>>, vector<1x128x128xbf16>
    %37 = vector.shape_cast %36 : vector<1x128x128xbf16> to vector<128x128xbf16>
    %cst_19 = arith.constant dense<0.000000e+00> : vector<64x128xf32>
    %38 = tpu.matmul %35, %37, %cst_19 {dimension_numbers = #tpu.dot_dimension_numbers<[1], [0], [0], [1], [0, 0, 1, 1], [], []>} : vector<64x128xbf16>, vector<128x128xbf16>, vector<64x128xf32> -> vector<64x128xf32>
    %c7 = arith.constant 7 : index
    %c0_20 = arith.constant 0 : index
    %39 = vector.load %arg9[%c7, %c0_20] : memref<96x128xf32, #tpu.memory_space<vmem>>, vector<64x128xf32>
    %cst_21 = arith.constant 0.000000e+00 : f32
    %40 = vector.shape_cast %32 : vector<64x1xi1> to vector<64x1xi1>
    %41 = vector.broadcast %40 : vector<64x1xi1> to vector<64x128xi1>
    %42 = vector.broadcast %cst_21 : f32 to vector<64x128xf32>
    %43 = arith.select %41, %39, %42 : vector<64x128xi1>, vector<64x128xf32>
    %44 = arith.truncf %43 : vector<64x128xf32> to vector<64x128xbf16>
    %c0_22 = arith.constant 0 : index
    %c0_23 = arith.constant 0 : index
    %c0_24 = arith.constant 0 : index
    %45 = vector.load %arg4[%c0_22, %c0_23, %c0_24] : memref<9x128x128xbf16, #tpu.memory_space<vmem>>, vector<1x128x128xbf16>
    %46 = vector.shape_cast %45 : vector<1x128x128xbf16> to vector<128x128xbf16>
    %cst_25 = arith.constant dense<0.000000e+00> : vector<64x128xf32>
    %47 = tpu.matmul %44, %46, %cst_25 {dimension_numbers = #tpu.dot_dimension_numbers<[1], [0], [0], [1], [0, 0, 1, 1], [], []>} : vector<64x128xbf16>, vector<128x128xbf16>, vector<64x128xf32> -> vector<64x128xf32>
    %48 = arith.addf %38, %47 : vector<64x128xf32>
    %c8 = arith.constant 8 : index
    %c0_26 = arith.constant 0 : index
    %49 = vector.load %arg9[%c8, %c0_26] : memref<96x128xf32, #tpu.memory_space<vmem>>, vector<64x128xf32>
    %50 = arith.truncf %49 : vector<64x128xf32> to vector<64x128xbf16>
    %c1 = arith.constant 1 : index
    %c0_27 = arith.constant 0 : index
    %c0_28 = arith.constant 0 : index
    %51 = vector.load %arg4[%c1, %c0_27, %c0_28] : memref<9x128x128xbf16, #tpu.memory_space<vmem>>, vector<1x128x128xbf16>
    %52 = vector.shape_cast %51 : vector<1x128x128xbf16> to vector<128x128xbf16>
    %cst_29 = arith.constant dense<0.000000e+00> : vector<64x128xf32>
    %53 = tpu.matmul %50, %52, %cst_29 {dimension_numbers = #tpu.dot_dimension_numbers<[1], [0], [0], [1], [0, 0, 1, 1], [], []>} : vector<64x128xbf16>, vector<128x128xbf16>, vector<64x128xf32> -> vector<64x128xf32>
    %54 = arith.addf %48, %53 : vector<64x128xf32>
    %c9 = arith.constant 9 : index
    %c0_30 = arith.constant 0 : index
    %55 = vector.load %arg9[%c9, %c0_30] : memref<96x128xf32, #tpu.memory_space<vmem>>, vector<64x128xf32>
    %cst_31 = arith.constant 0.000000e+00 : f32
    %56 = vector.shape_cast %34 : vector<64x1xi1> to vector<64x1xi1>
    %57 = vector.broadcast %56 : vector<64x1xi1> to vector<64x128xi1>
    %58 = vector.broadcast %cst_31 : f32 to vector<64x128xf32>
    %59 = arith.select %57, %55, %58 : vector<64x128xi1>, vector<64x128xf32>
    %60 = arith.truncf %59 : vector<64x128xf32> to vector<64x128xbf16>
    %c2 = arith.constant 2 : index
    %c0_32 = arith.constant 0 : index
    %c0_33 = arith.constant 0 : index
    %61 = vector.load %arg4[%c2, %c0_32, %c0_33] : memref<9x128x128xbf16, #tpu.memory_space<vmem>>, vector<1x128x128xbf16>
    %62 = vector.shape_cast %61 : vector<1x128x128xbf16> to vector<128x128xbf16>
    %cst_34 = arith.constant dense<0.000000e+00> : vector<64x128xf32>
    %63 = tpu.matmul %60, %62, %cst_34 {dimension_numbers = #tpu.dot_dimension_numbers<[1], [0], [0], [1], [0, 0, 1, 1], [], []>} : vector<64x128xbf16>, vector<128x128xbf16>, vector<64x128xf32> -> vector<64x128xf32>
    %64 = arith.addf %54, %63 : vector<64x128xf32>
    %c15 = arith.constant 15 : index
    %c0_35 = arith.constant 0 : index
    %65 = vector.load %arg9[%c15, %c0_35] : memref<96x128xf32, #tpu.memory_space<vmem>>, vector<64x128xf32>
    %cst_36 = arith.constant 0.000000e+00 : f32
    %66 = vector.shape_cast %32 : vector<64x1xi1> to vector<64x1xi1>
    %67 = vector.broadcast %66 : vector<64x1xi1> to vector<64x128xi1>
    %68 = vector.broadcast %cst_36 : f32 to vector<64x128xf32>
    %69 = arith.select %67, %65, %68 : vector<64x128xi1>, vector<64x128xf32>
    %70 = arith.truncf %69 : vector<64x128xf32> to vector<64x128xbf16>
    %c3 = arith.constant 3 : index
    %c0_37 = arith.constant 0 : index
    %c0_38 = arith.constant 0 : index
    %71 = vector.load %arg4[%c3, %c0_37, %c0_38] : memref<9x128x128xbf16, #tpu.memory_space<vmem>>, vector<1x128x128xbf16>
    %72 = vector.shape_cast %71 : vector<1x128x128xbf16> to vector<128x128xbf16>
    %cst_39 = arith.constant dense<0.000000e+00> : vector<64x128xf32>
    %73 = tpu.matmul %70, %72, %cst_39 {dimension_numbers = #tpu.dot_dimension_numbers<[1], [0], [0], [1], [0, 0, 1, 1], [], []>} : vector<64x128xbf16>, vector<128x128xbf16>, vector<64x128xf32> -> vector<64x128xf32>
    %74 = arith.addf %64, %73 : vector<64x128xf32>
    %c17 = arith.constant 17 : index
    %c0_40 = arith.constant 0 : index
    %75 = vector.load %arg9[%c17, %c0_40] : memref<96x128xf32, #tpu.memory_space<vmem>>, vector<64x128xf32>
    %cst_41 = arith.constant 0.000000e+00 : f32
    %76 = vector.shape_cast %34 : vector<64x1xi1> to vector<64x1xi1>
    %77 = vector.broadcast %76 : vector<64x1xi1> to vector<64x128xi1>
    %78 = vector.broadcast %cst_41 : f32 to vector<64x128xf32>
    %79 = arith.select %77, %75, %78 : vector<64x128xi1>, vector<64x128xf32>
    %80 = arith.truncf %79 : vector<64x128xf32> to vector<64x128xbf16>
    %c5 = arith.constant 5 : index
    %c0_42 = arith.constant 0 : index
    %c0_43 = arith.constant 0 : index
    %81 = vector.load %arg4[%c5, %c0_42, %c0_43] : memref<9x128x128xbf16, #tpu.memory_space<vmem>>, vector<1x128x128xbf16>
    %82 = vector.shape_cast %81 : vector<1x128x128xbf16> to vector<128x128xbf16>
    %cst_44 = arith.constant dense<0.000000e+00> : vector<64x128xf32>
    %83 = tpu.matmul %80, %82, %cst_44 {dimension_numbers = #tpu.dot_dimension_numbers<[1], [0], [0], [1], [0, 0, 1, 1], [], []>} : vector<64x128xbf16>, vector<128x128xbf16>, vector<64x128xf32> -> vector<64x128xf32>
    %84 = arith.addf %74, %83 : vector<64x128xf32>
    %c23 = arith.constant 23 : index
    %c0_45 = arith.constant 0 : index
    %85 = vector.load %arg9[%c23, %c0_45] : memref<96x128xf32, #tpu.memory_space<vmem>>, vector<64x128xf32>
    %cst_46 = arith.constant 0.000000e+00 : f32
    %86 = vector.shape_cast %32 : vector<64x1xi1> to vector<64x1xi1>
    %87 = vector.broadcast %86 : vector<64x1xi1> to vector<64x128xi1>
    %88 = vector.broadcast %cst_46 : f32 to vector<64x128xf32>
    %89 = arith.select %87, %85, %88 : vector<64x128xi1>, vector<64x128xf32>
    %90 = arith.truncf %89 : vector<64x128xf32> to vector<64x128xbf16>
    %c6 = arith.constant 6 : index
    %c0_47 = arith.constant 0 : index
    %c0_48 = arith.constant 0 : index
    %91 = vector.load %arg4[%c6, %c0_47, %c0_48] : memref<9x128x128xbf16, #tpu.memory_space<vmem>>, vector<1x128x128xbf16>
    %92 = vector.shape_cast %91 : vector<1x128x128xbf16> to vector<128x128xbf16>
    %cst_49 = arith.constant dense<0.000000e+00> : vector<64x128xf32>
    %93 = tpu.matmul %90, %92, %cst_49 {dimension_numbers = #tpu.dot_dimension_numbers<[1], [0], [0], [1], [0, 0, 1, 1], [], []>} : vector<64x128xbf16>, vector<128x128xbf16>, vector<64x128xf32> -> vector<64x128xf32>
    %94 = arith.addf %84, %93 : vector<64x128xf32>
    %c24 = arith.constant 24 : index
    %c0_50 = arith.constant 0 : index
    %95 = vector.load %arg9[%c24, %c0_50] : memref<96x128xf32, #tpu.memory_space<vmem>>, vector<64x128xf32>
    %96 = arith.truncf %95 : vector<64x128xf32> to vector<64x128xbf16>
    %c7_51 = arith.constant 7 : index
    %c0_52 = arith.constant 0 : index
    %c0_53 = arith.constant 0 : index
    %97 = vector.load %arg4[%c7_51, %c0_52, %c0_53] : memref<9x128x128xbf16, #tpu.memory_space<vmem>>, vector<1x128x128xbf16>
    %98 = vector.shape_cast %97 : vector<1x128x128xbf16> to vector<128x128xbf16>
    %cst_54 = arith.constant dense<0.000000e+00> : vector<64x128xf32>
    %99 = tpu.matmul %96, %98, %cst_54 {dimension_numbers = #tpu.dot_dimension_numbers<[1], [0], [0], [1], [0, 0, 1, 1], [], []>} : vector<64x128xbf16>, vector<128x128xbf16>, vector<64x128xf32> -> vector<64x128xf32>
    %100 = arith.addf %94, %99 : vector<64x128xf32>
    %c25 = arith.constant 25 : index
    %c0_55 = arith.constant 0 : index
    %101 = vector.load %arg9[%c25, %c0_55] : memref<96x128xf32, #tpu.memory_space<vmem>>, vector<64x128xf32>
    %cst_56 = arith.constant 0.000000e+00 : f32
    %102 = vector.shape_cast %34 : vector<64x1xi1> to vector<64x1xi1>
    %103 = vector.broadcast %102 : vector<64x1xi1> to vector<64x128xi1>
    %104 = vector.broadcast %cst_56 : f32 to vector<64x128xf32>
    %105 = arith.select %103, %101, %104 : vector<64x128xi1>, vector<64x128xf32>
    %106 = arith.truncf %105 : vector<64x128xf32> to vector<64x128xbf16>
    %c8_57 = arith.constant 8 : index
    %c0_58 = arith.constant 0 : index
    %c0_59 = arith.constant 0 : index
    %107 = vector.load %arg4[%c8_57, %c0_58, %c0_59] : memref<9x128x128xbf16, #tpu.memory_space<vmem>>, vector<1x128x128xbf16>
    %108 = vector.shape_cast %107 : vector<1x128x128xbf16> to vector<128x128xbf16>
    %cst_60 = arith.constant dense<0.000000e+00> : vector<64x128xf32>
    %109 = tpu.matmul %106, %108, %cst_60 {dimension_numbers = #tpu.dot_dimension_numbers<[1], [0], [0], [1], [0, 0, 1, 1], [], []>} : vector<64x128xbf16>, vector<128x128xbf16>, vector<64x128xf32> -> vector<64x128xf32>
    %110 = arith.addf %100, %109 : vector<64x128xf32>
    %c0_61 = arith.constant 0 : index
    %c0_62 = arith.constant 0 : index
    %111 = vector.load %arg5[%c0_61, %c0_62] : memref<1x128xf32, #tpu.memory_space<vmem>>, vector<1x128xf32>
    %112 = vector.broadcast %111 : vector<1x128xf32> to vector<64x128xf32>
    %113 = arith.addf %110, %112 : vector<64x128xf32>
    %cst_63 = arith.constant 0.000000e+00 : f32
    %114 = vector.broadcast %cst_63 : f32 to vector<64x128xf32>
    %115 = arith.maximumf %113, %114 : vector<64x128xf32>
    %116 = arith.truncf %115 : vector<64x128xf32> to vector<64x128xbf16>
    %c0_64 = arith.constant 0 : index
    %c0_65 = arith.constant 0 : index
    %117 = vector.load %arg6[%c0_64, %c0_65] : memref<128x128xbf16, #tpu.memory_space<vmem>>, vector<128x128xbf16>
    %cst_66 = arith.constant dense<0.000000e+00> : vector<64x128xf32>
    %118 = tpu.matmul %116, %117, %cst_66 {dimension_numbers = #tpu.dot_dimension_numbers<[1], [0], [0], [1], [0, 0, 1, 1], [], []>} : vector<64x128xbf16>, vector<128x128xbf16>, vector<64x128xf32> -> vector<64x128xf32>
    %c0_67 = arith.constant 0 : index
    %c0_68 = arith.constant 0 : index
    %119 = vector.load %arg7[%c0_67, %c0_68] : memref<1x128xf32, #tpu.memory_space<vmem>>, vector<1x128xf32>
    %120 = vector.broadcast %119 : vector<1x128xf32> to vector<64x128xf32>
    %121 = arith.addf %118, %120 : vector<64x128xf32>
    %c0_69 = arith.constant 0 : index
    %c0_70 = arith.constant 0 : index
    %c0_71 = arith.constant 0 : index
    %122 = vector.load %arg1[%c0_69, %c0_70, %c0_71] : memref<1x64x128xbf16, #tpu.memory_space<vmem>>, vector<1x64x128xbf16>
    %123 = vector.shape_cast %122 : vector<1x64x128xbf16> to vector<64x128xbf16>
    %124 = arith.extf %123 : vector<64x128xbf16> to vector<64x128xf32>
    %125 = arith.addf %121, %124 : vector<64x128xf32>
    %cst_72 = arith.constant 0.000000e+00 : f32
    %126 = vector.broadcast %cst_72 : f32 to vector<64x128xf32>
    %127 = arith.maximumf %125, %126 : vector<64x128xf32>
    %128 = arith.truncf %127 : vector<64x128xf32> to vector<64x128xbf16>
    %c0_73 = arith.constant 0 : index
    %c0_74 = arith.constant 0 : index
    %c0_75 = arith.constant 0 : index
    %129 = vector.load %arg8[%c0_73, %c0_74, %c0_75] : memref<1x64x128xbf16, #tpu.memory_space<vmem>>, vector<1x64x128xbf16>
    %130 = vector.shape_cast %129 : vector<1x64x128xbf16> to vector<64x128xbf16>
    %131 = vector.shape_cast %128 : vector<64x128xbf16> to vector<1x64x128xbf16>
    tpu.vector_store %arg8[%c0_73, %c0_74, %c0_75], %131 {strides = array<i32>} : memref<1x64x128xbf16, #tpu.memory_space<vmem>>, vector<1x64x128xbf16>,
    return
  }
  func.func @transform_0(%arg0: i32) -> (i32, i32, i32) {
    %c0_i32 = arith.constant 0 : i32
    %c0_i32_0 = arith.constant 0 : i32
    %c0_i32_1 = arith.constant 0 : i32
    return %arg0, %c0_i32, %c0_i32_0 : i32, i32, i32
  }
  func.func @transform_1(%arg0: i32) -> (i32, i32) {
    %c0_i32 = arith.constant 0 : i32
    %c0_i32_0 = arith.constant 0 : i32
    %c0_i32_1 = arith.constant 0 : i32
    return %c0_i32, %c0_i32_0 : i32, i32
  }
  func.func @transform_2(%arg0: i32) -> (i32, i32) {
    %c0_i32 = arith.constant 0 : i32
    %c0_i32_0 = arith.constant 0 : i32
    %c0_i32_1 = arith.constant 0 : i32
    return %c0_i32, %c0_i32_0 : i32, i32
  }
  func.func @transform_3(%arg0: i32) -> (i32, i32, i32) {
    %c0_i32 = arith.constant 0 : i32
    %c0_i32_0 = arith.constant 0 : i32
    %c0_i32_1 = arith.constant 0 : i32
    %c0_i32_2 = arith.constant 0 : i32
    return %c0_i32, %c0_i32_0, %c0_i32_1 : i32, i32, i32
  }
  func.func @transform_4(%arg0: i32) -> (i32, i32) {
    %c0_i32 = arith.constant 0 : i32
    %c0_i32_0 = arith.constant 0 : i32
    %c0_i32_1 = arith.constant 0 : i32
    return %c0_i32, %c0_i32_0 : i32, i32
  }
  func.func @transform_5(%arg0: i32) -> (i32, i32) {
    %c0_i32 = arith.constant 0 : i32
    %c0_i32_0 = arith.constant 0 : i32
    %c0_i32_1 = arith.constant 0 : i32
    return %c0_i32, %c0_i32_0 : i32, i32
  }
  func.func @transform_6(%arg0: i32) -> (i32, i32) {
    %c0_i32 = arith.constant 0 : i32
    %c0_i32_0 = arith.constant 0 : i32
    %c0_i32_1 = arith.constant 0 : i32
    return %c0_i32, %c0_i32_0 : i32, i32
  }
  func.func @transform_7(%arg0: i32) -> (i32, i32, i32) {
    %c0_i32 = arith.constant 0 : i32
    %c0_i32_0 = arith.constant 0 : i32
    %c0_i32_1 = arith.constant 0 : i32
    return %arg0, %c0_i32, %c0_i32_0 : i32, i32, i32
  }
}

</mosaic_0001>

<llo_original>
// kernel: tpu_custom_call.1
$region0: #{tpu_custom_call.1}
  #allocation0 [shape = 'u32[]', space=smem, size = 0x4, offset = 0x4, fixed_abs, tag = 'smem constant byte address 0x4 - core index']
  #allocation1 [shape = 'u32[144,128]{1,0:T(1,128)}', space=vmem, size = 0x12000, scoped, tag = 'internal scratch']
  #allocation2 [shape = 'f32[96,128]{1,0:T(8,128)}', space=vmem, size = 0xc000, scoped, tag = 'scratch operand']
  %s0 = inlined_call_operand.hbm [shape: bf16[2,64,128], index: 0, kind: input, shape index: {}]
  %s1 = inlined_call_operand.hbm [shape: bf16[128,128], index: 1, kind: input, shape index: {}]
  %s2 = inlined_call_operand.vmem [shape: f32[1,128], index: 2, kind: input, shape index: {}]
  %s3 = inlined_call_operand.hbm [shape: bf16[9,128,128], index: 3, kind: input, shape index: {}]
  %s4 = inlined_call_operand.vmem [shape: f32[1,128], index: 4, kind: input, shape index: {}]
  %s5 = inlined_call_operand.hbm [shape: bf16[128,128], index: 5, kind: input, shape index: {}]
  %s6 = inlined_call_operand.vmem [shape: f32[1,128], index: 6, kind: input, shape index: {}]
  %s7 = inlined_call_operand.hbm [shape: bf16[2,64,128], index: 7, kind: output, shape index: {}]
  %s8 = sld [smem:[#allocation0]]
  $region77: #{tpu_custom_call.1} parent=0
    _
  %s10 = ssub.s32 1, %s8
  %s11 = scalar_select 0, %s10, %s8
  $region1: #{tpu_custom_call.1} parent=0
    #allocation3 [shape = 'u8[32768]{0}', space=vmem, size = 0x8000, scoped, tag = 'input window, operand 0']
    #allocation4 [shape = 's32[2]{0}', space=sflag, size = 0x8, scoped, tag = 'scoped memory for tpu_custom_call.1']
    #allocation5 [shape = 's32[2]{0}', space=sflag, size = 0x8, scoped, tag = 'scoped memory for tpu_custom_call.1']
    #allocation6 [shape = 'u8[32768]{0}', space=vmem, size = 0x8000, scoped, tag = 'input window, operand 1, single buffered']
    #allocation7 [shape = 's32[1]{0}', space=sflag, size = 0x4, scoped, tag = 'scoped memory for tpu_custom_call.1']
    #allocation8 [shape = 'u8[294912]{0}', space=vmem, size = 0x48000, scoped, tag = 'input window, operand 3, single buffered']
    #allocation9 [shape = 'u8[32768]{0}', space=vmem, size = 0x8000, scoped, tag = 'input window, operand 5, single buffered']
    #allocation10 [shape = 's32[1]{0}', space=sflag, size = 0x4, scoped, tag = 'scoped memory for tpu_custom_call.1']
    #allocation11 [shape = 'u8[32768]{0}', space=vmem, size = 0x8000, scoped, tag = 'output window, operand 0']
    %12 = vsyncpa [#allocation4], 0
    %s13 = scalar_lea.sflag [#allocation4], 1
    %14 = vsyncpa %s13, 0
    %15 = vsyncpa [#allocation7], 0
    %16 = vsyncpa [#allocation10], 0
    %17 = vsyncpa [#allocation5], 0
    %s18 = scalar_lea.sflag [#allocation5], 1
    %19 = vsyncpa %s18, 0
    loop: start=0, step=1, limit=4
    $region2: #{tpu_custom_call.1} parent=1 // loop_pre_header
      _
    $region3: #{tpu_custom_call.1} parent=1 // loop_header
      %s21 = sphi 0, %s25
      %p22 = scmp.ge.s32.totalorder %s21, 4
      %s31 = sphi 0, %s33
      %s34 = sphi 0, %s31
      %s35 = sphi 0, %s34
      %s51 = sphi 0, %s35
      %s55 = sphi 0, %s55
      %s57 = sphi 0, %s55
      %s58 = sphi 0, %s57
      %s72 = sphi 0, %s58
      %s76 = sphi 0, %s76
      %s78 = sphi 0, %s76
      %s79 = sphi 0, %s78
      %s93 = sphi 0, %s79
      %s97 = sphi 0, %s97
      %s99 = sphi 0, %s97
      %s100 = sphi 0, %s99
      %s114 = sphi 0, %s100
      %s118 = sphi 0, %s118
      %s120 = sphi 0, %s118
      %s121 = sphi 0, %s120
      %s135 = sphi 0, %s121
      %s139 = sphi 0, %s139
      %s141 = sphi 0, %s139
      %s142 = sphi 0, %s141
      %s156 = sphi 0, %s142
      %s160 = sphi 0, %s160
      %s162 = sphi 0, %s160
      %s163 = sphi 0, %s162
      %s177 = sphi 0, %s163
      %s183 = sphi 0, %s185
      %s186 = sphi 0, %s183
      %s187 = sphi 0, %s186
      %s203 = sphi 0, %s187
    $region4: #{tpu_custom_call.1} parent=1 // loop_header_branch
      %24 = sbr.rel (%p22) target = $region8
    $region5: #{tpu_custom_call.1} parent=1 // loop_body
      %s26 = ssub.s32 %s21, 1
      %s27 = ssub.s32 %s21, 2
      %s28 = sadd.s32 %s21, 1
      %s29 = ssub.s32 %s21, %s28
      %p30 = scmp.eq.s32.totalorder %s29, 0
      %s32 = sadd.s32 %s31, 1
      %s33 = scalar_select %p30, %s31, %s32
      %p36 = pneg %p30
      %p37 = scmp.eq.s32.totalorder %s21, 1
      %p38 = por %p36, %p37
      %p39 = scmp.ne.s32.totalorder %s31, %s34
      %p40 = scmp.eq.s32.totalorder %s21, 0
      %p41 = por %p39, %p40
      %p42 = scmp.ne.s32.totalorder %s31, %s34
      %p43 = scmp.eq.s32.totalorder %s26, 1
      %p44 = por %p42, %p43
      %p45 = scmp.ne.s32.totalorder %s34, %s35
      %p46 = scmp.eq.s32.totalorder %s26, 0
      %p47 = por %p45, %p46
      %p48 = scmp.ne.s32.totalorder %s34, %s35
      %p49 = scmp.eq.s32.totalorder %s27, 1
      %p50 = por %p48, %p49
      %p52 = scmp.ne.s32.totalorder %s35, %s51
      %p53 = scmp.eq.s32.totalorder %s27, 0
      %p54 = por %p52, %p53
      %s56 = sadd.s32 %s55, 1
      %p59 = scmp.eq.s32.totalorder %s21, 1
      %p60 = scmp.ne.s32.totalorder %s55, %s57
      %p61 = scmp.eq.s32.totalorder %s21, 0
      %p62 = por %p60, %p61
      %p63 = scmp.ne.s32.totalorder %s55, %s57
      %p64 = scmp.eq.s32.totalorder %s26, 1
      %p65 = por %p63, %p64
      %p66 = scmp.ne.s32.totalorder %s57, %s58
      %p67 = scmp.eq.s32.totalorder %s26, 0
      %p68 = por %p66, %p67
      %p69 = scmp.ne.s32.totalorder %s57, %s58
      %p70 = scmp.eq.s32.totalorder %s27, 1
      %p71 = por %p69, %p70
      %p73 = scmp.ne.s32.totalorder %s58, %s72
      %p74 = scmp.eq.s32.totalorder %s27, 0
      %p75 = por %p73, %p74
      %s77 = sadd.s32 %s76, 1
      %p80 = scmp.eq.s32.totalorder %s21, 1
      %p81 = scmp.ne.s32.totalorder %s76, %s78
      %p82 = scmp.eq.s32.totalorder %s21, 0
      %p83 = por %p81, %p82
      %p84 = scmp.ne.s32.totalorder %s76, %s78
      %p85 = scmp.eq.s32.totalorder %s26, 1
      %p86 = por %p84, %p85
      %p87 = scmp.ne.s32.totalorder %s78, %s79
      %p88 = scmp.eq.s32.totalorder %s26, 0
      %p89 = por %p87, %p88
      %p90 = scmp.ne.s32.totalorder %s78, %s79
      %p91 = scmp.eq.s32.totalorder %s27, 1
      %p92 = por %p90, %p91
      %p94 = scmp.ne.s32.totalorder %s79, %s93
      %p95 = scmp.eq.s32.totalorder %s27, 0
      %p96 = por %p94, %p95
      %s98 = sadd.s32 %s97, 1
      %p101 = scmp.eq.s32.totalorder %s21, 1
      %p102 = scmp.ne.s32.totalorder %s97, %s99
      %p103 = scmp.eq.s32.totalorder %s21, 0
      %p104 = por %p102, %p103
      %p105 = scmp.ne.s32.totalorder %s97, %s99
      %p106 = scmp.eq.s32.totalorder %s26, 1
      %p107 = por %p105, %p106
      %p108 = scmp.ne.s32.totalorder %s99, %s100
      %p109 = scmp.eq.s32.totalorder %s26, 0
      %p110 = por %p108, %p109
      %p111 = scmp.ne.s32.totalorder %s99, %s100
      %p112 = scmp.eq.s32.totalorder %s27, 1
      %p113 = por %p111, %p112
      %p115 = scmp.ne.s32.totalorder %s100, %s114
      %p116 = scmp.eq.s32.totalorder %s27, 0
      %p117 = por %p115, %p116
      %s119 = sadd.s32 %s118, 1
      %p122 = scmp.eq.s32.totalorder %s21, 1
      %p123 = scmp.ne.s32.totalorder %s118, %s120
      %p124 = scmp.eq.s32.totalorder %s21, 0
      %p125 = por %p123, %p124
      %p126 = scmp.ne.s32.totalorder %s118, %s120
      %p127 = scmp.eq.s32.totalorder %s26, 1
      %p128 = por %p126, %p127
      %p129 = scmp.ne.s32.totalorder %s120, %s121
      %p130 = scmp.eq.s32.totalorder %s26, 0
      %p131 = por %p129, %p130
      %p132 = scmp.ne.s32.totalorder %s120, %s121
      %p133 = scmp.eq.s32.totalorder %s27, 1
      %p134 = por %p132, %p133
      %p136 = scmp.ne.s32.totalorder %s121, %s135
      %p137 = scmp.eq.s32.totalorder %s27, 0
      %p138 = por %p136, %p137
      %s140 = sadd.s32 %s139, 1
      %p143 = scmp.eq.s32.totalorder %s21, 1
      %p144 = scmp.ne.s32.totalorder %s139, %s141
      %p145 = scmp.eq.s32.totalorder %s21, 0
      %p146 = por %p144, %p145
      %p147 = scmp.ne.s32.totalorder %s139, %s141
      %p148 = scmp.eq.s32.totalorder %s26, 1
      %p149 = por %p147, %p148
      %p150 = scmp.ne.s32.totalorder %s141, %s142
      %p151 = scmp.eq.s32.totalorder %s26, 0
      %p152 = por %p150, %p151
      %p153 = scmp.ne.s32.totalorder %s141, %s142
      %p154 = scmp.eq.s32.totalorder %s27, 1
      %p155 = por %p153, %p154
      %p157 = scmp.ne.s32.totalorder %s142, %s156
      %p158 = scmp.eq.s32.totalorder %s27, 0
      %p159 = por %p157, %p158
      %s161 = sadd.s32 %s160, 1
      %p164 = scmp.eq.s32.totalorder %s21, 1
      %p165 = scmp.ne.s32.totalorder %s160, %s162
      %p166 = scmp.eq.s32.totalorder %s21, 0
      %p167 = por %p165, %p166
      %p168 = scmp.ne.s32.totalorder %s160, %s162
      %p169 = scmp.eq.s32.totalorder %s26, 1
      %p170 = por %p168, %p169
      %p171 = scmp.ne.s32.totalorder %s162, %s163
      %p172 = scmp.eq.s32.totalorder %s26, 0
      %p173 = por %p171, %p172
      %p174 = scmp.ne.s32.totalorder %s162, %s163
      %p175 = scmp.eq.s32.totalorder %s27, 1
      %p176 = por %p174, %p175
      %p178 = scmp.ne.s32.totalorder %s163, %s177
      %p179 = scmp.eq.s32.totalorder %s27, 0
      %p180 = por %p178, %p179
      %s181 = ssub.s32 %s21, %s28
      %p182 = scmp.eq.s32.totalorder %s181, 0
      %s184 = sadd.s32 %s183, 1
      %s185 = scalar_select %p182, %s183, %s184
      %p188 = pneg %p182
      %p189 = scmp.eq.s32.totalorder %s21, 1
      %p190 = por %p188, %p189
      %p191 = scmp.ne.s32.totalorder %s183, %s186
      %p192 = scmp.eq.s32.totalorder %s21, 0
      %p193 = por %p191, %p192
      %p194 = scmp.ne.s32.totalorder %s183, %s186
      %p195 = scmp.eq.s32.totalorder %s26, 1
      %p196 = por %p194, %p195
      %p197 = scmp.ne.s32.totalorder %s186, %s187
      %p198 = scmp.eq.s32.totalorder %s26, 0
      %p199 = por %p197, %p198
      %p200 = scmp.ne.s32.totalorder %s186, %s187
      %p201 = scmp.eq.s32.totalorder %s27, 1
      %p202 = por %p200, %p201
      %p204 = scmp.ne.s32.totalorder %s187, %s203
      %p205 = scmp.eq.s32.totalorder %s27, 0
      %p206 = por %p204, %p205
      %p207 = scmp.le.s32.totalorder 1, %s21
      %p208 = scmp.lt.s32.totalorder %s21, 3
      %p209 = pnand %p207, %p208
      %p210 = pneg %p209
      // Predicated region
      $region9: #{tpu_custom_call.1} parent=5 // pred_check
        _
      $region10: #{tpu_custom_call.1} parent=5 // pred_check_branch
        %212 = sbr.rel (%p209) target = $region12
      $region11: #{tpu_custom_call.1} parent=5 // pred_region
        %s213 = ssub.s32 %s21, 1
        // Predicated region
        $region13: #{tpu_custom_call.1} parent=11 // pred_check
          %p214 = pneg %p68
        $region14: #{tpu_custom_call.1} parent=11 // pred_check_branch
          %216 = sbr.rel (%p214) target = $region16
        $region15: #{tpu_custom_call.1} parent=11 // pred_region
          %s218 = ssub.s32 1024, 1024
          %219 = vsyncadd [#allocation7], %s218
          %s220 = sshll.u32 [#allocation6], 4
          %s221 = int_to_ptr.vmem [resolvable:$true] %s220
          %226 = dma.hbm_to_vmem [thread:$0]  %s1, 1024, %s221, [#allocation7], 64, 64, 4
        $region16: #{tpu_custom_call.1} parent=11 // pred_fallthru
          _
        // Predicated region
        $region17: #{tpu_custom_call.1} parent=11 // pred_check
          %p227 = pneg %p89
        $region18: #{tpu_custom_call.1} parent=11 // pred_check_branch
          %229 = sbr.rel (%p227) target = $region20
        $region19: #{tpu_custom_call.1} parent=11 // pred_region
          _
        $region20: #{tpu_custom_call.1} parent=11 // pred_fallthru
          _
        // Predicated region
        $region21: #{tpu_custom_call.1} parent=11 // pred_check
          %p230 = pneg %p110
        $region22: #{tpu_custom_call.1} parent=11 // pred_check_branch
          %232 = sbr.rel (%p230) target = $region24
        $region23: #{tpu_custom_call.1} parent=11 // pred_region
          %s234 = ssub.s32 9216, 9216
          %235 = vsyncadd [#allocation7], %s234
          %s236 = sshll.u32 [#allocation8], 4
          %s237 = int_to_ptr.vmem [resolvable:$true] %s236
          %242 = dma.hbm_to_vmem [thread:$0]  %s3, 9216, %s237, [#allocation7], 64, 64, 4
        $region24: #{tpu_custom_call.1} parent=11 // pred_fallthru
          _
        // Predicated region
        $region25: #{tpu_custom_call.1} parent=11 // pred_check
          %p243 = pneg %p131
        $region26: #{tpu_custom_call.1} parent=11 // pred_check_branch
          %245 = sbr.rel (%p243) target = $region28
        $region27: #{tpu_custom_call.1} parent=11 // pred_region
          _
        $region28: #{tpu_custom_call.1} parent=11 // pred_fallthru
          _
        // Predicated region
        $region29: #{tpu_custom_call.1} parent=11 // pred_check
          %p246 = pneg %p152
        $region30: #{tpu_custom_call.1} parent=11 // pred_check_branch
          %248 = sbr.rel (%p246) target = $region32
        $region31: #{tpu_custom_call.1} parent=11 // pred_region
          %s250 = ssub.s32 1024, 1024
          %251 = vsyncadd [#allocation10], %s250
          %s252 = sshll.u32 [#allocation9], 4
          %s253 = int_to_ptr.vmem [resolvable:$true] %s252
          %258 = dma.hbm_to_vmem [thread:$0]  %s5, 1024, %s253, [#allocation10], 64, 64, 4
        $region32: #{tpu_custom_call.1} parent=11 // pred_fallthru
          _
        // Predicated region
        $region33: #{tpu_custom_call.1} parent=11 // pred_check
          %p259 = pneg %p173
        $region34: #{tpu_custom_call.1} parent=11 // pred_check_branch
          %261 = sbr.rel (%p259) target = $region36
        $region35: #{tpu_custom_call.1} parent=11 // pred_region
          _
        $region36: #{tpu_custom_call.1} parent=11 // pred_fallthru
          _
      $region12: #{tpu_custom_call.1} parent=5 // pred_fallthru
        _
      %p262 = scmp.lt.s32.totalorder %s21, 2
      // Predicated region
      $region37: #{tpu_custom_call.1} parent=5 // pred_check
        %p263 = pneg %p262
      $region38: #{tpu_custom_call.1} parent=5 // pred_check_branch
        %265 = sbr.rel (%p263) target = $region40
      $region39: #{tpu_custom_call.1} parent=5 // pred_region
        // Predicated region
        $region41: #{tpu_custom_call.1} parent=39 // pred_check
          %p266 = pneg %p41
        $region42: #{tpu_custom_call.1} parent=39 // pred_check_branch
          %268 = sbr.rel (%p266) target = $region44
        $region43: #{tpu_custom_call.1} parent=39 // pred_region
          %s269 = sand.u32 %s31, 1
          %s270 = scalar_lea.sflag [#allocation4], %s269
          %s271 = sand.u32 %s31, 1
          %s272 = smul.addr %s271, 32
          %s273 = scalar_lea.vmem [#allocation3], %s272
          %s275 = ssub.s32 512, 512
          %276 = vsyncadd %s270, %s275
          %s277 = smul.addr %s21, 8
          %s278 = smul.addr %s277, 64
          %s279 = scalar_lea.hbm %s0, %s278
          %s280 = sshll.u32 %s273, 4
          %s281 = int_to_ptr.vmem [resolvable:$true] %s280
          %286 = dma.hbm_to_vmem [thread:$0]  %s279, 512, %s281, %s270, 64, 64, 4
        $region44: #{tpu_custom_call.1} parent=39 // pred_fallthru
          _
      $region40: #{tpu_custom_call.1} parent=5 // pred_fallthru
        _
      %p287 = scmp.le.s32.totalorder 1, %s21
      %p288 = scmp.lt.s32.totalorder %s21, 3
      %p289 = pnand %p287, %p288
      %p290 = pneg %p289
      // Predicated region
      $region45: #{tpu_custom_call.1} parent=5 // pred_check
        _
      $region46: #{tpu_custom_call.1} parent=5 // pred_check_branch
        %292 = sbr.rel (%p289) target = $region48
      $region47: #{tpu_custom_call.1} parent=5 // pred_region
        %s293 = ssub.s32 %s21, 1
        %s294 = sand.u32 %s34, 1
        %s295 = scalar_lea.sflag [#allocation4], %s294
        %s296 = sand.u32 %s34, 1
        %s297 = smul.addr %s296, 32
        %s298 = scalar_lea.vmem [#allocation3], %s297
        // Predicated region
        $region49: #{tpu_custom_call.1} parent=47 // pred_check
          %p299 = pneg %p47
        $region50: #{tpu_custom_call.1} parent=47 // pred_check_branch
          %301 = sbr.rel (%p299) target = $region52
        $region51: #{tpu_custom_call.1} parent=47 // pred_region
          %302 = dma.done %s295, 512
        $region52: #{tpu_custom_call.1} parent=47 // pred_fallthru
          _
        // Predicated region
        $region53: #{tpu_custom_call.1} parent=47 // pred_check
          %p303 = pneg %p68
        $region54: #{tpu_custom_call.1} parent=47 // pred_check_branch
          %305 = sbr.rel (%p303) target = $region56
        $region55: #{tpu_custom_call.1} parent=47 // pred_region
          %306 = dma.done [#allocation7], 1024
        $region56: #{tpu_custom_call.1} parent=47 // pred_fallthru
          _
        // Predicated region
        $region57: #{tpu_custom_call.1} parent=47 // pred_check
          %p307 = pneg %p110
        $region58: #{tpu_custom_call.1} parent=47 // pred_check_branch
          %309 = sbr.rel (%p307) target = $region60
        $region59: #{tpu_custom_call.1} parent=47 // pred_region
          %310 = dma.done [#allocation7], 9216
        $region60: #{tpu_custom_call.1} parent=47 // pred_fallthru
          _
        // Predicated region
        $region61: #{tpu_custom_call.1} parent=47 // pred_check
          %p311 = pneg %p152
        $region62: #{tpu_custom_call.1} parent=47 // pred_check_branch
          %313 = sbr.rel (%p311) target = $region64
        $region63: #{tpu_custom_call.1} parent=47 // pred_region
          %314 = dma.done [#allocation10], 1024
        $region64: #{tpu_custom_call.1} parent=47 // pred_fallthru
          _
        %s315 = sand.u32 %s34, 1
        %s316 = scalar_lea.sflag [#allocation4], %s315
        %s317 = sand.u32 %s34, 1
        %s318 = smul.addr %s317, 32
        %s319 = scalar_lea.vmem [#allocation3], %s318
        %p320 = pneg %p47
        %p321 = pneg %p44
        %p322 = pneg %p68
        %p323 = pneg %p65
        %p324 = pneg %p89
        %p325 = pneg %p86
        %p326 = pneg %p110
        %p327 = pneg %p107
        %p328 = pneg %p131
        %p329 = pneg %p128
        %p330 = pneg %p152
        %p331 = pneg %p149
        %p332 = pneg %p173
        %p333 = pneg %p170
        %p334 = pneg %p199
        %p335 = pneg %p196
        %s336 = sand.u32 %s186, 1
        %s337 = scalar_lea.sflag [#allocation5], %s336
        %s338 = sand.u32 %s186, 1
        %s339 = smul.addr %s338, 32
        %s340 = scalar_lea.vmem [#allocation11], %s339
        %v342 = vld [vmem:[%s298] sm:$0xf]
        %v343 = vld [vmem:[%s298 + $0x4] sm:$0xf]
        %v344 = vld [vmem:[%s298 + $0x8] sm:$0xf]
        %v345 = vld [vmem:[%s298 + $0xc] sm:$0xf]
        %v346 = vld [vmem:[%s298 + $0x10] sm:$0xf]
        %v347 = vld [vmem:[%s298 + $0x14] sm:$0xf]
        %v348 = vld [vmem:[%s298 + $0x18] sm:$0xf]
        %v349 = vld [vmem:[%s298 + $0x1c] sm:$0xf]
        %v350 = vld [vmem:[#allocation6] sm:$0xf]
        %v351 = vld [vmem:[#allocation6 + $0x4] sm:$0xf]
        %v352 = vld [vmem:[#allocation6 + $0x8] sm:$0xf]
        %v353 = vld [vmem:[#allocation6 + $0xc] sm:$0xf]
        %v354 = vld [vmem:[#allocation6 + $0x10] sm:$0xf]
        %v355 = vld [vmem:[#allocation6 + $0x14] sm:$0xf]
        %v356 = vld [vmem:[#allocation6 + $0x18] sm:$0xf]
        %v357 = vld [vmem:[#allocation6 + $0x1c] sm:$0xf]
        %v358 = vld [vmem:[#allocation6 + $0x20] sm:$0xf]
        %v359 = vld [vmem:[#allocation6 + $0x24] sm:$0xf]
        %v360 = vld [vmem:[#allocation6 + $0x28] sm:$0xf]
        %v361 = vld [vmem:[#allocation6 + $0x2c] sm:$0xf]
        %v362 = vld [vmem:[#allocation6 + $0x30] sm:$0xf]
        %v363 = vld [vmem:[#allocation6 + $0x34] sm:$0xf]
        %v364 = vld [vmem:[#allocation6 + $0x38] sm:$0xf]
        %v365 = vld [vmem:[#allocation6 + $0x3c] sm:$0xf]
        %v366 = vld [vmem:[%s2] sm:$0x1]
        %v368 = vlaneseq
        %v369 = vshrl.u32 %v368, 7
        %v370 = vsub.s32 0, %v369
        %v371 = vrot.slane %v366, %v370
        %v381 = vunpack.c.l.b16 %v342
        %v382 = vunpack.c.l.b16 %v343
        %v383 = vunpack.c.l.b16 %v344
        %v384 = vunpack.c.l.b16 %v345
        %v385 = vunpack.c.l.b16 %v346
        %v386 = vunpack.c.l.b16 %v347
        %v387 = vunpack.c.l.b16 %v348
        %v388 = vunpack.c.l.b16 %v349
        %v389 = vpack.c.b16 %v382, %v381
        %v390 = vpack.c.b16 %v384, %v383
        %v391 = vpack.c.b16 %v386, %v385
        %v392 = vpack.c.b16 %v388, %v387
        %v413 = vunpack.c.l.b16 %v350
        %v414 = vunpack.c.l.b16 %v351
        %v415 = vunpack.c.l.b16 %v352
        %v416 = vunpack.c.l.b16 %v353
        %v417 = vunpack.c.l.b16 %v354
        %v418 = vunpack.c.l.b16 %v355
        %v419 = vunpack.c.l.b16 %v356
        %v420 = vunpack.c.l.b16 %v357
        %v421 = vunpack.c.l.b16 %v358
        %v422 = vunpack.c.l.b16 %v359
        %v423 = vunpack.c.l.b16 %v360
        %v424 = vunpack.c.l.b16 %v361
        %v425 = vunpack.c.l.b16 %v362
        %v426 = vunpack.c.l.b16 %v363
        %v427 = vunpack.c.l.b16 %v364
        %v428 = vunpack.c.l.b16 %v365
        %v429 = vpack.c.b16 %v414, %v413
        %v430 = vpack.c.b16 %v416, %v415
        %v431 = vpack.c.b16 %v418, %v417
        %v432 = vpack.c.b16 %v420, %v419
        %v433 = vpack.c.b16 %v422, %v421
        %v434 = vpack.c.b16 %v424, %v423
        %v435 = vpack.c.b16 %v426, %v425
        %v436 = vpack.c.b16 %v428, %v427
        %445 = vmatprep.subr.bf16.mxu0 0
        %446 = vmatpush1.bf16.msra.mxu0 %v429
        %447 = vmatprep.subr.bf16.mxu0 0
        %448 = vmatpush1.bf16.msra.mxu0 %v430
        %449 = vmatprep.subr.bf16.mxu0 0
        %450 = vmatpush1.bf16.msra.mxu0 %v431
        %451 = vmatprep.subr.bf16.mxu0 0
        %452 = vmatpush1.bf16.msra.mxu0 %v432
        %453 = vmatprep.subr.bf16.mxu0 0
        %454 = vmatpush1.bf16.msra.mxu0 %v433
        %455 = vmatprep.subr.bf16.mxu0 0
        %456 = vmatpush1.bf16.msra.mxu0 %v434
        %457 = vmatprep.subr.bf16.mxu0 0
        %458 = vmatpush1.bf16.msra.mxu0 %v435
        %459 = vmatprep.subr.bf16.mxu0 0
        %460 = vmatpush1.bf16.msra.mxu0 %v436
        %461 = vmatprep.subr.bf16.mxu0 0
        %462 = vmatpush1.bf16.msra.mxu0 0
        %463 = vmatprep.subr.bf16.mxu0 0
        %464 = vmatpush1.bf16.msra.mxu0 0
        %465 = vmatprep.subr.bf16.mxu0 0
        %466 = vmatpush1.bf16.msra.mxu0 0
        %467 = vmatprep.subr.bf16.mxu0 0
        %468 = vmatpush1.bf16.msra.mxu0 0
        %469 = vmatprep.subr.bf16.mxu0 0
        %470 = vmatpush1.bf16.msra.mxu0 0
        %471 = vmatprep.subr.bf16.mxu0 0
        %472 = vmatpush1.bf16.msra.mxu0 0
        %473 = vmatprep.subr.bf16.mxu0 0
        %474 = vmatpush1.bf16.msra.mxu0 0
        %475 = vmatprep.subr.bf16.mxu0 0
        %476 = vmatpush1.bf16.msra.mxu0 0
        %477 = vmatprep.mubr.bf16.mxu0 0
        %478 = vmatmul.mubr.bf16.gmra.mrb[0].mxu0 %v389
        %v479 = vpop.f32.mrb[0].mxu0
        %v480 = vadd.f32 %v371, %v479
        %v481 = vpop.f32.mrb[0].mxu0
        %v482 = vpop.f32.mrb[0].mxu0
        %v483 = vadd.f32 %v371, %v482
        %v484 = vpop.f32.mrb[0].mxu0
        %485 = vmatprep.mubr.bf16.mxu0 0
        %486 = vmatmul.mubr.bf16.gmra.mrb[0].mxu0 %v390
        %v487 = vpop.f32.mrb[0].mxu0
        %v488 = vadd.f32 %v371, %v487
        %v489 = vpop.f32.mrb[0].mxu0
        %v490 = vpop.f32.mrb[0].mxu0
        %v491 = vadd.f32 %v371, %v490
        %v492 = vpop.f32.mrb[0].mxu0
        %493 = vmatprep.mubr.bf16.mxu0 0
        %494 = vmatmul.mubr.bf16.gmra.mrb[0].mxu0 %v391
        %v495 = vpop.f32.mrb[0].mxu0
        %v496 = vadd.f32 %v371, %v495
        %v497 = vpop.f32.mrb[0].mxu0
        %v498 = vpop.f32.mrb[0].mxu0
        %v499 = vadd.f32 %v371, %v498
        %v500 = vpop.f32.mrb[0].mxu0
        %501 = vmatprep.mubr.bf16.mxu0 0
        %502 = vmatmul.mubr.bf16.gmra.mrb[0].mxu0 %v392
        %v503 = vpop.f32.mrb[0].mxu0
        %v504 = vadd.f32 %v371, %v503
        %v505 = vpop.f32.mrb[0].mxu0
        %v506 = vpop.f32.mrb[0].mxu0
        %v507 = vadd.f32 %v371, %v506
        %v508 = vpop.f32.mrb[0].mxu0
        %509 = vdwg.mxu0
        %v510 = vmax.f32 %v480, 0.0
        %v511 = vmax.f32 %v483, 0.0
        %v512 = vmax.f32 %v488, 0.0
        %v513 = vmax.f32 %v491, 0.0
        %v514 = vmax.f32 %v496, 0.0
        %v515 = vmax.f32 %v499, 0.0
        %v516 = vmax.f32 %v504, 0.0
        %v517 = vmax.f32 %v507, 0.0
        %518 = vst [vmem:[#allocation2] sm:$0xff] 0.0
        %519 = vst [vmem:[#allocation2 + $0x8] sm:$0xff] 0.0
        %520 = vst [vmem:[#allocation2 + $0x50] sm:$0xff] 0.0
        %521 = vst [vmem:[#allocation2 + $0x58] sm:$0xff] 0.0
        %522 = vst [vmem:[#allocation2 + $0x10] sm:$0xff] %v510
        %523 = vst [vmem:[#allocation2 + $0x18] sm:$0xff] %v511
        %524 = vst [vmem:[#allocation2 + $0x20] sm:$0xff] %v512
        %525 = vst [vmem:[#allocation2 + $0x28] sm:$0xff] %v513
        %526 = vst [vmem:[#allocation2 + $0x30] sm:$0xff] %v514
        %527 = vst [vmem:[#allocation2 + $0x38] sm:$0xff] %v515
        %528 = vst [vmem:[#allocation2 + $0x40] sm:$0xff] %v516
        %529 = vst [vmem:[#allocation2 + $0x48] sm:$0xff] %v517
        %v530 = vlaneseq
        %v531 = vshrl.u32 %v530, 7
        %v532 = vadd.s32 %v531, 8
        %v533 = vadd.s32 %v531, 16
        %v534 = vadd.s32 %v531, 24
        %v535 = vadd.s32 %v531, 32
        %v536 = vadd.s32 %v531, 40
        %v537 = vadd.s32 %v531, 48
        %v538 = vadd.s32 %v531, 56
        %vm539 = vcmp.lt.s32.totalorder %v531, 0
        %v540 = vsub.s32 0, %v531
        %v541 = vsel %vm539, %v540, %v531
        %v542 = vshrl.u32 %v541, 3
        %v543 = vand.u32 %v541, 7
        %v544 = vsub.s32 0, %v543
        %v545 = vsel %vm539, %v544, %v543
        %vm546 = vcmp.lt.s32.totalorder %v532, 0
        %v547 = vsub.s32 0, %v532
        %v548 = vsel %vm546, %v547, %v532
        %v549 = vshrl.u32 %v548, 3
        %v550 = vand.u32 %v548, 7
        %v551 = vsub.s32 0, %v550
        %v552 = vsel %vm546, %v551, %v550
        %vm553 = vcmp.lt.s32.totalorder %v533, 0
        %v554 = vsub.s32 0, %v533
        %v555 = vsel %vm553, %v554, %v533
        %v556 = vshrl.u32 %v555, 3
        %v557 = vand.u32 %v555, 7
        %v558 = vsub.s32 0, %v557
        %v559 = vsel %vm553, %v558, %v557
        %vm560 = vcmp.lt.s32.totalorder %v534, 0
        %v561 = vsub.s32 0, %v534
        %v562 = vsel %vm560, %v561, %v534
        %v563 = vshrl.u32 %v562, 3
        %v564 = vand.u32 %v562, 7
        %v565 = vsub.s32 0, %v564
        %v566 = vsel %vm560, %v565, %v564
        %vm567 = vcmp.lt.s32.totalorder %v535, 0
        %v568 = vsub.s32 0, %v535
        %v569 = vsel %vm567, %v568, %v535
        %v570 = vshrl.u32 %v569, 3
        %v571 = vand.u32 %v569, 7
        %v572 = vsub.s32 0, %v571
        %v573 = vsel %vm567, %v572, %v571
        %vm574 = vcmp.lt.s32.totalorder %v536, 0
        %v575 = vsub.s32 0, %v536
        %v576 = vsel %vm574, %v575, %v536
        %v577 = vshrl.u32 %v576, 3
        %v578 = vand.u32 %v576, 7
        %v579 = vsub.s32 0, %v578
        %v580 = vsel %vm574, %v579, %v578
        %vm581 = vcmp.lt.s32.totalorder %v537, 0
        %v582 = vsub.s32 0, %v537
        %v583 = vsel %vm581, %v582, %v537
        %v584 = vshrl.u32 %v583, 3
        %v585 = vand.u32 %v583, 7
        %v586 = vsub.s32 0, %v585
        %v587 = vsel %vm581, %v586, %v585
        %vm588 = vcmp.lt.s32.totalorder %v538, 0
        %v589 = vsub.s32 0, %v538
        %v590 = vsel %vm588, %v589, %v538
        %v591 = vshrl.u32 %v590, 3
        %v592 = vand.u32 %v590, 7
        %v593 = vsub.s32 0, %v592
        %v594 = vsel %vm588, %v593, %v592
        %vm595 = vcmp.ne.s32.totalorder %v545, 0
        %vm596 = vcmp.ne.s32.totalorder %v552, 0
        %vm597 = vcmp.ne.s32.totalorder %v559, 0
        %vm598 = vcmp.ne.s32.totalorder %v566, 0
        %vm599 = vcmp.ne.s32.totalorder %v573, 0
        %vm600 = vcmp.ne.s32.totalorder %v580, 0
        %vm601 = vcmp.ne.s32.totalorder %v587, 0
        %vm602 = vcmp.ne.s32.totalorder %v594, 0
        %vm603 = vcmp.lt.s32.totalorder %v545, 0
        %vm604 = vcmp.lt.s32.totalorder %v552, 0
        %vm605 = vcmp.lt.s32.totalorder %v559, 0
        %vm606 = vcmp.lt.s32.totalorder %v566, 0
        %vm607 = vcmp.lt.s32.totalorder %v573, 0
        %vm608 = vcmp.lt.s32.totalorder %v580, 0
        %vm609 = vcmp.lt.s32.totalorder %v587, 0
        %vm610 = vcmp.lt.s32.totalorder %v594, 0
        %vm611 = vmand %vm603, %vm595
        %vm612 = vmand %vm604, %vm596
        %vm613 = vmand %vm605, %vm597
        %vm614 = vmand %vm606, %vm598
        %vm615 = vmand %vm607, %vm599
        %vm616 = vmand %vm608, %vm600
        %vm617 = vmand %vm609, %vm601
        %vm618 = vmand %vm610, %vm602
        %v619 = vadd.s32 %v545, 8
        %v620 = vadd.s32 %v552, 8
        %v621 = vadd.s32 %v559, 8
        %v622 = vadd.s32 %v566, 8
        %v623 = vadd.s32 %v573, 8
        %v624 = vadd.s32 %v580, 8
        %v625 = vadd.s32 %v587, 8
        %v626 = vadd.s32 %v594, 8
        %v627 = vsel %vm611, %v619, %v545
        %v628 = vsel %vm612, %v620, %v552
        %v629 = vsel %vm613, %v621, %v559
        %v630 = vsel %vm614, %v622, %v566
        %v631 = vsel %vm615, %v623, %v573
        %v632 = vsel %vm616, %v624, %v580
        %v633 = vsel %vm617, %v625, %v587
        %v634 = vsel %vm618, %v626, %v594
        %vm635 = vcmp.ge.s32.totalorder %v627, 1
        %vm636 = vcmp.ge.s32.totalorder %v628, 1
        %vm637 = vcmp.ge.s32.totalorder %v629, 1
        %vm638 = vcmp.ge.s32.totalorder %v630, 1
        %vm639 = vcmp.ge.s32.totalorder %v631, 1
        %vm640 = vcmp.ge.s32.totalorder %v632, 1
        %vm641 = vcmp.ge.s32.totalorder %v633, 1
        %vm642 = vcmp.ge.s32.totalorder %v634, 1
        %vm643 = vcmp.le.s32.totalorder %v627, 6
        %vm644 = vcmp.le.s32.totalorder %v628, 6
        %vm645 = vcmp.le.s32.totalorder %v629, 6
        %vm646 = vcmp.le.s32.totalorder %v630, 6
        %vm647 = vcmp.le.s32.totalorder %v631, 6
        %vm648 = vcmp.le.s32.totalorder %v632, 6
        %vm649 = vcmp.le.s32.totalorder %v633, 6
        %vm650 = vcmp.le.s32.totalorder %v634, 6
        %v651 = vpack.c.bf16 %v511, %v510
        %v652 = vpack.c.bf16 %v513, %v512
        %v653 = vpack.c.bf16 %v515, %v514
        %v654 = vpack.c.bf16 %v517, %v516
        %s655 = scalar_lea.vmem [#allocation8], 256
        %v656 = vld [vmem:[%s655] sm:$0xf]
        %v657 = vld [vmem:[%s655 + $0x4] sm:$0xf]
        %v658 = vld [vmem:[%s655 + $0x8] sm:$0xf]
        %v659 = vld [vmem:[%s655 + $0xc] sm:$0xf]
        %v660 = vld [vmem:[%s655 + $0x10] sm:$0xf]
        %v661 = vld [vmem:[%s655 + $0x14] sm:$0xf]
        %v662 = vld [vmem:[%s655 + $0x18] sm:$0xf]
        %v663 = vld [vmem:[%s655 + $0x1c] sm:$0xf]
        %v664 = vld [vmem:[%s655 + $0x20] sm:$0xf]
        %v665 = vld [vmem:[%s655 + $0x24] sm:$0xf]
        %v666 = vld [vmem:[%s655 + $0x28] sm:$0xf]
        %v667 = vld [vmem:[%s655 + $0x2c] sm:$0xf]
        %v668 = vld [vmem:[%s655 + $0x30] sm:$0xf]
        %v669 = vld [vmem:[%s655 + $0x34] sm:$0xf]
        %v670 = vld [vmem:[%s655 + $0x38] sm:$0xf]
        %v671 = vld [vmem:[%s655 + $0x3c] sm:$0xf]
        %v672 = vld [vmem:[#allocation2 + $0x7] sm:$0xff]
        %v673 = vld [vmem:[#allocation2 + $0xf] sm:$0xff]
        %v674 = vld [vmem:[#allocation2 + $0x17] sm:$0xff]
        %v675 = vld [vmem:[#allocation2 + $0x1f] sm:$0xff]
        %v676 = vld [vmem:[#allocation2 + $0x27] sm:$0xff]
        %v677 = vld [vmem:[#allocation2 + $0x2f] sm:$0xff]
        %v678 = vld [vmem:[#allocation2 + $0x37] sm:$0xff]
        %v679 = vld [vmem:[#allocation2 + $0x3f] sm:$0xff]
        %v680 = vsel %vm635, 1, 0
        %v681 = vsel %vm636, 1, 0
        %v682 = vsel %vm637, 1, 0
        %v683 = vsel %vm638, 1, 0
        %v684 = vsel %vm639, 1, 0
        %v685 = vsel %vm640, 1, 0
        %v686 = vsel %vm641, 1, 0
        %v687 = vsel %vm642, 1, 0
        %vm688 = vcmp.eq.s32.totalorder %v680, 1
        %vm689 = vcmp.eq.s32.totalorder %v681, 1
        %vm690 = vcmp.eq.s32.totalorder %v682, 1
        %vm691 = vcmp.eq.s32.totalorder %v683, 1
        %vm692 = vcmp.eq.s32.totalorder %v684, 1
        %vm693 = vcmp.eq.s32.totalorder %v685, 1
        %vm694 = vcmp.eq.s32.totalorder %v686, 1
        %vm695 = vcmp.eq.s32.totalorder %v687, 1
        %v696 = vsel %vm688, %v672, 0.0
        %v697 = vsel %vm689, %v673, 0.0
        %v698 = vsel %vm690, %v674, 0.0
        %v699 = vsel %vm691, %v675, 0.0
        %v700 = vsel %vm692, %v676, 0.0
        %v701 = vsel %vm693, %v677, 0.0
        %v702 = vsel %vm694, %v678, 0.0
        %v703 = vsel %vm695, %v679, 0.0
        %v704 = vpack.c.bf16 %v697, %v696
        %v705 = vpack.c.bf16 %v699, %v698
        %v706 = vpack.c.bf16 %v701, %v700
        %v707 = vpack.c.bf16 %v703, %v702
        %v708 = vld [vmem:[#allocation8] sm:$0xf]
        %v709 = vld [vmem:[#allocation8 + $0x4] sm:$0xf]
        %v710 = vld [vmem:[#allocation8 + $0x8] sm:$0xf]
        %v711 = vld [vmem:[#allocation8 + $0xc] sm:$0xf]
        %v712 = vld [vmem:[#allocation8 + $0x10] sm:$0xf]
        %v713 = vld [vmem:[#allocation8 + $0x14] sm:$0xf]
        %v714 = vld [vmem:[#allocation8 + $0x18] sm:$0xf]
        %v715 = vld [vmem:[#allocation8 + $0x1c] sm:$0xf]
        %v716 = vld [vmem:[#allocation8 + $0x20] sm:$0xf]
        %v717 = vld [vmem:[#allocation8 + $0x24] sm:$0xf]
        %v718 = vld [vmem:[#allocation8 + $0x28] sm:$0xf]
        %v719 = vld [vmem:[#allocation8 + $0x2c] sm:$0xf]
        %v720 = vld [vmem:[#allocation8 + $0x30] sm:$0xf]
        %v721 = vld [vmem:[#allocation8 + $0x34] sm:$0xf]
        %v722 = vld [vmem:[#allocation8 + $0x38] sm:$0xf]
        %v723 = vld [vmem:[#allocation8 + $0x3c] sm:$0xf]
        %v740 = vunpack.c.l.b16 %v708
        %v741 = vunpack.c.l.b16 %v709
        %v742 = vunpack.c.l.b16 %v710
        %v743 = vunpack.c.l.b16 %v711
        %v744 = vunpack.c.l.b16 %v712
        %v745 = vunpack.c.l.b16 %v713
        %v746 = vunpack.c.l.b16 %v714
        %v747 = vunpack.c.l.b16 %v715
        %v748 = vunpack.c.l.b16 %v716
        %v749 = vunpack.c.l.b16 %v717
        %v750 = vunpack.c.l.b16 %v718
        %v751 = vunpack.c.l.b16 %v719
        %v752 = vunpack.c.l.b16 %v720
        %v753 = vunpack.c.l.b16 %v721
        %v754 = vunpack.c.l.b16 %v722
        %v755 = vunpack.c.l.b16 %v723
        %v756 = vpack.c.b16 %v741, %v740
        %v757 = vpack.c.b16 %v743, %v742
        %v758 = vpack.c.b16 %v745, %v744
        %v759 = vpack.c.b16 %v747, %v746
        %v760 = vpack.c.b16 %v749, %v748
        %v761 = vpack.c.b16 %v751, %v750
        %v762 = vpack.c.b16 %v753, %v752
        %v763 = vpack.c.b16 %v755, %v754
        %772 = vmatprep.subr.bf16.mxu0 0
        %773 = vmatpush1.bf16.msra.mxu0 %v756
        %774 = vmatprep.subr.bf16.mxu0 0
        %775 = vmatpush1.bf16.msra.mxu0 %v757
        %776 = vmatprep.subr.bf16.mxu0 0
        %777 = vmatpush1.bf16.msra.mxu0 %v758
        %778 = vmatprep.subr.bf16.mxu0 0
        %779 = vmatpush1.bf16.msra.mxu0 %v759
        %780 = vmatprep.subr.bf16.mxu0 0
        %781 = vmatpush1.bf16.msra.mxu0 %v760
        %782 = vmatprep.subr.bf16.mxu0 0
        %783 = vmatpush1.bf16.msra.mxu0 %v761
        %784 = vmatprep.subr.bf16.mxu0 0
        %785 = vmatpush1.bf16.msra.mxu0 %v762
        %786 = vmatprep.subr.bf16.mxu0 0
        %787 = vmatpush1.bf16.msra.mxu0 %v763
        %788 = vmatprep.subr.bf16.mxu0 0
        %789 = vmatpush1.bf16.msra.mxu0 0
        %790 = vmatprep.subr.bf16.mxu0 0
        %791 = vmatpush1.bf16.msra.mxu0 0
        %792 = vmatprep.subr.bf16.mxu0 0
        %793 = vmatpush1.bf16.msra.mxu0 0
        %794 = vmatprep.subr.bf16.mxu0 0
        %795 = vmatpush1.bf16.msra.mxu0 0
        %796 = vmatprep.subr.bf16.mxu0 0
        %797 = vmatpush1.bf16.msra.mxu0 0
        %798 = vmatprep.subr.bf16.mxu0 0
        %799 = vmatpush1.bf16.msra.mxu0 0
        %800 = vmatprep.subr.bf16.mxu0 0
        %801 = vmatpush1.bf16.msra.mxu0 0
        %802 = vmatprep.subr.bf16.mxu0 0
        %803 = vmatpush1.bf16.msra.mxu0 0
        %804 = vmatprep.mubr.bf16.mxu0 0
        %805 = vmatmul.mubr.bf16.gmra.mrb[0].mxu0 %v704
        %v806 = vpop.f32.mrb[0].mxu0
        %v807 = vadd.f32 0.0, %v806
        %v808 = vpop.f32.mrb[0].mxu0
        %v809 = vpop.f32.mrb[0].mxu0
        %v810 = vadd.f32 0.0, %v809
        %v811 = vpop.f32.mrb[0].mxu0
        %812 = vmatprep.mubr.bf16.mxu0 0
        %813 = vmatmul.mubr.bf16.gmra.mrb[0].mxu0 %v705
        %v814 = vpop.f32.mrb[0].mxu0
        %v815 = vadd.f32 0.0, %v814
        %v816 = vpop.f32.mrb[0].mxu0
        %v817 = vpop.f32.mrb[0].mxu0
        %v818 = vadd.f32 0.0, %v817
        %v819 = vpop.f32.mrb[0].mxu0
        %820 = vmatprep.mubr.bf16.mxu0 0
        %821 = vmatmul.mubr.bf16.gmra.mrb[0].mxu0 %v706
        %v822 = vpop.f32.mrb[0].mxu0
        %v823 = vadd.f32 0.0, %v822
        %v824 = vpop.f32.mrb[0].mxu0
        %v825 = vpop.f32.mrb[0].mxu0
        %v826 = vadd.f32 0.0, %v825
        %v827 = vpop.f32.mrb[0].mxu0
        %828 = vmatprep.mubr.bf16.mxu0 0
        %829 = vmatmul.mubr.bf16.gmra.mrb[0].mxu0 %v707
        %v830 = vpop.f32.mrb[0].mxu0
        %v831 = vadd.f32 0.0, %v830
        %v832 = vpop.f32.mrb[0].mxu0
        %v833 = vpop.f32.mrb[0].mxu0
        %v834 = vadd.f32 0.0, %v833
        %v835 = vpop.f32.mrb[0].mxu0
        %836 = vdwg.mxu0
        %v853 = vunpack.c.l.b16 %v656
        %v854 = vunpack.c.l.b16 %v657
        %v855 = vunpack.c.l.b16 %v658
        %v856 = vunpack.c.l.b16 %v659
        %v857 = vunpack.c.l.b16 %v660
        %v858 = vunpack.c.l.b16 %v661
        %v859 = vunpack.c.l.b16 %v662
        %v860 = vunpack.c.l.b16 %v663
        %v861 = vunpack.c.l.b16 %v664
        %v862 = vunpack.c.l.b16 %v665
        %v863 = vunpack.c.l.b16 %v666
        %v864 = vunpack.c.l.b16 %v667
        %v865 = vunpack.c.l.b16 %v668
        %v866 = vunpack.c.l.b16 %v669
        %v867 = vunpack.c.l.b16 %v670
        %v868 = vunpack.c.l.b16 %v671
        %v869 = vpack.c.b16 %v854, %v853
        %v870 = vpack.c.b16 %v856, %v855
        %v871 = vpack.c.b16 %v858, %v857
        %v872 = vpack.c.b16 %v860, %v859
        %v873 = vpack.c.b16 %v862, %v861
        %v874 = vpack.c.b16 %v864, %v863
        %v875 = vpack.c.b16 %v866, %v865
        %v876 = vpack.c.b16 %v868, %v867
        %885 = vmatprep.subr.bf16.mxu0 0
        %886 = vmatpush1.bf16.msra.mxu0 %v869
        %887 = vmatprep.subr.bf16.mxu0 0
        %888 = vmatpush1.bf16.msra.mxu0 %v870
        %889 = vmatprep.subr.bf16.mxu0 0
        %890 = vmatpush1.bf16.msra.mxu0 %v871
        %891 = vmatprep.subr.bf16.mxu0 0
        %892 = vmatpush1.bf16.msra.mxu0 %v872
        %893 = vmatprep.subr.bf16.mxu0 0
        %894 = vmatpush1.bf16.msra.mxu0 %v873
        %895 = vmatprep.subr.bf16.mxu0 0
        %896 = vmatpush1.bf16.msra.mxu0 %v874
        %897 = vmatprep.subr.bf16.mxu0 0
        %898 = vmatpush1.bf16.msra.mxu0 %v875
        %899 = vmatprep.subr.bf16.mxu0 0
        %900 = vmatpush1.bf16.msra.mxu0 %v876
        %901 = vmatprep.subr.bf16.mxu0 0
        %902 = vmatpush1.bf16.msra.mxu0 0
        %903 = vmatprep.subr.bf16.mxu0 0
        %904 = vmatpush1.bf16.msra.mxu0 0
        %905 = vmatprep.subr.bf16.mxu0 0
        %906 = vmatpush1.bf16.msra.mxu0 0
        %907 = vmatprep.subr.bf16.mxu0 0
        %908 = vmatpush1.bf16.msra.mxu0 0
        %909 = vmatprep.subr.bf16.mxu0 0
        %910 = vmatpush1.bf16.msra.mxu0 0
        %911 = vmatprep.subr.bf16.mxu0 0
        %912 = vmatpush1.bf16.msra.mxu0 0
        %913 = vmatprep.subr.bf16.mxu0 0
        %914 = vmatpush1.bf16.msra.mxu0 0
        %915 = vmatprep.subr.bf16.mxu0 0
        %916 = vmatpush1.bf16.msra.mxu0 0
        %917 = vmatprep.mubr.bf16.mxu0 0
        %918 = vmatmul.mubr.bf16.gmra.mrb[0].mxu0 %v651
        %v919 = vpop.f32.mrb[0].mxu0
        %v920 = vadd.f32 %v807, %v919
        %v921 = vpop.f32.mrb[0].mxu0
        %v922 = vpop.f32.mrb[0].mxu0
        %v923 = vadd.f32 %v810, %v922
        %v924 = vpop.f32.mrb[0].mxu0
        %925 = vmatprep.mubr.bf16.mxu0 0
        %926 = vmatmul.mubr.bf16.gmra.mrb[0].mxu0 %v652
        %v927 = vpop.f32.mrb[0].mxu0
        %v928 = vadd.f32 %v815, %v927
        %v929 = vpop.f32.mrb[0].mxu0
        %v930 = vpop.f32.mrb[0].mxu0
        %v931 = vadd.f32 %v818, %v930
        %v932 = vpop.f32.mrb[0].mxu0
        %933 = vmatprep.mubr.bf16.mxu0 0
        %934 = vmatmul.mubr.bf16.gmra.mrb[0].mxu0 %v653
        %v935 = vpop.f32.mrb[0].mxu0
        %v936 = vadd.f32 %v823, %v935
        %v937 = vpop.f32.mrb[0].mxu0
        %v938 = vpop.f32.mrb[0].mxu0
        %v939 = vadd.f32 %v826, %v938
        %v940 = vpop.f32.mrb[0].mxu0
        %941 = vmatprep.mubr.bf16.mxu0 0
        %942 = vmatmul.mubr.bf16.gmra.mrb[0].mxu0 %v654
        %v943 = vpop.f32.mrb[0].mxu0
        %v944 = vadd.f32 %v831, %v943
        %v945 = vpop.f32.mrb[0].mxu0
        %v946 = vpop.f32.mrb[0].mxu0
        %v947 = vadd.f32 %v834, %v946
        %v948 = vpop.f32.mrb[0].mxu0
        %949 = vdwg.mxu0
        %v950 = vld [vmem:[#allocation2 + $0x8] sm:$0xff]
        %v951 = vld [vmem:[#allocation2 + $0x10] sm:$0xff]
        %v952 = vld [vmem:[#allocation2 + $0x18] sm:$0xff]
        %v953 = vld [vmem:[#allocation2 + $0x20] sm:$0xff]
        %v954 = vld [vmem:[#allocation2 + $0x28] sm:$0xff]
        %v955 = vld [vmem:[#allocation2 + $0x30] sm:$0xff]
        %v956 = vld [vmem:[#allocation2 + $0x38] sm:$0xff]
        %v957 = vld [vmem:[#allocation2 + $0x40] sm:$0xff]
        %v958 = vpack.c.bf16 %v951, %v950
        %v959 = vpack.c.bf16 %v953, %v952
        %v960 = vpack.c.bf16 %v955, %v954
        %v961 = vpack.c.bf16 %v957, %v956
        %s962 = scalar_lea.vmem [#allocation8], 64
        %v963 = vld [vmem:[%s962] sm:$0xf]
        %v964 = vld [vmem:[%s962 + $0x4] sm:$0xf]
        %v965 = vld [vmem:[%s962 + $0x8] sm:$0xf]
        %v966 = vld [vmem:[%s962 + $0xc] sm:$0xf]
        %v967 = vld [vmem:[%s962 + $0x10] sm:$0xf]
        %v968 = vld [vmem:[%s962 + $0x14] sm:$0xf]
        %v969 = vld [vmem:[%s962 + $0x18] sm:$0xf]
        %v970 = vld [vmem:[%s962 + $0x1c] sm:$0xf]
        %v971 = vld [vmem:[%s962 + $0x20] sm:$0xf]
        %v972 = vld [vmem:[%s962 + $0x24] sm:$0xf]
        %v973 = vld [vmem:[%s962 + $0x28] sm:$0xf]
        %v974 = vld [vmem:[%s962 + $0x2c] sm:$0xf]
        %v975 = vld [vmem:[%s962 + $0x30] sm:$0xf]
        %v976 = vld [vmem:[%s962 + $0x34] sm:$0xf]
        %v977 = vld [vmem:[%s962 + $0x38] sm:$0xf]
        %v978 = vld [vmem:[%s962 + $0x3c] sm:$0xf]
        %v995 = vunpack.c.l.b16 %v963
        %v996 = vunpack.c.l.b16 %v964
        %v997 = vunpack.c.l.b16 %v965
        %v998 = vunpack.c.l.b16 %v966
        %v999 = vunpack.c.l.b16 %v967
        %v1000 = vunpack.c.l.b16 %v968
        %v1001 = vunpack.c.l.b16 %v969
        %v1002 = vunpack.c.l.b16 %v970
        %v1003 = vunpack.c.l.b16 %v971
        %v1004 = vunpack.c.l.b16 %v972
        %v1005 = vunpack.c.l.b16 %v973
        %v1006 = vunpack.c.l.b16 %v974
        %v1007 = vunpack.c.l.b16 %v975
        %v1008 = vunpack.c.l.b16 %v976
        %v1009 = vunpack.c.l.b16 %v977
        %v1010 = vunpack.c.l.b16 %v978
        %v1011 = vpack.c.b16 %v996, %v995
        %v1012 = vpack.c.b16 %v998, %v997
        %v1013 = vpack.c.b16 %v1000, %v999
        %v1014 = vpack.c.b16 %v1002, %v1001
        %v1015 = vpack.c.b16 %v1004, %v1003
        %v1016 = vpack.c.b16 %v1006, %v1005
        %v1017 = vpack.c.b16 %v1008, %v1007
        %v1018 = vpack.c.b16 %v1010, %v1009
        %1027 = vmatprep.subr.bf16.mxu0 0
        %1028 = vmatpush1.bf16.msra.mxu0 %v1011
        %1029 = vmatprep.subr.bf16.mxu0 0
        %1030 = vmatpush1.bf16.msra.mxu0 %v1012
        %1031 = vmatprep.subr.bf16.mxu0 0
        %1032 = vmatpush1.bf16.msra.mxu0 %v1013
        %1033 = vmatprep.subr.bf16.mxu0 0
        %1034 = vmatpush1.bf16.msra.mxu0 %v1014
        %1035 = vmatprep.subr.bf16.mxu0 0
        %1036 = vmatpush1.bf16.msra.mxu0 %v1015
        %1037 = vmatprep.subr.bf16.mxu0 0
        %1038 = vmatpush1.bf16.msra.mxu0 %v1016
        %1039 = vmatprep.subr.bf16.mxu0 0
        %1040 = vmatpush1.bf16.msra.mxu0 %v1017
        %1041 = vmatprep.subr.bf16.mxu0 0
        %1042 = vmatpush1.bf16.msra.mxu0 %v1018
        %1043 = vmatprep.subr.bf16.mxu0 0
        %1044 = vmatpush1.bf16.msra.mxu0 0
        %1045 = vmatprep.subr.bf16.mxu0 0
        %1046 = vmatpush1.bf16.msra.mxu0 0
        %1047 = vmatprep.subr.bf16.mxu0 0
        %1048 = vmatpush1.bf16.msra.mxu0 0
        %1049 = vmatprep.subr.bf16.mxu0 0
        %1050 = vmatpush1.bf16.msra.mxu0 0
        %1051 = vmatprep.subr.bf16.mxu0 0
        %1052 = vmatpush1.bf16.msra.mxu0 0
        %1053 = vmatprep.subr.bf16.mxu0 0
        %1054 = vmatpush1.bf16.msra.mxu0 0
        %1055 = vmatprep.subr.bf16.mxu0 0
        %1056 = vmatpush1.bf16.msra.mxu0 0
        %1057 = vmatprep.subr.bf16.mxu0 0
        %1058 = vmatpush1.bf16.msra.mxu0 0
        %1059 = vmatprep.mubr.bf16.mxu0 0
        %1060 = vmatmul.mubr.bf16.gmra.mrb[0].mxu0 %v958
        %v1061 = vpop.f32.mrb[0].mxu0
        %v1062 = vadd.f32 0.0, %v1061
        %v1063 = vpop.f32.mrb[0].mxu0
        %v1064 = vpop.f32.mrb[0].mxu0
        %v1065 = vadd.f32 0.0, %v1064
        %v1066 = vpop.f32.mrb[0].mxu0
        %1067 = vmatprep.mubr.bf16.mxu0 0
        %1068 = vmatmul.mubr.bf16.gmra.mrb[0].mxu0 %v959
        %v1069 = vpop.f32.mrb[0].mxu0
        %v1070 = vadd.f32 0.0, %v1069
        %v1071 = vpop.f32.mrb[0].mxu0
        %v1072 = vpop.f32.mrb[0].mxu0
        %v1073 = vadd.f32 0.0, %v1072
        %v1074 = vpop.f32.mrb[0].mxu0
        %1075 = vmatprep.mubr.bf16.mxu0 0
        %1076 = vmatmul.mubr.bf16.gmra.mrb[0].mxu0 %v960
        %v1077 = vpop.f32.mrb[0].mxu0
        %v1078 = vadd.f32 0.0, %v1077
        %v1079 = vpop.f32.mrb[0].mxu0
        %v1080 = vpop.f32.mrb[0].mxu0
        %v1081 = vadd.f32 0.0, %v1080
        %v1082 = vpop.f32.mrb[0].mxu0
        %1083 = vmatprep.mubr.bf16.mxu0 0
        %1084 = vmatmul.mubr.bf16.gmra.mrb[0].mxu0 %v961
        %v1085 = vpop.f32.mrb[0].mxu0
        %v1086 = vadd.f32 0.0, %v1085
        %v1087 = vpop.f32.mrb[0].mxu0
        %v1088 = vpop.f32.mrb[0].mxu0
        %v1089 = vadd.f32 0.0, %v1088
        %v1090 = vpop.f32.mrb[0].mxu0
        %1091 = vdwg.mxu0
        %v1092 = vadd.f32 %v920, %v1062
        %v1093 = vadd.f32 %v923, %v1065
        %v1094 = vadd.f32 %v928, %v1070
        %v1095 = vadd.f32 %v931, %v1073
        %v1096 = vadd.f32 %v936, %v1078
        %v1097 = vadd.f32 %v939, %v1081
        %v1098 = vadd.f32 %v944, %v1086
        %v1099 = vadd.f32 %v947, %v1089
        %v1100 = vld [vmem:[#allocation2 + $0x9] sm:$0xff]
        %v1101 = vld [vmem:[#allocation2 + $0x11] sm:$0xff]
        %v1102 = vld [vmem:[#allocation2 + $0x19] sm:$0xff]
        %v1103 = vld [vmem:[#allocation2 + $0x21] sm:$0xff]
        %v1104 = vld [vmem:[#allocation2 + $0x29] sm:$0xff]
        %v1105 = vld [vmem:[#allocation2 + $0x31] sm:$0xff]
        %v1106 = vld [vmem:[#allocation2 + $0x39] sm:$0xff]
        %v1107 = vld [vmem:[#allocation2 + $0x41] sm:$0xff]
        %v1108 = vsel %vm643, 1, 0
        %v1109 = vsel %vm644, 1, 0
        %v1110 = vsel %vm645, 1, 0
        %v1111 = vsel %vm646, 1, 0
        %v1112 = vsel %vm647, 1, 0
        %v1113 = vsel %vm648, 1, 0
        %v1114 = vsel %vm649, 1, 0
        %v1115 = vsel %vm650, 1, 0
        %vm1116 = vcmp.eq.s32.totalorder %v1108, 1
        %vm1117 = vcmp.eq.s32.totalorder %v1109, 1
        %vm1118 = vcmp.eq.s32.totalorder %v1110, 1
        %vm1119 = vcmp.eq.s32.totalorder %v1111, 1
        %vm1120 = vcmp.eq.s32.totalorder %v1112, 1
        %vm1121 = vcmp.eq.s32.totalorder %v1113, 1
        %vm1122 = vcmp.eq.s32.totalorder %v1114, 1
        %vm1123 = vcmp.eq.s32.totalorder %v1115, 1
        %v1124 = vsel %vm1116, %v1100, 0.0
        %v1125 = vsel %vm1117, %v1101, 0.0
        %v1126 = vsel %vm1118, %v1102, 0.0
        %v1127 = vsel %vm1119, %v1103, 0.0
        %v1128 = vsel %vm1120, %v1104, 0.0
        %v1129 = vsel %vm1121, %v1105, 0.0
        %v1130 = vsel %vm1122, %v1106, 0.0
        %v1131 = vsel %vm1123, %v1107, 0.0
        %v1132 = vpack.c.bf16 %v1125, %v1124
        %v1133 = vpack.c.bf16 %v1127, %v1126
        %v1134 = vpack.c.bf16 %v1129, %v1128
        %v1135 = vpack.c.bf16 %v1131, %v1130
        %s1136 = scalar_lea.vmem [#allocation8], 128
        %v1137 = vld [vmem:[%s1136] sm:$0xf]
        %v1138 = vld [vmem:[%s1136 + $0x4] sm:$0xf]
        %v1139 = vld [vmem:[%s1136 + $0x8] sm:$0xf]
        %v1140 = vld [vmem:[%s1136 + $0xc] sm:$0xf]
        %v1141 = vld [vmem:[%s1136 + $0x10] sm:$0xf]
        %v1142 = vld [vmem:[%s1136 + $0x14] sm:$0xf]
        %v1143 = vld [vmem:[%s1136 + $0x18] sm:$0xf]
        %v1144 = vld [vmem:[%s1136 + $0x1c] sm:$0xf]
        %v1145 = vld [vmem:[%s1136 + $0x20] sm:$0xf]
        %v1146 = vld [vmem:[%s1136 + $0x24] sm:$0xf]
        %v1147 = vld [vmem:[%s1136 + $0x28] sm:$0xf]
        %v1148 = vld [vmem:[%s1136 + $0x2c] sm:$0xf]
        %v1149 = vld [vmem:[%s1136 + $0x30] sm:$0xf]
        %v1150 = vld [vmem:[%s1136 + $0x34] sm:$0xf]
        %v1151 = vld [vmem:[%s1136 + $0x38] sm:$0xf]
        %v1152 = vld [vmem:[%s1136 + $0x3c] sm:$0xf]
        %v1169 = vunpack.c.l.b16 %v1137
        %v1170 = vunpack.c.l.b16 %v1138
        %v1171 = vunpack.c.l.b16 %v1139
        %v1172 = vunpack.c.l.b16 %v1140
        %v1173 = vunpack.c.l.b16 %v1141
        %v1174 = vunpack.c.l.b16 %v1142
        %v1175 = vunpack.c.l.b16 %v1143
        %v1176 = vunpack.c.l.b16 %v1144
        %v1177 = vunpack.c.l.b16 %v1145
        %v1178 = vunpack.c.l.b16 %v1146
        %v1179 = vunpack.c.l.b16 %v1147
        %v1180 = vunpack.c.l.b16 %v1148
        %v1181 = vunpack.c.l.b16 %v1149
        %v1182 = vunpack.c.l.b16 %v1150
        %v1183 = vunpack.c.l.b16 %v1151
        %v1184 = vunpack.c.l.b16 %v1152
        %v1185 = vpack.c.b16 %v1170, %v1169
        %v1186 = vpack.c.b16 %v1172, %v1171
        %v1187 = vpack.c.b16 %v1174, %v1173
        %v1188 = vpack.c.b16 %v1176, %v1175
        %v1189 = vpack.c.b16 %v1178, %v1177
        %v1190 = vpack.c.b16 %v1180, %v1179
        %v1191 = vpack.c.b16 %v1182, %v1181
        %v1192 = vpack.c.b16 %v1184, %v1183
        %1201 = vmatprep.subr.bf16.mxu0 0
        %1202 = vmatpush1.bf16.msra.mxu0 %v1185
        %1203 = vmatprep.subr.bf16.mxu0 0
        %1204 = vmatpush1.bf16.msra.mxu0 %v1186
        %1205 = vmatprep.subr.bf16.mxu0 0
        %1206 = vmatpush1.bf16.msra.mxu0 %v1187
        %1207 = vmatprep.subr.bf16.mxu0 0
        %1208 = vmatpush1.bf16.msra.mxu0 %v1188
        %1209 = vmatprep.subr.bf16.mxu0 0
        %1210 = vmatpush1.bf16.msra.mxu0 %v1189
        %1211 = vmatprep.subr.bf16.mxu0 0
        %1212 = vmatpush1.bf16.msra.mxu0 %v1190
        %1213 = vmatprep.subr.bf16.mxu0 0
        %1214 = vmatpush1.bf16.msra.mxu0 %v1191
        %1215 = vmatprep.subr.bf16.mxu0 0
        %1216 = vmatpush1.bf16.msra.mxu0 %v1192
        %1217 = vmatprep.subr.bf16.mxu0 0
        %1218 = vmatpush1.bf16.msra.mxu0 0
        %1219 = vmatprep.subr.bf16.mxu0 0
        %1220 = vmatpush1.bf16.msra.mxu0 0
        %1221 = vmatprep.subr.bf16.mxu0 0
        %1222 = vmatpush1.bf16.msra.mxu0 0
        %1223 = vmatprep.subr.bf16.mxu0 0
        %1224 = vmatpush1.bf16.msra.mxu0 0
        %1225 = vmatprep.subr.bf16.mxu0 0
        %1226 = vmatpush1.bf16.msra.mxu0 0
        %1227 = vmatprep.subr.bf16.mxu0 0
        %1228 = vmatpush1.bf16.msra.mxu0 0
        %1229 = vmatprep.subr.bf16.mxu0 0
        %1230 = vmatpush1.bf16.msra.mxu0 0
        %1231 = vmatprep.subr.bf16.mxu0 0
        %1232 = vmatpush1.bf16.msra.mxu0 0
        %1233 = vmatprep.mubr.bf16.mxu0 0
        %1234 = vmatmul.mubr.bf16.gmra.mrb[0].mxu0 %v1132
        %v1235 = vpop.f32.mrb[0].mxu0
        %v1236 = vadd.f32 0.0, %v1235
        %v1237 = vpop.f32.mrb[0].mxu0
        %v1238 = vpop.f32.mrb[0].mxu0
        %v1239 = vadd.f32 0.0, %v1238
        %v1240 = vpop.f32.mrb[0].mxu0
        %1241 = vmatprep.mubr.bf16.mxu0 0
        %1242 = vmatmul.mubr.bf16.gmra.mrb[0].mxu0 %v1133
        %v1243 = vpop.f32.mrb[0].mxu0
        %v1244 = vadd.f32 0.0, %v1243
        %v1245 = vpop.f32.mrb[0].mxu0
        %v1246 = vpop.f32.mrb[0].mxu0
        %v1247 = vadd.f32 0.0, %v1246
        %v1248 = vpop.f32.mrb[0].mxu0
        %1249 = vmatprep.mubr.bf16.mxu0 0
        %1250 = vmatmul.mubr.bf16.gmra.mrb[0].mxu0 %v1134
        %v1251 = vpop.f32.mrb[0].mxu0
        %v1252 = vadd.f32 0.0, %v1251
        %v1253 = vpop.f32.mrb[0].mxu0
        %v1254 = vpop.f32.mrb[0].mxu0
        %v1255 = vadd.f32 0.0, %v1254
        %v1256 = vpop.f32.mrb[0].mxu0
        %1257 = vmatprep.mubr.bf16.mxu0 0
        %1258 = vmatmul.mubr.bf16.gmra.mrb[0].mxu0 %v1135
        %v1259 = vpop.f32.mrb[0].mxu0
        %v1260 = vadd.f32 0.0, %v1259
        %v1261 = vpop.f32.mrb[0].mxu0
        %v1262 = vpop.f32.mrb[0].mxu0
        %v1263 = vadd.f32 0.0, %v1262
        %v1264 = vpop.f32.mrb[0].mxu0
        %1265 = vdwg.mxu0
        %v1266 = vadd.f32 %v1092, %v1236
        %v1267 = vadd.f32 %v1093, %v1239
        %v1268 = vadd.f32 %v1094, %v1244
        %v1269 = vadd.f32 %v1095, %v1247
        %v1270 = vadd.f32 %v1096, %v1252
        %v1271 = vadd.f32 %v1097, %v1255
        %v1272 = vadd.f32 %v1098, %v1260
        %v1273 = vadd.f32 %v1099, %v1263
        %v1274 = vld [vmem:[#allocation2 + $0xf] sm:$0xff]
        %v1275 = vld [vmem:[#allocation2 + $0x17] sm:$0xff]
        %v1276 = vld [vmem:[#allocation2 + $0x1f] sm:$0xff]
        %v1277 = vld [vmem:[#allocation2 + $0x27] sm:$0xff]
        %v1278 = vld [vmem:[#allocation2 + $0x2f] sm:$0xff]
        %v1279 = vld [vmem:[#allocation2 + $0x37] sm:$0xff]
        %v1280 = vld [vmem:[#allocation2 + $0x3f] sm:$0xff]
        %v1281 = vld [vmem:[#allocation2 + $0x47] sm:$0xff]
        %v1282 = vsel %vm688, %v1274, 0.0
        %v1283 = vsel %vm689, %v1275, 0.0
        %v1284 = vsel %vm690, %v1276, 0.0
        %v1285 = vsel %vm691, %v1277, 0.0
        %v1286 = vsel %vm692, %v1278, 0.0
        %v1287 = vsel %vm693, %v1279, 0.0
        %v1288 = vsel %vm694, %v1280, 0.0
        %v1289 = vsel %vm695, %v1281, 0.0
        %v1290 = vpack.c.bf16 %v1283, %v1282
        %v1291 = vpack.c.bf16 %v1285, %v1284
        %v1292 = vpack.c.bf16 %v1287, %v1286
        %v1293 = vpack.c.bf16 %v1289, %v1288
        %s1294 = scalar_lea.vmem [#allocation8], 192
        %v1295 = vld [vmem:[%s1294] sm:$0xf]
        %v1296 = vld [vmem:[%s1294 + $0x4] sm:$0xf]
        %v1297 = vld [vmem:[%s1294 + $0x8] sm:$0xf]
        %v1298 = vld [vmem:[%s1294 + $0xc] sm:$0xf]
        %v1299 = vld [vmem:[%s1294 + $0x10] sm:$0xf]
        %v1300 = vld [vmem:[%s1294 + $0x14] sm:$0xf]
        %v1301 = vld [vmem:[%s1294 + $0x18] sm:$0xf]
        %v1302 = vld [vmem:[%s1294 + $0x1c] sm:$0xf]
        %v1303 = vld [vmem:[%s1294 + $0x20] sm:$0xf]
        %v1304 = vld [vmem:[%s1294 + $0x24] sm:$0xf]
        %v1305 = vld [vmem:[%s1294 + $0x28] sm:$0xf]
        %v1306 = vld [vmem:[%s1294 + $0x2c] sm:$0xf]
        %v1307 = vld [vmem:[%s1294 + $0x30] sm:$0xf]
        %v1308 = vld [vmem:[%s1294 + $0x34] sm:$0xf]
        %v1309 = vld [vmem:[%s1294 + $0x38] sm:$0xf]
        %v1310 = vld [vmem:[%s1294 + $0x3c] sm:$0xf]
        %v1327 = vunpack.c.l.b16 %v1295
        %v1328 = vunpack.c.l.b16 %v1296
        %v1329 = vunpack.c.l.b16 %v1297
        %v1330 = vunpack.c.l.b16 %v1298
        %v1331 = vunpack.c.l.b16 %v1299
        %v1332 = vunpack.c.l.b16 %v1300
        %v1333 = vunpack.c.l.b16 %v1301
        %v1334 = vunpack.c.l.b16 %v1302
        %v1335 = vunpack.c.l.b16 %v1303
        %v1336 = vunpack.c.l.b16 %v1304
        %v1337 = vunpack.c.l.b16 %v1305
        %v1338 = vunpack.c.l.b16 %v1306
        %v1339 = vunpack.c.l.b16 %v1307
        %v1340 = vunpack.c.l.b16 %v1308
        %v1341 = vunpack.c.l.b16 %v1309
        %v1342 = vunpack.c.l.b16 %v1310
        %v1343 = vpack.c.b16 %v1328, %v1327
        %v1344 = vpack.c.b16 %v1330, %v1329
        %v1345 = vpack.c.b16 %v1332, %v1331
        %v1346 = vpack.c.b16 %v1334, %v1333
        %v1347 = vpack.c.b16 %v1336, %v1335
        %v1348 = vpack.c.b16 %v1338, %v1337
        %v1349 = vpack.c.b16 %v1340, %v1339
        %v1350 = vpack.c.b16 %v1342, %v1341
        %1359 = vmatprep.subr.bf16.mxu0 0
        %1360 = vmatpush1.bf16.msra.mxu0 %v1343
        %1361 = vmatprep.subr.bf16.mxu0 0
        %1362 = vmatpush1.bf16.msra.mxu0 %v1344
        %1363 = vmatprep.subr.bf16.mxu0 0
        %1364 = vmatpush1.bf16.msra.mxu0 %v1345
        %1365 = vmatprep.subr.bf16.mxu0 0
        %1366 = vmatpush1.bf16.msra.mxu0 %v1346
        %1367 = vmatprep.subr.bf16.mxu0 0
        %1368 = vmatpush1.bf16.msra.mxu0 %v1347
        %1369 = vmatprep.subr.bf16.mxu0 0
        %1370 = vmatpush1.bf16.msra.mxu0 %v1348
        %1371 = vmatprep.subr.bf16.mxu0 0
        %1372 = vmatpush1.bf16.msra.mxu0 %v1349
        %1373 = vmatprep.subr.bf16.mxu0 0
        %1374 = vmatpush1.bf16.msra.mxu0 %v1350
        %1375 = vmatprep.subr.bf16.mxu0 0
        %1376 = vmatpush1.bf16.msra.mxu0 0
        %1377 = vmatprep.subr.bf16.mxu0 0
        %1378 = vmatpush1.bf16.msra.mxu0 0
        %1379 = vmatprep.subr.bf16.mxu0 0
        %1380 = vmatpush1.bf16.msra.mxu0 0
        %1381 = vmatprep.subr.bf16.mxu0 0
        %1382 = vmatpush1.bf16.msra.mxu0 0
        %1383 = vmatprep.subr.bf16.mxu0 0
        %1384 = vmatpush1.bf16.msra.mxu0 0
        %1385 = vmatprep.subr.bf16.mxu0 0
        %1386 = vmatpush1.bf16.msra.mxu0 0
        %1387 = vmatprep.subr.bf16.mxu0 0
        %1388 = vmatpush1.bf16.msra.mxu0 0
        %1389 = vmatprep.subr.bf16.mxu0 0
        %1390 = vmatpush1.bf16.msra.mxu0 0
        %1391 = vmatprep.mubr.bf16.mxu0 0
        %1392 = vmatmul.mubr.bf16.gmra.mrb[0].mxu0 %v1290
        %v1393 = vpop.f32.mrb[0].mxu0
        %v1394 = vadd.f32 0.0, %v1393
        %v1395 = vpop.f32.mrb[0].mxu0
        %v1396 = vpop.f32.mrb[0].mxu0
        %v1397 = vadd.f32 0.0, %v1396
        %v1398 = vpop.f32.mrb[0].mxu0
        %1399 = vmatprep.mubr.bf16.mxu0 0
        %1400 = vmatmul.mubr.bf16.gmra.mrb[0].mxu0 %v1291
        %v1401 = vpop.f32.mrb[0].mxu0
        %v1402 = vadd.f32 0.0, %v1401
        %v1403 = vpop.f32.mrb[0].mxu0
        %v1404 = vpop.f32.mrb[0].mxu0
        %v1405 = vadd.f32 0.0, %v1404
        %v1406 = vpop.f32.mrb[0].mxu0
        %1407 = vmatprep.mubr.bf16.mxu0 0
        %1408 = vmatmul.mubr.bf16.gmra.mrb[0].mxu0 %v1292
        %v1409 = vpop.f32.mrb[0].mxu0
        %v1410 = vadd.f32 0.0, %v1409
        %v1411 = vpop.f32.mrb[0].mxu0
        %v1412 = vpop.f32.mrb[0].mxu0
        %v1413 = vadd.f32 0.0, %v1412
        %v1414 = vpop.f32.mrb[0].mxu0
        %1415 = vmatprep.mubr.bf16.mxu0 0
        %1416 = vmatmul.mubr.bf16.gmra.mrb[0].mxu0 %v1293
        %v1417 = vpop.f32.mrb[0].mxu0
        %v1418 = vadd.f32 0.0, %v1417
        %v1419 = vpop.f32.mrb[0].mxu0
        %v1420 = vpop.f32.mrb[0].mxu0
        %v1421 = vadd.f32 0.0, %v1420
        %v1422 = vpop.f32.mrb[0].mxu0
        %1423 = vdwg.mxu0
        %v1424 = vadd.f32 %v1266, %v1394
        %v1425 = vadd.f32 %v1267, %v1397
        %v1426 = vadd.f32 %v1268, %v1402
        %v1427 = vadd.f32 %v1269, %v1405
        %v1428 = vadd.f32 %v1270, %v1410
        %v1429 = vadd.f32 %v1271, %v1413
        %v1430 = vadd.f32 %v1272, %v1418
        %v1431 = vadd.f32 %v1273, %v1421
        %v1432 = vld [vmem:[#allocation2 + $0x11] sm:$0xff]
        %v1433 = vld [vmem:[#allocation2 + $0x19] sm:$0xff]
        %v1434 = vld [vmem:[#allocation2 + $0x21] sm:$0xff]
        %v1435 = vld [vmem:[#allocation2 + $0x29] sm:$0xff]
        %v1436 = vld [vmem:[#allocation2 + $0x31] sm:$0xff]
        %v1437 = vld [vmem:[#allocation2 + $0x39] sm:$0xff]
        %v1438 = vld [vmem:[#allocation2 + $0x41] sm:$0xff]
        %v1439 = vld [vmem:[#allocation2 + $0x49] sm:$0xff]
        %v1440 = vsel %vm1116, %v1432, 0.0
        %v1441 = vsel %vm1117, %v1433, 0.0
        %v1442 = vsel %vm1118, %v1434, 0.0
        %v1443 = vsel %vm1119, %v1435, 0.0
        %v1444 = vsel %vm1120, %v1436, 0.0
        %v1445 = vsel %vm1121, %v1437, 0.0
        %v1446 = vsel %vm1122, %v1438, 0.0
        %v1447 = vsel %vm1123, %v1439, 0.0
        %v1448 = vpack.c.bf16 %v1441, %v1440
        %v1449 = vpack.c.bf16 %v1443, %v1442
        %v1450 = vpack.c.bf16 %v1445, %v1444
        %v1451 = vpack.c.bf16 %v1447, %v1446
        %s1452 = scalar_lea.vmem [#allocation8], 320
        %v1453 = vld [vmem:[%s1452] sm:$0xf]
        %v1454 = vld [vmem:[%s1452 + $0x4] sm:$0xf]
        %v1455 = vld [vmem:[%s1452 + $0x8] sm:$0xf]
        %v1456 = vld [vmem:[%s1452 + $0xc] sm:$0xf]
        %v1457 = vld [vmem:[%s1452 + $0x10] sm:$0xf]
        %v1458 = vld [vmem:[%s1452 + $0x14] sm:$0xf]
        %v1459 = vld [vmem:[%s1452 + $0x18] sm:$0xf]
        %v1460 = vld [vmem:[%s1452 + $0x1c] sm:$0xf]
        %v1461 = vld [vmem:[%s1452 + $0x20] sm:$0xf]
        %v1462 = vld [vmem:[%s1452 + $0x24] sm:$0xf]
        %v1463 = vld [vmem:[%s1452 + $0x28] sm:$0xf]
        %v1464 = vld [vmem:[%s1452 + $0x2c] sm:$0xf]
        %v1465 = vld [vmem:[%s1452 + $0x30] sm:$0xf]
        %v1466 = vld [vmem:[%s1452 + $0x34] sm:$0xf]
        %v1467 = vld [vmem:[%s1452 + $0x38] sm:$0xf]
        %v1468 = vld [vmem:[%s1452 + $0x3c] sm:$0xf]
        %v1485 = vunpack.c.l.b16 %v1453
        %v1486 = vunpack.c.l.b16 %v1454
        %v1487 = vunpack.c.l.b16 %v1455
        %v1488 = vunpack.c.l.b16 %v1456
        %v1489 = vunpack.c.l.b16 %v1457
        %v1490 = vunpack.c.l.b16 %v1458
        %v1491 = vunpack.c.l.b16 %v1459
        %v1492 = vunpack.c.l.b16 %v1460
        %v1493 = vunpack.c.l.b16 %v1461
        %v1494 = vunpack.c.l.b16 %v1462
        %v1495 = vunpack.c.l.b16 %v1463
        %v1496 = vunpack.c.l.b16 %v1464
        %v1497 = vunpack.c.l.b16 %v1465
        %v1498 = vunpack.c.l.b16 %v1466
        %v1499 = vunpack.c.l.b16 %v1467
        %v1500 = vunpack.c.l.b16 %v1468
        %v1501 = vpack.c.b16 %v1486, %v1485
        %v1502 = vpack.c.b16 %v1488, %v1487
        %v1503 = vpack.c.b16 %v1490, %v1489
        %v1504 = vpack.c.b16 %v1492, %v1491
        %v1505 = vpack.c.b16 %v1494, %v1493
        %v1506 = vpack.c.b16 %v1496, %v1495
        %v1507 = vpack.c.b16 %v1498, %v1497
        %v1508 = vpack.c.b16 %v1500, %v1499
        %1517 = vmatprep.subr.bf16.mxu0 0
        %1518 = vmatpush1.bf16.msra.mxu0 %v1501
        %1519 = vmatprep.subr.bf16.mxu0 0
        %1520 = vmatpush1.bf16.msra.mxu0 %v1502
        %1521 = vmatprep.subr.bf16.mxu0 0
        %1522 = vmatpush1.bf16.msra.mxu0 %v1503
        %1523 = vmatprep.subr.bf16.mxu0 0
        %1524 = vmatpush1.bf16.msra.mxu0 %v1504
        %1525 = vmatprep.subr.bf16.mxu0 0
        %1526 = vmatpush1.bf16.msra.mxu0 %v1505
        %1527 = vmatprep.subr.bf16.mxu0 0
        %1528 = vmatpush1.bf16.msra.mxu0 %v1506
        %1529 = vmatprep.subr.bf16.mxu0 0
        %1530 = vmatpush1.bf16.msra.mxu0 %v1507
        %1531 = vmatprep.subr.bf16.mxu0 0
        %1532 = vmatpush1.bf16.msra.mxu0 %v1508
        %1533 = vmatprep.subr.bf16.mxu0 0
        %1534 = vmatpush1.bf16.msra.mxu0 0
        %1535 = vmatprep.subr.bf16.mxu0 0
        %1536 = vmatpush1.bf16.msra.mxu0 0
        %1537 = vmatprep.subr.bf16.mxu0 0
        %1538 = vmatpush1.bf16.msra.mxu0 0
        %1539 = vmatprep.subr.bf16.mxu0 0
        %1540 = vmatpush1.bf16.msra.mxu0 0
        %1541 = vmatprep.subr.bf16.mxu0 0
        %1542 = vmatpush1.bf16.msra.mxu0 0
        %1543 = vmatprep.subr.bf16.mxu0 0
        %1544 = vmatpush1.bf16.msra.mxu0 0
        %1545 = vmatprep.subr.bf16.mxu0 0
        %1546 = vmatpush1.bf16.msra.mxu0 0
        %1547 = vmatprep.subr.bf16.mxu0 0
        %1548 = vmatpush1.bf16.msra.mxu0 0
        %1549 = vmatprep.mubr.bf16.mxu0 0
        %1550 = vmatmul.mubr.bf16.gmra.mrb[0].mxu0 %v1448
        %v1551 = vpop.f32.mrb[0].mxu0
        %v1552 = vadd.f32 0.0, %v1551
        %v1553 = vpop.f32.mrb[0].mxu0
        %v1554 = vpop.f32.mrb[0].mxu0
        %v1555 = vadd.f32 0.0, %v1554
        %v1556 = vpop.f32.mrb[0].mxu0
        %1557 = vmatprep.mubr.bf16.mxu0 0
        %1558 = vmatmul.mubr.bf16.gmra.mrb[0].mxu0 %v1449
        %v1559 = vpop.f32.mrb[0].mxu0
        %v1560 = vadd.f32 0.0, %v1559
        %v1561 = vpop.f32.mrb[0].mxu0
        %v1562 = vpop.f32.mrb[0].mxu0
        %v1563 = vadd.f32 0.0, %v1562
        %v1564 = vpop.f32.mrb[0].mxu0
        %1565 = vmatprep.mubr.bf16.mxu0 0
        %1566 = vmatmul.mubr.bf16.gmra.mrb[0].mxu0 %v1450
        %v1567 = vpop.f32.mrb[0].mxu0
        %v1568 = vadd.f32 0.0, %v1567
        %v1569 = vpop.f32.mrb[0].mxu0
        %v1570 = vpop.f32.mrb[0].mxu0
        %v1571 = vadd.f32 0.0, %v1570
        %v1572 = vpop.f32.mrb[0].mxu0
        %1573 = vmatprep.mubr.bf16.mxu0 0
        %1574 = vmatmul.mubr.bf16.gmra.mrb[0].mxu0 %v1451
        %v1575 = vpop.f32.mrb[0].mxu0
        %v1576 = vadd.f32 0.0, %v1575
        %v1577 = vpop.f32.mrb[0].mxu0
        %v1578 = vpop.f32.mrb[0].mxu0
        %v1579 = vadd.f32 0.0, %v1578
        %v1580 = vpop.f32.mrb[0].mxu0
        %1581 = vdwg.mxu0
        %v1582 = vadd.f32 %v1424, %v1552
        %v1583 = vadd.f32 %v1425, %v1555
        %v1584 = vadd.f32 %v1426, %v1560
        %v1585 = vadd.f32 %v1427, %v1563
        %v1586 = vadd.f32 %v1428, %v1568
        %v1587 = vadd.f32 %v1429, %v1571
        %v1588 = vadd.f32 %v1430, %v1576
        %v1589 = vadd.f32 %v1431, %v1579
        %v1590 = vld [vmem:[#allocation2 + $0x17] sm:$0xff]
        %v1591 = vld [vmem:[#allocation2 + $0x1f] sm:$0xff]
        %v1592 = vld [vmem:[#allocation2 + $0x27] sm:$0xff]
        %v1593 = vld [vmem:[#allocation2 + $0x2f] sm:$0xff]
        %v1594 = vld [vmem:[#allocation2 + $0x37] sm:$0xff]
        %v1595 = vld [vmem:[#allocation2 + $0x3f] sm:$0xff]
        %v1596 = vld [vmem:[#allocation2 + $0x47] sm:$0xff]
        %v1597 = vld [vmem:[#allocation2 + $0x4f] sm:$0xff]
        %v1598 = vsel %vm688, %v1590, 0.0
        %v1599 = vsel %vm689, %v1591, 0.0
        %v1600 = vsel %vm690, %v1592, 0.0
        %v1601 = vsel %vm691, %v1593, 0.0
        %v1602 = vsel %vm692, %v1594, 0.0
        %v1603 = vsel %vm693, %v1595, 0.0
        %v1604 = vsel %vm694, %v1596, 0.0
        %v1605 = vsel %vm695, %v1597, 0.0
        %v1606 = vpack.c.bf16 %v1599, %v1598
        %v1607 = vpack.c.bf16 %v1601, %v1600
        %v1608 = vpack.c.bf16 %v1603, %v1602
        %v1609 = vpack.c.bf16 %v1605, %v1604
        %s1610 = scalar_lea.vmem [#allocation8], 384
        %v1611 = vld [vmem:[%s1610] sm:$0xf]
        %v1612 = vld [vmem:[%s1610 + $0x4] sm:$0xf]
        %v1613 = vld [vmem:[%s1610 + $0x8] sm:$0xf]
        %v1614 = vld [vmem:[%s1610 + $0xc] sm:$0xf]
        %v1615 = vld [vmem:[%s1610 + $0x10] sm:$0xf]
        %v1616 = vld [vmem:[%s1610 + $0x14] sm:$0xf]
        %v1617 = vld [vmem:[%s1610 + $0x18] sm:$0xf]
        %v1618 = vld [vmem:[%s1610 + $0x1c] sm:$0xf]
        %v1619 = vld [vmem:[%s1610 + $0x20] sm:$0xf]
        %v1620 = vld [vmem:[%s1610 + $0x24] sm:$0xf]
        %v1621 = vld [vmem:[%s1610 + $0x28] sm:$0xf]
        %v1622 = vld [vmem:[%s1610 + $0x2c] sm:$0xf]
        %v1623 = vld [vmem:[%s1610 + $0x30] sm:$0xf]
        %v1624 = vld [vmem:[%s1610 + $0x34] sm:$0xf]
        %v1625 = vld [vmem:[%s1610 + $0x38] sm:$0xf]
        %v1626 = vld [vmem:[%s1610 + $0x3c] sm:$0xf]
        %v1643 = vunpack.c.l.b16 %v1611
        %v1644 = vunpack.c.l.b16 %v1612
        %v1645 = vunpack.c.l.b16 %v1613
        %v1646 = vunpack.c.l.b16 %v1614
        %v1647 = vunpack.c.l.b16 %v1615
        %v1648 = vunpack.c.l.b16 %v1616
        %v1649 = vunpack.c.l.b16 %v1617
        %v1650 = vunpack.c.l.b16 %v1618
        %v1651 = vunpack.c.l.b16 %v1619
        %v1652 = vunpack.c.l.b16 %v1620
        %v1653 = vunpack.c.l.b16 %v1621
        %v1654 = vunpack.c.l.b16 %v1622
        %v1655 = vunpack.c.l.b16 %v1623
        %v1656 = vunpack.c.l.b16 %v1624
        %v1657 = vunpack.c.l.b16 %v1625
        %v1658 = vunpack.c.l.b16 %v1626
        %v1659 = vpack.c.b16 %v1644, %v1643
        %v1660 = vpack.c.b16 %v1646, %v1645
        %v1661 = vpack.c.b16 %v1648, %v1647
        %v1662 = vpack.c.b16 %v1650, %v1649
        %v1663 = vpack.c.b16 %v1652, %v1651
        %v1664 = vpack.c.b16 %v1654, %v1653
        %v1665 = vpack.c.b16 %v1656, %v1655
        %v1666 = vpack.c.b16 %v1658, %v1657
        %1675 = vmatprep.subr.bf16.mxu0 0
        %1676 = vmatpush1.bf16.msra.mxu0 %v1659
        %1677 = vmatprep.subr.bf16.mxu0 0
        %1678 = vmatpush1.bf16.msra.mxu0 %v1660
        %1679 = vmatprep.subr.bf16.mxu0 0
        %1680 = vmatpush1.bf16.msra.mxu0 %v1661
        %1681 = vmatprep.subr.bf16.mxu0 0
        %1682 = vmatpush1.bf16.msra.mxu0 %v1662
        %1683 = vmatprep.subr.bf16.mxu0 0
        %1684 = vmatpush1.bf16.msra.mxu0 %v1663
        %1685 = vmatprep.subr.bf16.mxu0 0
        %1686 = vmatpush1.bf16.msra.mxu0 %v1664
        %1687 = vmatprep.subr.bf16.mxu0 0
        %1688 = vmatpush1.bf16.msra.mxu0 %v1665
        %1689 = vmatprep.subr.bf16.mxu0 0
        %1690 = vmatpush1.bf16.msra.mxu0 %v1666
        %1691 = vmatprep.subr.bf16.mxu0 0
        %1692 = vmatpush1.bf16.msra.mxu0 0
        %1693 = vmatprep.subr.bf16.mxu0 0
        %1694 = vmatpush1.bf16.msra.mxu0 0
        %1695 = vmatprep.subr.bf16.mxu0 0
        %1696 = vmatpush1.bf16.msra.mxu0 0
        %1697 = vmatprep.subr.bf16.mxu0 0
        %1698 = vmatpush1.bf16.msra.mxu0 0
        %1699 = vmatprep.subr.bf16.mxu0 0
        %1700 = vmatpush1.bf16.msra.mxu0 0
        %1701 = vmatprep.subr.bf16.mxu0 0
        %1702 = vmatpush1.bf16.msra.mxu0 0
        %1703 = vmatprep.subr.bf16.mxu0 0
        %1704 = vmatpush1.bf16.msra.mxu0 0
        %1705 = vmatprep.subr.bf16.mxu0 0
        %1706 = vmatpush1.bf16.msra.mxu0 0
        %1707 = vmatprep.mubr.bf16.mxu0 0
        %1708 = vmatmul.mubr.bf16.gmra.mrb[0].mxu0 %v1606
        %v1709 = vpop.f32.mrb[0].mxu0
        %v1710 = vadd.f32 0.0, %v1709
        %v1711 = vpop.f32.mrb[0].mxu0
        %v1712 = vpop.f32.mrb[0].mxu0
        %v1713 = vadd.f32 0.0, %v1712
        %v1714 = vpop.f32.mrb[0].mxu0
        %1715 = vmatprep.mubr.bf16.mxu0 0
        %1716 = vmatmul.mubr.bf16.gmra.mrb[0].mxu0 %v1607
        %v1717 = vpop.f32.mrb[0].mxu0
        %v1718 = vadd.f32 0.0, %v1717
        %v1719 = vpop.f32.mrb[0].mxu0
        %v1720 = vpop.f32.mrb[0].mxu0
        %v1721 = vadd.f32 0.0, %v1720
        %v1722 = vpop.f32.mrb[0].mxu0
        %1723 = vmatprep.mubr.bf16.mxu0 0
        %1724 = vmatmul.mubr.bf16.gmra.mrb[0].mxu0 %v1608
        %v1725 = vpop.f32.mrb[0].mxu0
        %v1726 = vadd.f32 0.0, %v1725
        %v1727 = vpop.f32.mrb[0].mxu0
        %v1728 = vpop.f32.mrb[0].mxu0
        %v1729 = vadd.f32 0.0, %v1728
        %v1730 = vpop.f32.mrb[0].mxu0
        %1731 = vmatprep.mubr.bf16.mxu0 0
        %1732 = vmatmul.mubr.bf16.gmra.mrb[0].mxu0 %v1609
        %v1733 = vpop.f32.mrb[0].mxu0
        %v1734 = vadd.f32 0.0, %v1733
        %v1735 = vpop.f32.mrb[0].mxu0
        %v1736 = vpop.f32.mrb[0].mxu0
        %v1737 = vadd.f32 0.0, %v1736
        %v1738 = vpop.f32.mrb[0].mxu0
        %1739 = vdwg.mxu0
        %v1740 = vadd.f32 %v1582, %v1710
        %v1741 = vadd.f32 %v1583, %v1713
        %v1742 = vadd.f32 %v1584, %v1718
        %v1743 = vadd.f32 %v1585, %v1721
        %v1744 = vadd.f32 %v1586, %v1726
        %v1745 = vadd.f32 %v1587, %v1729
        %v1746 = vadd.f32 %v1588, %v1734
        %v1747 = vadd.f32 %v1589, %v1737
        %v1748 = vld [vmem:[#allocation2 + $0x18] sm:$0xff]
        %v1749 = vld [vmem:[#allocation2 + $0x20] sm:$0xff]
        %v1750 = vld [vmem:[#allocation2 + $0x28] sm:$0xff]
        %v1751 = vld [vmem:[#allocation2 + $0x30] sm:$0xff]
        %v1752 = vld [vmem:[#allocation2 + $0x38] sm:$0xff]
        %v1753 = vld [vmem:[#allocation2 + $0x40] sm:$0xff]
        %v1754 = vld [vmem:[#allocation2 + $0x48] sm:$0xff]
        %v1755 = vld [vmem:[#allocation2 + $0x50] sm:$0xff]
        %v1756 = vpack.c.bf16 %v1749, %v1748
        %v1757 = vpack.c.bf16 %v1751, %v1750
        %v1758 = vpack.c.bf16 %v1753, %v1752
        %v1759 = vpack.c.bf16 %v1755, %v1754
        %s1760 = scalar_lea.vmem [#allocation8], 448
        %v1761 = vld [vmem:[%s1760] sm:$0xf]
        %v1762 = vld [vmem:[%s1760 + $0x4] sm:$0xf]
        %v1763 = vld [vmem:[%s1760 + $0x8] sm:$0xf]
        %v1764 = vld [vmem:[%s1760 + $0xc] sm:$0xf]
        %v1765 = vld [vmem:[%s1760 + $0x10] sm:$0xf]
        %v1766 = vld [vmem:[%s1760 + $0x14] sm:$0xf]
        %v1767 = vld [vmem:[%s1760 + $0x18] sm:$0xf]
        %v1768 = vld [vmem:[%s1760 + $0x1c] sm:$0xf]
        %v1769 = vld [vmem:[%s1760 + $0x20] sm:$0xf]
        %v1770 = vld [vmem:[%s1760 + $0x24] sm:$0xf]
        %v1771 = vld [vmem:[%s1760 + $0x28] sm:$0xf]
        %v1772 = vld [vmem:[%s1760 + $0x2c] sm:$0xf]
        %v1773 = vld [vmem:[%s1760 + $0x30] sm:$0xf]
        %v1774 = vld [vmem:[%s1760 + $0x34] sm:$0xf]
        %v1775 = vld [vmem:[%s1760 + $0x38] sm:$0xf]
        %v1776 = vld [vmem:[%s1760 + $0x3c] sm:$0xf]
        %v1793 = vunpack.c.l.b16 %v1761
        %v1794 = vunpack.c.l.b16 %v1762
        %v1795 = vunpack.c.l.b16 %v1763
        %v1796 = vunpack.c.l.b16 %v1764
        %v1797 = vunpack.c.l.b16 %v1765
        %v1798 = vunpack.c.l.b16 %v1766
        %v1799 = vunpack.c.l.b16 %v1767
        %v1800 = vunpack.c.l.b16 %v1768
        %v1801 = vunpack.c.l.b16 %v1769
        %v1802 = vunpack.c.l.b16 %v1770
        %v1803 = vunpack.c.l.b16 %v1771
        %v1804 = vunpack.c.l.b16 %v1772
        %v1805 = vunpack.c.l.b16 %v1773
        %v1806 = vunpack.c.l.b16 %v1774
        %v1807 = vunpack.c.l.b16 %v1775
        %v1808 = vunpack.c.l.b16 %v1776
        %v1809 = vpack.c.b16 %v1794, %v1793
        %v1810 = vpack.c.b16 %v1796, %v1795
        %v1811 = vpack.c.b16 %v1798, %v1797
        %v1812 = vpack.c.b16 %v1800, %v1799
        %v1813 = vpack.c.b16 %v1802, %v1801
        %v1814 = vpack.c.b16 %v1804, %v1803
        %v1815 = vpack.c.b16 %v1806, %v1805
        %v1816 = vpack.c.b16 %v1808, %v1807
        %1825 = vmatprep.subr.bf16.mxu0 0
        %1826 = vmatpush1.bf16.msra.mxu0 %v1809
        %1827 = vmatprep.subr.bf16.mxu0 0
        %1828 = vmatpush1.bf16.msra.mxu0 %v1810
        %1829 = vmatprep.subr.bf16.mxu0 0
        %1830 = vmatpush1.bf16.msra.mxu0 %v1811
        %1831 = vmatprep.subr.bf16.mxu0 0
        %1832 = vmatpush1.bf16.msra.mxu0 %v1812
        %1833 = vmatprep.subr.bf16.mxu0 0
        %1834 = vmatpush1.bf16.msra.mxu0 %v1813
        %1835 = vmatprep.subr.bf16.mxu0 0
        %1836 = vmatpush1.bf16.msra.mxu0 %v1814
        %1837 = vmatprep.subr.bf16.mxu0 0
        %1838 = vmatpush1.bf16.msra.mxu0 %v1815
        %1839 = vmatprep.subr.bf16.mxu0 0
        %1840 = vmatpush1.bf16.msra.mxu0 %v1816
        %1841 = vmatprep.subr.bf16.mxu0 0
        %1842 = vmatpush1.bf16.msra.mxu0 0
        %1843 = vmatprep.subr.bf16.mxu0 0
        %1844 = vmatpush1.bf16.msra.mxu0 0
        %1845 = vmatprep.subr.bf16.mxu0 0
        %1846 = vmatpush1.bf16.msra.mxu0 0
        %1847 = vmatprep.subr.bf16.mxu0 0
        %1848 = vmatpush1.bf16.msra.mxu0 0
        %1849 = vmatprep.subr.bf16.mxu0 0
        %1850 = vmatpush1.bf16.msra.mxu0 0
        %1851 = vmatprep.subr.bf16.mxu0 0
        %1852 = vmatpush1.bf16.msra.mxu0 0
        %1853 = vmatprep.subr.bf16.mxu0 0
        %1854 = vmatpush1.bf16.msra.mxu0 0
        %1855 = vmatprep.subr.bf16.mxu0 0
        %1856 = vmatpush1.bf16.msra.mxu0 0
        %1857 = vmatprep.mubr.bf16.mxu0 0
        %1858 = vmatmul.mubr.bf16.gmra.mrb[0].mxu0 %v1756
        %v1859 = vpop.f32.mrb[0].mxu0
        %v1860 = vadd.f32 0.0, %v1859
        %v1861 = vpop.f32.mrb[0].mxu0
        %v1862 = vpop.f32.mrb[0].mxu0
        %v1863 = vadd.f32 0.0, %v1862
        %v1864 = vpop.f32.mrb[0].mxu0
        %1865 = vmatprep.mubr.bf16.mxu0 0
        %1866 = vmatmul.mubr.bf16.gmra.mrb[0].mxu0 %v1757
        %v1867 = vpop.f32.mrb[0].mxu0
        %v1868 = vadd.f32 0.0, %v1867
        %v1869 = vpop.f32.mrb[0].mxu0
        %v1870 = vpop.f32.mrb[0].mxu0
        %v1871 = vadd.f32 0.0, %v1870
        %v1872 = vpop.f32.mrb[0].mxu0
        %1873 = vmatprep.mubr.bf16.mxu0 0
        %1874 = vmatmul.mubr.bf16.gmra.mrb[0].mxu0 %v1758
        %v1875 = vpop.f32.mrb[0].mxu0
        %v1876 = vadd.f32 0.0, %v1875
        %v1877 = vpop.f32.mrb[0].mxu0
        %v1878 = vpop.f32.mrb[0].mxu0
        %v1879 = vadd.f32 0.0, %v1878
        %v1880 = vpop.f32.mrb[0].mxu0
        %1881 = vmatprep.mubr.bf16.mxu0 0
        %1882 = vmatmul.mubr.bf16.gmra.mrb[0].mxu0 %v1759
        %v1883 = vpop.f32.mrb[0].mxu0
        %v1884 = vadd.f32 0.0, %v1883
        %v1885 = vpop.f32.mrb[0].mxu0
        %v1886 = vpop.f32.mrb[0].mxu0
        %v1887 = vadd.f32 0.0, %v1886
        %v1888 = vpop.f32.mrb[0].mxu0
        %1889 = vdwg.mxu0
        %v1890 = vadd.f32 %v1740, %v1860
        %v1891 = vadd.f32 %v1741, %v1863
        %v1892 = vadd.f32 %v1742, %v1868
        %v1893 = vadd.f32 %v1743, %v1871
        %v1894 = vadd.f32 %v1744, %v1876
        %v1895 = vadd.f32 %v1745, %v1879
        %v1896 = vadd.f32 %v1746, %v1884
        %v1897 = vadd.f32 %v1747, %v1887
        %v1898 = vld [vmem:[#allocation2 + $0x19] sm:$0xff]
        %v1899 = vld [vmem:[#allocation2 + $0x21] sm:$0xff]
        %v1900 = vld [vmem:[#allocation2 + $0x29] sm:$0xff]
        %v1901 = vld [vmem:[#allocation2 + $0x31] sm:$0xff]
        %v1902 = vld [vmem:[#allocation2 + $0x39] sm:$0xff]
        %v1903 = vld [vmem:[#allocation2 + $0x41] sm:$0xff]
        %v1904 = vld [vmem:[#allocation2 + $0x49] sm:$0xff]
        %v1905 = vld [vmem:[#allocation2 + $0x51] sm:$0xff]
        %v1906 = vsel %vm1116, %v1898, 0.0
        %v1907 = vsel %vm1117, %v1899, 0.0
        %v1908 = vsel %vm1118, %v1900, 0.0
        %v1909 = vsel %vm1119, %v1901, 0.0
        %v1910 = vsel %vm1120, %v1902, 0.0
        %v1911 = vsel %vm1121, %v1903, 0.0
        %v1912 = vsel %vm1122, %v1904, 0.0
        %v1913 = vsel %vm1123, %v1905, 0.0
        %v1914 = vpack.c.bf16 %v1907, %v1906
        %v1915 = vpack.c.bf16 %v1909, %v1908
        %v1916 = vpack.c.bf16 %v1911, %v1910
        %v1917 = vpack.c.bf16 %v1913, %v1912
        %s1918 = scalar_lea.vmem [#allocation8], 512
        %v1919 = vld [vmem:[%s1918] sm:$0xf]
        %v1920 = vld [vmem:[%s1918 + $0x4] sm:$0xf]
        %v1921 = vld [vmem:[%s1918 + $0x8] sm:$0xf]
        %v1922 = vld [vmem:[%s1918 + $0xc] sm:$0xf]
        %v1923 = vld [vmem:[%s1918 + $0x10] sm:$0xf]
        %v1924 = vld [vmem:[%s1918 + $0x14] sm:$0xf]
        %v1925 = vld [vmem:[%s1918 + $0x18] sm:$0xf]
        %v1926 = vld [vmem:[%s1918 + $0x1c] sm:$0xf]
        %v1927 = vld [vmem:[%s1918 + $0x20] sm:$0xf]
        %v1928 = vld [vmem:[%s1918 + $0x24] sm:$0xf]
        %v1929 = vld [vmem:[%s1918 + $0x28] sm:$0xf]
        %v1930 = vld [vmem:[%s1918 + $0x2c] sm:$0xf]
        %v1931 = vld [vmem:[%s1918 + $0x30] sm:$0xf]
        %v1932 = vld [vmem:[%s1918 + $0x34] sm:$0xf]
        %v1933 = vld [vmem:[%s1918 + $0x38] sm:$0xf]
        %v1934 = vld [vmem:[%s1918 + $0x3c] sm:$0xf]
        %v1951 = vunpack.c.l.b16 %v1919
        %v1952 = vunpack.c.l.b16 %v1920
        %v1953 = vunpack.c.l.b16 %v1921
        %v1954 = vunpack.c.l.b16 %v1922
        %v1955 = vunpack.c.l.b16 %v1923
        %v1956 = vunpack.c.l.b16 %v1924
        %v1957 = vunpack.c.l.b16 %v1925
        %v1958 = vunpack.c.l.b16 %v1926
        %v1959 = vunpack.c.l.b16 %v1927
        %v1960 = vunpack.c.l.b16 %v1928
        %v1961 = vunpack.c.l.b16 %v1929
        %v1962 = vunpack.c.l.b16 %v1930
        %v1963 = vunpack.c.l.b16 %v1931
        %v1964 = vunpack.c.l.b16 %v1932
        %v1965 = vunpack.c.l.b16 %v1933
        %v1966 = vunpack.c.l.b16 %v1934
        %v1967 = vpack.c.b16 %v1952, %v1951
        %v1968 = vpack.c.b16 %v1954, %v1953
        %v1969 = vpack.c.b16 %v1956, %v1955
        %v1970 = vpack.c.b16 %v1958, %v1957
        %v1971 = vpack.c.b16 %v1960, %v1959
        %v1972 = vpack.c.b16 %v1962, %v1961
        %v1973 = vpack.c.b16 %v1964, %v1963
        %v1974 = vpack.c.b16 %v1966, %v1965
        %1983 = vmatprep.subr.bf16.mxu0 0
        %1984 = vmatpush1.bf16.msra.mxu0 %v1967
        %1985 = vmatprep.subr.bf16.mxu0 0
        %1986 = vmatpush1.bf16.msra.mxu0 %v1968
        %1987 = vmatprep.subr.bf16.mxu0 0
        %1988 = vmatpush1.bf16.msra.mxu0 %v1969
        %1989 = vmatprep.subr.bf16.mxu0 0
        %1990 = vmatpush1.bf16.msra.mxu0 %v1970
        %1991 = vmatprep.subr.bf16.mxu0 0
        %1992 = vmatpush1.bf16.msra.mxu0 %v1971
        %1993 = vmatprep.subr.bf16.mxu0 0
        %1994 = vmatpush1.bf16.msra.mxu0 %v1972
        %1995 = vmatprep.subr.bf16.mxu0 0
        %1996 = vmatpush1.bf16.msra.mxu0 %v1973
        %1997 = vmatprep.subr.bf16.mxu0 0
        %1998 = vmatpush1.bf16.msra.mxu0 %v1974
        %1999 = vmatprep.subr.bf16.mxu0 0
        %2000 = vmatpush1.bf16.msra.mxu0 0
        %2001 = vmatprep.subr.bf16.mxu0 0
        %2002 = vmatpush1.bf16.msra.mxu0 0
        %2003 = vmatprep.subr.bf16.mxu0 0
        %2004 = vmatpush1.bf16.msra.mxu0 0
        %2005 = vmatprep.subr.bf16.mxu0 0
        %2006 = vmatpush1.bf16.msra.mxu0 0
        %2007 = vmatprep.subr.bf16.mxu0 0
        %2008 = vmatpush1.bf16.msra.mxu0 0
        %2009 = vmatprep.subr.bf16.mxu0 0
        %2010 = vmatpush1.bf16.msra.mxu0 0
        %2011 = vmatprep.subr.bf16.mxu0 0
        %2012 = vmatpush1.bf16.msra.mxu0 0
        %2013 = vmatprep.subr.bf16.mxu0 0
        %2014 = vmatpush1.bf16.msra.mxu0 0
        %2015 = vmatprep.mubr.bf16.mxu0 0
        %2016 = vmatmul.mubr.bf16.gmra.mrb[0].mxu0 %v1914
        %v2017 = vpop.f32.mrb[0].mxu0
        %v2018 = vadd.f32 0.0, %v2017
        %v2019 = vpop.f32.mrb[0].mxu0
        %v2020 = vpop.f32.mrb[0].mxu0
        %v2021 = vadd.f32 0.0, %v2020
        %v2022 = vpop.f32.mrb[0].mxu0
        %2023 = vmatprep.mubr.bf16.mxu0 0
        %2024 = vmatmul.mubr.bf16.gmra.mrb[0].mxu0 %v1915
        %v2025 = vpop.f32.mrb[0].mxu0
        %v2026 = vadd.f32 0.0, %v2025
        %v2027 = vpop.f32.mrb[0].mxu0
        %v2028 = vpop.f32.mrb[0].mxu0
        %v2029 = vadd.f32 0.0, %v2028
        %v2030 = vpop.f32.mrb[0].mxu0
        %2031 = vmatprep.mubr.bf16.mxu0 0
        %2032 = vmatmul.mubr.bf16.gmra.mrb[0].mxu0 %v1916
        %v2033 = vpop.f32.mrb[0].mxu0
        %v2034 = vadd.f32 0.0, %v2033
        %v2035 = vpop.f32.mrb[0].mxu0
        %v2036 = vpop.f32.mrb[0].mxu0
        %v2037 = vadd.f32 0.0, %v2036
        %v2038 = vpop.f32.mrb[0].mxu0
        %2039 = vmatprep.mubr.bf16.mxu0 0
        %2040 = vmatmul.mubr.bf16.gmra.mrb[0].mxu0 %v1917
        %v2041 = vpop.f32.mrb[0].mxu0
        %v2042 = vadd.f32 0.0, %v2041
        %v2043 = vpop.f32.mrb[0].mxu0
        %v2044 = vpop.f32.mrb[0].mxu0
        %v2045 = vadd.f32 0.0, %v2044
        %v2046 = vpop.f32.mrb[0].mxu0
        %2047 = vdwg.mxu0
        %v2048 = vadd.f32 %v1890, %v2018
        %v2049 = vadd.f32 %v1891, %v2021
        %v2050 = vadd.f32 %v1892, %v2026
        %v2051 = vadd.f32 %v1893, %v2029
        %v2052 = vadd.f32 %v1894, %v2034
        %v2053 = vadd.f32 %v1895, %v2037
        %v2054 = vadd.f32 %v1896, %v2042
        %v2055 = vadd.f32 %v1897, %v2045
        %v2056 = vld [vmem:[%s4] sm:$0x1]
        %v2058 = vlaneseq
        %v2059 = vshrl.u32 %v2058, 7
        %v2060 = vsub.s32 0, %v2059
        %v2061 = vrot.slane %v2056, %v2060
        %v2063 = vadd.f32 %v2048, %v2061
        %v2064 = vadd.f32 %v2049, %v2061
        %v2065 = vadd.f32 %v2050, %v2061
        %v2066 = vadd.f32 %v2051, %v2061
        %v2067 = vadd.f32 %v2052, %v2061
        %v2068 = vadd.f32 %v2053, %v2061
        %v2069 = vadd.f32 %v2054, %v2061
        %v2070 = vadd.f32 %v2055, %v2061
        %v2071 = vmax.f32 %v2063, 0.0
        %v2072 = vmax.f32 %v2064, 0.0
        %v2073 = vmax.f32 %v2065, 0.0
        %v2074 = vmax.f32 %v2066, 0.0
        %v2075 = vmax.f32 %v2067, 0.0
        %v2076 = vmax.f32 %v2068, 0.0
        %v2077 = vmax.f32 %v2069, 0.0
        %v2078 = vmax.f32 %v2070, 0.0
        %v2079 = vpack.c.bf16 %v2072, %v2071
        %v2080 = vpack.c.bf16 %v2074, %v2073
        %v2081 = vpack.c.bf16 %v2076, %v2075
        %v2082 = vpack.c.bf16 %v2078, %v2077
        %v2083 = vld [vmem:[#allocation9] sm:$0xf]
        %v2084 = vld [vmem:[#allocation9 + $0x4] sm:$0xf]
        %v2085 = vld [vmem:[#allocation9 + $0x8] sm:$0xf]
        %v2086 = vld [vmem:[#allocation9 + $0xc] sm:$0xf]
        %v2087 = vld [vmem:[#allocation9 + $0x10] sm:$0xf]
        %v2088 = vld [vmem:[#allocation9 + $0x14] sm:$0xf]
        %v2089 = vld [vmem:[#allocation9 + $0x18] sm:$0xf]
        %v2090 = vld [vmem:[#allocation9 + $0x1c] sm:$0xf]
        %v2091 = vld [vmem:[#allocation9 + $0x20] sm:$0xf]
        %v2092 = vld [vmem:[#allocation9 + $0x24] sm:$0xf]
        %v2093 = vld [vmem:[#allocation9 + $0x28] sm:$0xf]
        %v2094 = vld [vmem:[#allocation9 + $0x2c] sm:$0xf]
        %v2095 = vld [vmem:[#allocation9 + $0x30] sm:$0xf]
        %v2096 = vld [vmem:[#allocation9 + $0x34] sm:$0xf]
        %v2097 = vld [vmem:[#allocation9 + $0x38] sm:$0xf]
        %v2098 = vld [vmem:[#allocation9 + $0x3c] sm:$0xf]
        %v2099 = vld [vmem:[%s6] sm:$0x1]
        %v2101 = vlaneseq
        %v2102 = vshrl.u32 %v2101, 7
        %v2103 = vsub.s32 0, %v2102
        %v2104 = vrot.slane %v2099, %v2103
        %v2122 = vunpack.c.l.b16 %v2083
        %v2123 = vunpack.c.l.b16 %v2084
        %v2124 = vunpack.c.l.b16 %v2085
        %v2125 = vunpack.c.l.b16 %v2086
        %v2126 = vunpack.c.l.b16 %v2087
        %v2127 = vunpack.c.l.b16 %v2088
        %v2128 = vunpack.c.l.b16 %v2089
        %v2129 = vunpack.c.l.b16 %v2090
        %v2130 = vunpack.c.l.b16 %v2091
        %v2131 = vunpack.c.l.b16 %v2092
        %v2132 = vunpack.c.l.b16 %v2093
        %v2133 = vunpack.c.l.b16 %v2094
        %v2134 = vunpack.c.l.b16 %v2095
        %v2135 = vunpack.c.l.b16 %v2096
        %v2136 = vunpack.c.l.b16 %v2097
        %v2137 = vunpack.c.l.b16 %v2098
        %v2138 = vpack.c.b16 %v2123, %v2122
        %v2139 = vpack.c.b16 %v2125, %v2124
        %v2140 = vpack.c.b16 %v2127, %v2126
        %v2141 = vpack.c.b16 %v2129, %v2128
        %v2142 = vpack.c.b16 %v2131, %v2130
        %v2143 = vpack.c.b16 %v2133, %v2132
        %v2144 = vpack.c.b16 %v2135, %v2134
        %v2145 = vpack.c.b16 %v2137, %v2136
        %2154 = vmatprep.subr.bf16.mxu0 0
        %2155 = vmatpush1.bf16.msra.mxu0 %v2138
        %2156 = vmatprep.subr.bf16.mxu0 0
        %2157 = vmatpush1.bf16.msra.mxu0 %v2139
        %2158 = vmatprep.subr.bf16.mxu0 0
        %2159 = vmatpush1.bf16.msra.mxu0 %v2140
        %2160 = vmatprep.subr.bf16.mxu0 0
        %2161 = vmatpush1.bf16.msra.mxu0 %v2141
        %2162 = vmatprep.subr.bf16.mxu0 0
        %2163 = vmatpush1.bf16.msra.mxu0 %v2142
        %2164 = vmatprep.subr.bf16.mxu0 0
        %2165 = vmatpush1.bf16.msra.mxu0 %v2143
        %2166 = vmatprep.subr.bf16.mxu0 0
        %2167 = vmatpush1.bf16.msra.mxu0 %v2144
        %2168 = vmatprep.subr.bf16.mxu0 0
        %2169 = vmatpush1.bf16.msra.mxu0 %v2145
        %2170 = vmatprep.subr.bf16.mxu0 0
        %2171 = vmatpush1.bf16.msra.mxu0 0
        %2172 = vmatprep.subr.bf16.mxu0 0
        %2173 = vmatpush1.bf16.msra.mxu0 0
        %2174 = vmatprep.subr.bf16.mxu0 0
        %2175 = vmatpush1.bf16.msra.mxu0 0
        %2176 = vmatprep.subr.bf16.mxu0 0
        %2177 = vmatpush1.bf16.msra.mxu0 0
        %2178 = vmatprep.subr.bf16.mxu0 0
        %2179 = vmatpush1.bf16.msra.mxu0 0
        %2180 = vmatprep.subr.bf16.mxu0 0
        %2181 = vmatpush1.bf16.msra.mxu0 0
        %2182 = vmatprep.subr.bf16.mxu0 0
        %2183 = vmatpush1.bf16.msra.mxu0 0
        %2184 = vmatprep.subr.bf16.mxu0 0
        %2185 = vmatpush1.bf16.msra.mxu0 0
        %2186 = vmatprep.mubr.bf16.mxu0 0
        %2187 = vmatmul.mubr.bf16.gmra.mrb[0].mxu0 %v2079
        %v2188 = vpop.f32.mrb[0].mxu0
        %v2189 = vadd.f32 %v2104, %v2188
        %v2190 = vpop.f32.mrb[0].mxu0
        %v2191 = vpop.f32.mrb[0].mxu0
        %v2192 = vadd.f32 %v2104, %v2191
        %v2193 = vpop.f32.mrb[0].mxu0
        %2194 = vmatprep.mubr.bf16.mxu0 0
        %2195 = vmatmul.mubr.bf16.gmra.mrb[0].mxu0 %v2080
        %v2196 = vpop.f32.mrb[0].mxu0
        %v2197 = vadd.f32 %v2104, %v2196
        %v2198 = vpop.f32.mrb[0].mxu0
        %v2199 = vpop.f32.mrb[0].mxu0
        %v2200 = vadd.f32 %v2104, %v2199
        %v2201 = vpop.f32.mrb[0].mxu0
        %2202 = vmatprep.mubr.bf16.mxu0 0
        %2203 = vmatmul.mubr.bf16.gmra.mrb[0].mxu0 %v2081
        %v2204 = vpop.f32.mrb[0].mxu0
        %v2205 = vadd.f32 %v2104, %v2204
        %v2206 = vpop.f32.mrb[0].mxu0
        %v2207 = vpop.f32.mrb[0].mxu0
        %v2208 = vadd.f32 %v2104, %v2207
        %v2209 = vpop.f32.mrb[0].mxu0
        %2210 = vmatprep.mubr.bf16.mxu0 0
        %2211 = vmatmul.mubr.bf16.gmra.mrb[0].mxu0 %v2082
        %v2212 = vpop.f32.mrb[0].mxu0
        %v2213 = vadd.f32 %v2104, %v2212
        %v2214 = vpop.f32.mrb[0].mxu0
        %v2215 = vpop.f32.mrb[0].mxu0
        %v2216 = vadd.f32 %v2104, %v2215
        %v2217 = vpop.f32.mrb[0].mxu0
        %2218 = vdwg.mxu0
        %v2219 = vld [vmem:[%s298] sm:$0xf]
        %v2220 = vld [vmem:[%s298 + $0x4] sm:$0xf]
        %v2221 = vld [vmem:[%s298 + $0x8] sm:$0xf]
        %v2222 = vld [vmem:[%s298 + $0xc] sm:$0xf]
        %v2223 = vld [vmem:[%s298 + $0x10] sm:$0xf]
        %v2224 = vld [vmem:[%s298 + $0x14] sm:$0xf]
        %v2225 = vld [vmem:[%s298 + $0x18] sm:$0xf]
        %v2226 = vld [vmem:[%s298 + $0x1c] sm:$0xf]
        %v2227 = vunpack.c.l.bf16 %v2219
        %v2228 = vunpack.c.l.bf16 %v2220
        %v2229 = vunpack.c.l.bf16 %v2221
        %v2230 = vunpack.c.l.bf16 %v2222
        %v2231 = vunpack.c.l.bf16 %v2223
        %v2232 = vunpack.c.l.bf16 %v2224
        %v2233 = vunpack.c.l.bf16 %v2225
        %v2234 = vunpack.c.l.bf16 %v2226
        %v2235 = vadd.f32 %v2189, %v2227
        %v2236 = vadd.f32 %v2192, %v2228
        %v2237 = vadd.f32 %v2197, %v2229
        %v2238 = vadd.f32 %v2200, %v2230
        %v2239 = vadd.f32 %v2205, %v2231
        %v2240 = vadd.f32 %v2208, %v2232
        %v2241 = vadd.f32 %v2213, %v2233
        %v2242 = vadd.f32 %v2216, %v2234
        %v2243 = vmax.f32 %v2235, 0.0
        %v2244 = vmax.f32 %v2236, 0.0
        %v2245 = vmax.f32 %v2237, 0.0
        %v2246 = vmax.f32 %v2238, 0.0
        %v2247 = vmax.f32 %v2239, 0.0
        %v2248 = vmax.f32 %v2240, 0.0
        %v2249 = vmax.f32 %v2241, 0.0
        %v2250 = vmax.f32 %v2242, 0.0
        %v2251 = vpack.c.bf16 %v2244, %v2243
        %v2252 = vpack.c.bf16 %v2246, %v2245
        %v2253 = vpack.c.bf16 %v2248, %v2247
        %v2254 = vpack.c.bf16 %v2250, %v2249
        %v2259 = vunpack.c.l.b16 %v2251
        %v2260 = vunpack.c.h.b16 %v2251
        %v2261 = vunpack.c.l.b16 %v2252
        %v2262 = vunpack.c.h.b16 %v2252
        %v2263 = vunpack.c.l.b16 %v2253
        %v2264 = vunpack.c.h.b16 %v2253
        %v2265 = vunpack.c.l.b16 %v2254
        %v2266 = vunpack.c.h.b16 %v2254
        %v2267 = vpack.c.b16 %v2259, %v2259
        %v2268 = vpack.c.b16 %v2260, %v2260
        %v2269 = vpack.c.b16 %v2261, %v2261
        %v2270 = vpack.c.b16 %v2262, %v2262
        %v2271 = vpack.c.b16 %v2263, %v2263
        %v2272 = vpack.c.b16 %v2264, %v2264
        %v2273 = vpack.c.b16 %v2265, %v2265
        %v2274 = vpack.c.b16 %v2266, %v2266
        %2283 = vst [vmem:[%s340] sm:$0xf] %v2267
        %2284 = vst [vmem:[%s340 + $0x4] sm:$0xf] %v2268
        %2285 = vst [vmem:[%s340 + $0x8] sm:$0xf] %v2269
        %2286 = vst [vmem:[%s340 + $0xc] sm:$0xf] %v2270
        %2287 = vst [vmem:[%s340 + $0x10] sm:$0xf] %v2271
        %2288 = vst [vmem:[%s340 + $0x14] sm:$0xf] %v2272
        %2289 = vst [vmem:[%s340 + $0x18] sm:$0xf] %v2273
        %2290 = vst [vmem:[%s340 + $0x1c] sm:$0xf] %v2274
        %s2291 = sand.u32 %s186, 1
        %s2292 = scalar_lea.sflag [#allocation5], %s2291
        %s2293 = sand.u32 %s186, 1
        %s2294 = smul.addr %s2293, 32
        %s2295 = scalar_lea.vmem [#allocation11], %s2294
        // Predicated region
        $region65: #{tpu_custom_call.1} parent=47 // pred_check
          %p2296 = pneg %p196
        $region66: #{tpu_custom_call.1} parent=47 // pred_check_branch
          %2298 = sbr.rel (%p2296) target = $region68
        $region67: #{tpu_custom_call.1} parent=47 // pred_region
          %s2300 = ssub.s32 512, 512
          %2301 = vsyncadd %s2292, %s2300
          %s2302 = smul.addr %s26, 8
          %s2303 = smul.addr %s2302, 64
          %s2304 = scalar_lea.hbm %s7, %s2303
          %s2305 = sshll.u32 %s2295, 4
          %s2306 = int_to_ptr.vmem [resolvable:$true] %s2305
          %2311 = dma.vmem_to_hbm [thread:$0]  %s2306, 512, %s2304, %s2292, 64, 64, 4
        $region68: #{tpu_custom_call.1} parent=47 // pred_fallthru
          _
      $region48: #{tpu_custom_call.1} parent=5 // pred_fallthru
        _
      %p2312 = scmp.le.s32.totalorder 2, %s21
      // Predicated region
      $region69: #{tpu_custom_call.1} parent=5 // pred_check
        %p2313 = pneg %p2312
      $region70: #{tpu_custom_call.1} parent=5 // pred_check_branch
        %2315 = sbr.rel (%p2313) target = $region72
      $region71: #{tpu_custom_call.1} parent=5 // pred_region
        %s2316 = ssub.s32 %s21, 2
        // Predicated region
        $region73: #{tpu_custom_call.1} parent=71 // pred_check
          %p2317 = pneg %p202
        $region74: #{tpu_custom_call.1} parent=71 // pred_check_branch
          %2319 = sbr.rel (%p2317) target = $region76
        $region75: #{tpu_custom_call.1} parent=71 // pred_region
          %s2320 = sand.u32 %s187, 1
          %s2321 = scalar_lea.sflag [#allocation5], %s2320
          %s2322 = sand.u32 %s187, 1
          %s2323 = smul.addr %s2322, 32
          %s2324 = scalar_lea.vmem [#allocation11], %s2323
          %2325 = dma.done %s2321, 512
        $region76: #{tpu_custom_call.1} parent=71 // pred_fallthru
          _
      $region72: #{tpu_custom_call.1} parent=5 // pred_fallthru
        _
    $region6: #{tpu_custom_call.1} parent=1 // loop_footer
      %s25 = sadd.s32 1, %s21
    $region7: #{tpu_custom_call.1} parent=1 // loop_footer_branch
      %20 = sbr.rel target = $region3
    $region8: #{tpu_custom_call.1} parent=1 // loop_exit
      _
    %2326 = vsyncpa [#allocation4], 1
    %s2327 = scalar_lea.sflag [#allocation4], 1
    %2328 = vsyncpa %s2327, 1
    %2329 = vsyncpa [#allocation7], 1
    %2330 = vsyncpa [#allocation10], 1
    %2331 = vsyncpa [#allocation5], 1
    %s2332 = scalar_lea.sflag [#allocation5], 1
    %2333 = vsyncpa %s2332, 1

// kernel: tpu_custom_call.1
$region0: #{tpu_custom_call.1}
  #allocation0 [shape = 'u32[]', space=smem, size = 0x4, offset = 0x4, fixed_abs, tag = 'smem constant byte address 0x4 - core index']
  #allocation1 [shape = 'u32[144,128]{1,0:T(1,128)}', space=vmem, size = 0x12000, scoped, tag = 'internal scratch']
  #allocation2 [shape = 'f32[96,128]{1,0:T(8,128)}', space=vmem, size = 0xc000, scoped, tag = 'scratch operand']
  %s0 = inlined_call_operand.hbm [shape: bf16[2,64,128], index: 0, kind: input, shape index: {}]
  %s1 = inlined_call_operand.hbm [shape: bf16[128,128], index: 1, kind: input, shape index: {}]
  %s2 = inlined_call_operand.vmem [shape: f32[1,128], index: 2, kind: input, shape index: {}]
  %s3 = inlined_call_operand.hbm [shape: bf16[9,128,128], index: 3, kind: input, shape index: {}]
  %s4 = inlined_call_operand.vmem [shape: f32[1,128], index: 4, kind: input, shape index: {}]
  %s5 = inlined_call_operand.hbm [shape: bf16[128,128], index: 5, kind: input, shape index: {}]
  %s6 = inlined_call_operand.vmem [shape: f32[1,128], index: 6, kind: input, shape index: {}]
  %s7 = inlined_call_operand.hbm [shape: bf16[2,64,128], index: 7, kind: output, shape index: {}]
  %s8 = sld [smem:[#allocation0]]
  $region77: #{tpu_custom_call.1} parent=0
    _
  %s10 = ssub.s32 1, %s8
  %s11 = scalar_select 0, %s10, %s8
  $region1: #{tpu_custom_call.1} parent=0
    #allocation3 [shape = 'u8[32768]{0}', space=vmem, size = 0x8000, scoped, tag = 'input window, operand 0']
    #allocation4 [shape = 's32[2]{0}', space=sflag, size = 0x8, scoped, tag = 'scoped memory for tpu_custom_call.1']
    #allocation5 [shape = 's32[2]{0}', space=sflag, size = 0x8, scoped, tag = 'scoped memory for tpu_custom_call.1']
    #allocation6 [shape = 'u8[32768]{0}', space=vmem, size = 0x8000, scoped, tag = 'input window, operand 1, single buffered']
    #allocation7 [shape = 's32[1]{0}', space=sflag, size = 0x4, scoped, tag = 'scoped memory for tpu_custom_call.1']
    #allocation8 [shape = 'u8[294912]{0}', space=vmem, size = 0x48000, scoped, tag = 'input window, operand 3, single buffered']
    #allocation9 [shape = 'u8[32768]{0}', space=vmem, size = 0x8000, scoped, tag = 'input window, operand 5, single buffered']
    #allocation10 [shape = 's32[1]{0}', space=sflag, size = 0x4, scoped, tag = 'scoped memory for tpu_custom_call.1']
    #allocation11 [shape = 'u8[32768]{0}', space=vmem, size = 0x8000, scoped, tag = 'output window, operand 0']
    %12 = vsyncpa [#allocation4], 0
    %s13 = scalar_lea.sflag [#allocation4], 1
    %14 = vsyncpa %s13, 0
    %15 = vsyncpa [#allocation7], 0
    %16 = vsyncpa [#allocation10], 0
    %17 = vsyncpa [#allocation5], 0
    %s18 = scalar_lea.sflag [#allocation5], 1
    %19 = vsyncpa %s18, 0
    loop: start=0, step=1, limit=4
    $region2: #{tpu_custom_call.1} parent=1 // loop_pre_header
      _
    $region3: #{tpu_custom_call.1} parent=1 // loop_header
      %s21 = sphi 0, %s25
      %p22 = scmp.ge.s32.totalorder %s21, 4
      %s31 = sphi 0, %s33
      %s34 = sphi 0, %s31
      %s35 = sphi 0, %s34
      %s51 = sphi 0, %s35
      %s55 = sphi 0, %s55
      %s57 = sphi 0, %s55
      %s58 = sphi 0, %s57
      %s72 = sphi 0, %s58
      %s76 = sphi 0, %s76
      %s78 = sphi 0, %s76
      %s79 = sphi 0, %s78
      %s93 = sphi 0, %s79
      %s97 = sphi 0, %s97
      %s99 = sphi 0, %s97
      %s100 = sphi 0, %s99
      %s114 = sphi 0, %s100
      %s118 = sphi 0, %s118
      %s120 = sphi 0, %s118
      %s121 = sphi 0, %s120
      %s135 = sphi 0, %s121
      %s139 = sphi 0, %s139
      %s141 = sphi 0, %s139
      %s142 = sphi 0, %s141
      %s156 = sphi 0, %s142
      %s160 = sphi 0, %s160
      %s162 = sphi 0, %s160
      %s163 = sphi 0, %s162
      %s177 = sphi 0, %s163
      %s183 = sphi 0, %s185
      %s186 = sphi 0, %s183
      %s187 = sphi 0, %s186
      %s203 = sphi 0, %s187
    $region4: #{tpu_custom_call.1} parent=1 // loop_header_branch
      %24 = sbr.rel (%p22) target = $region8
    $region5: #{tpu_custom_call.1} parent=1 // loop_body
      %s26 = ssub.s32 %s21, 1
      %s27 = ssub.s32 %s21, 2
      %s28 = sadd.s32 %s21, 1
      %s29 = ssub.s32 %s21, %s28
      %p30 = scmp.eq.s32.totalorder %s29, 0
      %s32 = sadd.s32 %s31, 1
      %s33 = scalar_select %p30, %s31, %s32
      %p36 = pneg %p30
      %p37 = scmp.eq.s32.totalorder %s21, 1
      %p38 = por %p36, %p37
      %p39 = scmp.ne.s32.totalorder %s31, %s34
      %p40 = scmp.eq.s32.totalorder %s21, 0
      %p41 = por %p39, %p40
      %p42 = scmp.ne.s32.totalorder %s31, %s34
      %p43 = scmp.eq.s32.totalorder %s26, 1
      %p44 = por %p42, %p43
      %p45 = scmp.ne.s32.totalorder %s34, %s35
      %p46 = scmp.eq.s32.totalorder %s26, 0
      %p47 = por %p45, %p46
      %p48 = scmp.ne.s32.totalorder %s34, %s35
      %p49 = scmp.eq.s32.totalorder %s27, 1
      %p50 = por %p48, %p49
      %p52 = scmp.ne.s32.totalorder %s35, %s51
      %p53 = scmp.eq.s32.totalorder %s27, 0
      %p54 = por %p52, %p53
      %s56 = sadd.s32 %s55, 1
      %p59 = scmp.eq.s32.totalorder %s21, 1
      %p60 = scmp.ne.s32.totalorder %s55, %s57
      %p61 = scmp.eq.s32.totalorder %s21, 0
      %p62 = por %p60, %p61
      %p63 = scmp.ne.s32.totalorder %s55, %s57
      %p64 = scmp.eq.s32.totalorder %s26, 1
      %p65 = por %p63, %p64
      %p66 = scmp.ne.s32.totalorder %s57, %s58
      %p67 = scmp.eq.s32.totalorder %s26, 0
      %p68 = por %p66, %p67
      %p69 = scmp.ne.s32.totalorder %s57, %s58
      %p70 = scmp.eq.s32.totalorder %s27, 1
      %p71 = por %p69, %p70
      %p73 = scmp.ne.s32.totalorder %s58, %s72
      %p74 = scmp.eq.s32.totalorder %s27, 0
      %p75 = por %p73, %p74
      %s77 = sadd.s32 %s76, 1
      %p80 = scmp.eq.s32.totalorder %s21, 1
      %p81 = scmp.ne.s32.totalorder %s76, %s78
      %p82 = scmp.eq.s32.totalorder %s21, 0
      %p83 = por %p81, %p82
      %p84 = scmp.ne.s32.totalorder %s76, %s78
      %p85 = scmp.eq.s32.totalorder %s26, 1
      %p86 = por %p84, %p85
      %p87 = scmp.ne.s32.totalorder %s78, %s79
      %p88 = scmp.eq.s32.totalorder %s26, 0
      %p89 = por %p87, %p88
      %p90 = scmp.ne.s32.totalorder %s78, %s79
      %p91 = scmp.eq.s32.totalorder %s27, 1
      %p92 = por %p90, %p91
      %p94 = scmp.ne.s32.totalorder %s79, %s93
      %p95 = scmp.eq.s32.totalorder %s27, 0
      %p96 = por %p94, %p95
      %s98 = sadd.s32 %s97, 1
      %p101 = scmp.eq.s32.totalorder %s21, 1
      %p102 = scmp.ne.s32.totalorder %s97, %s99
      %p103 = scmp.eq.s32.totalorder %s21, 0
      %p104 = por %p102, %p103
      %p105 = scmp.ne.s32.totalorder %s97, %s99
      %p106 = scmp.eq.s32.totalorder %s26, 1
      %p107 = por %p105, %p106
      %p108 = scmp.ne.s32.totalorder %s99, %s100
      %p109 = scmp.eq.s32.totalorder %s26, 0
      %p110 = por %p108, %p109
      %p111 = scmp.ne.s32.totalorder %s99, %s100
      %p112 = scmp.eq.s32.totalorder %s27, 1
      %p113 = por %p111, %p112
      %p115 = scmp.ne.s32.totalorder %s100, %s114
      %p116 = scmp.eq.s32.totalorder %s27, 0
      %p117 = por %p115, %p116
      %s119 = sadd.s32 %s118, 1
      %p122 = scmp.eq.s32.totalorder %s21, 1
      %p123 = scmp.ne.s32.totalorder %s118, %s120
      %p124 = scmp.eq.s32.totalorder %s21, 0
      %p125 = por %p123, %p124
      %p126 = scmp.ne.s32.totalorder %s118, %s120
      %p127 = scmp.eq.s32.totalorder %s26, 1
      %p128 = por %p126, %p127
      %p129 = scmp.ne.s32.totalorder %s120, %s121
      %p130 = scmp.eq.s32.totalorder %s26, 0
      %p131 = por %p129, %p130
      %p132 = scmp.ne.s32.totalorder %s120, %s121
      %p133 = scmp.eq.s32.totalorder %s27, 1
      %p134 = por %p132, %p133
      %p136 = scmp.ne.s32.totalorder %s121, %s135
      %p137 = scmp.eq.s32.totalorder %s27, 0
      %p138 = por %p136, %p137
      %s140 = sadd.s32 %s139, 1
      %p143 = scmp.eq.s32.totalorder %s21, 1
      %p144 = scmp.ne.s32.totalorder %s139, %s141
      %p145 = scmp.eq.s32.totalorder %s21, 0
      %p146 = por %p144, %p145
      %p147 = scmp.ne.s32.totalorder %s139, %s141
      %p148 = scmp.eq.s32.totalorder %s26, 1
      %p149 = por %p147, %p148
      %p150 = scmp.ne.s32.totalorder %s141, %s142
      %p151 = scmp.eq.s32.totalorder %s26, 0
      %p152 = por %p150, %p151
      %p153 = scmp.ne.s32.totalorder %s141, %s142
      %p154 = scmp.eq.s32.totalorder %s27, 1
      %p155 = por %p153, %p154
      %p157 = scmp.ne.s32.totalorder %s142, %s156
      %p158 = scmp.eq.s32.totalorder %s27, 0
      %p159 = por %p157, %p158
      %s161 = sadd.s32 %s160, 1
      %p164 = scmp.eq.s32.totalorder %s21, 1
      %p165 = scmp.ne.s32.totalorder %s160, %s162
      %p166 = scmp.eq.s32.totalorder %s21, 0
      %p167 = por %p165, %p166
      %p168 = scmp.ne.s32.totalorder %s160, %s162
      %p169 = scmp.eq.s32.totalorder %s26, 1
      %p170 = por %p168, %p169
      %p171 = scmp.ne.s32.totalorder %s162, %s163
      %p172 = scmp.eq.s32.totalorder %s26, 0
      %p173 = por %p171, %p172
      %p174 = scmp.ne.s32.totalorder %s162, %s163
      %p175 = scmp.eq.s32.totalorder %s27, 1
      %p176 = por %p174, %p175
      %p178 = scmp.ne.s32.totalorder %s163, %s177
      %p179 = scmp.eq.s32.totalorder %s27, 0
      %p180 = por %p178, %p179
      %s181 = ssub.s32 %s21, %s28
      %p182 = scmp.eq.s32.totalorder %s181, 0
      %s184 = sadd.s32 %s183, 1
      %s185 = scalar_select %p182, %s183, %s184
      %p188 = pneg %p182
      %p189 = scmp.eq.s32.totalorder %s21, 1
      %p190 = por %p188, %p189
      %p191 = scmp.ne.s32.totalorder %s183, %s186
      %p192 = scmp.eq.s32.totalorder %s21, 0
      %p193 = por %p191, %p192
      %p194 = scmp.ne.s32.totalorder %s183, %s186
      %p195 = scmp.eq.s32.totalorder %s26, 1
      %p196 = por %p194, %p195
      %p197 = scmp.ne.s32.totalorder %s186, %s187
      %p198 = scmp.eq.s32.totalorder %s26, 0
      %p199 = por %p197, %p198
      %p200 = scmp.ne.s32.totalorder %s186, %s187
      %p201 = scmp.eq.s32.totalorder %s27, 1
      %p202 = por %p200, %p201
      %p204 = scmp.ne.s32.totalorder %s187, %s203
      %p205 = scmp.eq.s32.totalorder %s27, 0
      %p206 = por %p204, %p205
      %p207 = scmp.le.s32.totalorder 1, %s21
      %p208 = scmp.lt.s32.totalorder %s21, 3
      %p209 = pnand %p207, %p208
      %p210 = pneg %p209
      // Predicated region
      $region9: #{tpu_custom_call.1} parent=5 // pred_check
        _
      $region10: #{tpu_custom_call.1} parent=5 // pred_check_branch
        %212 = sbr.rel (%p209) target = $region12
      $region11: #{tpu_custom_call.1} parent=5 // pred_region
        %s213 = ssub.s32 %s21, 1
        // Predicated region
        $region13: #{tpu_custom_call.1} parent=11 // pred_check
          %p214 = pneg %p68
        $region14: #{tpu_custom_call.1} parent=11 // pred_check_branch
          %216 = sbr.rel (%p214) target = $region16
        $region15: #{tpu_custom_call.1} parent=11 // pred_region
          %s218 = ssub.s32 1024, 1024
          %219 = vsyncadd [#allocation7], %s218
          %s220 = sshll.u32 [#allocation6], 4
          %s221 = int_to_ptr.vmem [resolvable:$true] %s220
          %226 = dma.hbm_to_vmem [thread:$0]  %s1, 1024, %s221, [#allocation7], 64, 64, 4
        $region16: #{tpu_custom_call.1} parent=11 // pred_fallthru
          _
        // Predicated region
        $region17: #{tpu_custom_call.1} parent=11 // pred_check
          %p227 = pneg %p89
        $region18: #{tpu_custom_call.1} parent=11 // pred_check_branch
          %229 = sbr.rel (%p227) target = $region20
        $region19: #{tpu_custom_call.1} parent=11 // pred_region
          _
        $region20: #{tpu_custom_call.1} parent=11 // pred_fallthru
          _
        // Predicated region
        $region21: #{tpu_custom_call.1} parent=11 // pred_check
          %p230 = pneg %p110
        $region22: #{tpu_custom_call.1} parent=11 // pred_check_branch
          %232 = sbr.rel (%p230) target = $region24
        $region23: #{tpu_custom_call.1} parent=11 // pred_region
          %s234 = ssub.s32 9216, 9216
          %235 = vsyncadd [#allocation7], %s234
          %s236 = sshll.u32 [#allocation8], 4
          %s237 = int_to_ptr.vmem [resolvable:$true] %s236
          %242 = dma.hbm_to_vmem [thread:$0]  %s3, 9216, %s237, [#allocation7], 64, 64, 4
        $region24: #{tpu_custom_call.1} parent=11 // pred_fallthru
          _
        // Predicated region
        $region25: #{tpu_custom_call.1} parent=11 // pred_check
          %p243 = pneg %p131
        $region26: #{tpu_custom_call.1} parent=11 // pred_check_branch
          %245 = sbr.rel (%p243) target = $region28
        $region27: #{tpu_custom_call.1} parent=11 // pred_region
          _
        $region28: #{tpu_custom_call.1} parent=11 // pred_fallthru
          _
        // Predicated region
        $region29: #{tpu_custom_call.1} parent=11 // pred_check
          %p246 = pneg %p152
        $region30: #{tpu_custom_call.1} parent=11 // pred_check_branch
          %248 = sbr.rel (%p246) target = $region32
        $region31: #{tpu_custom_call.1} parent=11 // pred_region
          %s250 = ssub.s32 1024, 1024
          %251 = vsyncadd [#allocation10], %s250
          %s252 = sshll.u32 [#allocation9], 4
          %s253 = int_to_ptr.vmem [resolvable:$true] %s252
          %258 = dma.hbm_to_vmem [thread:$0]  %s5, 1024, %s253, [#allocation10], 64, 64, 4
        $region32: #{tpu_custom_call.1} parent=11 // pred_fallthru
          _
        // Predicated region
        $region33: #{tpu_custom_call.1} parent=11 // pred_check
          %p259 = pneg %p173
        $region34: #{tpu_custom_call.1} parent=11 // pred_check_branch
          %261 = sbr.rel (%p259) target = $region36
        $region35: #{tpu_custom_call.1} parent=11 // pred_region
          _
        $region36: #{tpu_custom_call.1} parent=11 // pred_fallthru
          _
      $region12: #{tpu_custom_call.1} parent=5 // pred_fallthru
        _
      %p262 = scmp.lt.s32.totalorder %s21, 2
      // Predicated region
      $region37: #{tpu_custom_call.1} parent=5 // pred_check
        %p263 = pneg %p262
      $region38: #{tpu_custom_call.1} parent=5 // pred_check_branch
        %265 = sbr.rel (%p263) target = $region40
      $region39: #{tpu_custom_call.1} parent=5 // pred_region
        // Predicated region
        $region41: #{tpu_custom_call.1} parent=39 // pred_check
          %p266 = pneg %p41
        $region42: #{tpu_custom_call.1} parent=39 // pred_check_branch
          %268 = sbr.rel (%p266) target = $region44
        $region43: #{tpu_custom_call.1} parent=39 // pred_region
          %s269 = sand.u32 %s31, 1
          %s270 = scalar_lea.sflag [#allocation4], %s269
          %s271 = sand.u32 %s31, 1
          %s272 = smul.addr %s271, 32
          %s273 = scalar_lea.vmem [#allocation3], %s272
          %s275 = ssub.s32 512, 512
          %276 = vsyncadd %s270, %s275
          %s277 = smul.addr %s21, 8
          %s278 = smul.addr %s277, 64
          %s279 = scalar_lea.hbm %s0, %s278
          %s280 = sshll.u32 %s273, 4
          %s281 = int_to_ptr.vmem [resolvable:$true] %s280
          %286 = dma.hbm_to_vmem [thread:$0]  %s279, 512, %s281, %s270, 64, 64, 4
        $region44: #{tpu_custom_call.1} parent=39 // pred_fallthru
          _
      $region40: #{tpu_custom_call.1} parent=5 // pred_fallthru
        _
      %p287 = scmp.le.s32.totalorder 1, %s21
      %p288 = scmp.lt.s32.totalorder %s21, 3
      %p289 = pnand %p287, %p288
      %p290 = pneg %p289
      // Predicated region
      $region45: #{tpu_custom_call.1} parent=5 // pred_check
        _
      $region46: #{tpu_custom_call.1} parent=5 // pred_check_branch
        %292 = sbr.rel (%p289) target = $region48
      $region47: #{tpu_custom_call.1} parent=5 // pred_region
        %s293 = ssub.s32 %s21, 1
        %s294 = sand.u32 %s34, 1
        %s295 = scalar_lea.sflag [#allocation4], %s294
        %s296 = sand.u32 %s34, 1
        %s297 = smul.addr %s296, 32
        %s298 = scalar_lea.vmem [#allocation3], %s297
        // Predicated region
        $region49: #{tpu_custom_call.1} parent=47 // pred_check
          %p299 = pneg %p47
        $region50: #{tpu_custom_call.1} parent=47 // pred_check_branch
          %301 = sbr.rel (%p299) target = $region52
        $region51: #{tpu_custom_call.1} parent=47 // pred_region
          %302 = dma.done %s295, 512
        $region52: #{tpu_custom_call.1} parent=47 // pred_fallthru
          _
        // Predicated region
        $region53: #{tpu_custom_call.1} parent=47 // pred_check
          %p303 = pneg %p68
        $region54: #{tpu_custom_call.1} parent=47 // pred_check_branch
          %305 = sbr.rel (%p303) target = $region56
        $region55: #{tpu_custom_call.1} parent=47 // pred_region
          %306 = dma.done [#allocation7], 1024
        $region56: #{tpu_custom_call.1} parent=47 // pred_fallthru
          _
        // Predicated region
        $region57: #{tpu_custom_call.1} parent=47 // pred_check
          %p307 = pneg %p110
        $region58: #{tpu_custom_call.1} parent=47 // pred_check_branch
          %309 = sbr.rel (%p307) target = $region60
        $region59: #{tpu_custom_call.1} parent=47 // pred_region
          %310 = dma.done [#allocation7], 9216
        $region60: #{tpu_custom_call.1} parent=47 // pred_fallthru
          _
        // Predicated region
        $region61: #{tpu_custom_call.1} parent=47 // pred_check
          %p311 = pneg %p152
        $region62: #{tpu_custom_call.1} parent=47 // pred_check_branch
          %313 = sbr.rel (%p311) target = $region64
        $region63: #{tpu_custom_call.1} parent=47 // pred_region
          %314 = dma.done [#allocation10], 1024
        $region64: #{tpu_custom_call.1} parent=47 // pred_fallthru
          _
        %s315 = sand.u32 %s34, 1
        %s316 = scalar_lea.sflag [#allocation4], %s315
        %s317 = sand.u32 %s34, 1
        %s318 = smul.addr %s317, 32
        %s319 = scalar_lea.vmem [#allocation3], %s318
        %p320 = pneg %p47
        %p321 = pneg %p44
        %p322 = pneg %p68
        %p323 = pneg %p65
        %p324 = pneg %p89
        %p325 = pneg %p86
        %p326 = pneg %p110
        %p327 = pneg %p107
        %p328 = pneg %p131
        %p329 = pneg %p128
        %p330 = pneg %p152
        %p331 = pneg %p149
        %p332 = pneg %p173
        %p333 = pneg %p170
        %p334 = pneg %p199
        %p335 = pneg %p196
        %s336 = sand.u32 %s186, 1
        %s337 = scalar_lea.sflag [#allocation5], %s336
        %s338 = sand.u32 %s186, 1
        %s339 = smul.addr %s338, 32
        %s340 = scalar_lea.vmem [#allocation11], %s339
        %v342 = vld [vmem:[%s298] sm:$0xf]
        %v343 = vld [vmem:[%s298 + $0x4] sm:$0xf]
        %v344 = vld [vmem:[%s298 + $0x8] sm:$0xf]
        %v345 = vld [vmem:[%s298 + $0xc] sm:$0xf]
        %v346 = vld [vmem:[%s298 + $0x10] sm:$0xf]
        %v347 = vld [vmem:[%s298 + $0x14] sm:$0xf]
        %v348 = vld [vmem:[%s298 + $0x18] sm:$0xf]
        %v349 = vld [vmem:[%s298 + $0x1c] sm:$0xf]
        %v350 = vld [vmem:[#allocation6] sm:$0xf]
        %v351 = vld [vmem:[#allocation6 + $0x4] sm:$0xf]
        %v352 = vld [vmem:[#allocation6 + $0x8] sm:$0xf]
        %v353 = vld [vmem:[#allocation6 + $0xc] sm:$0xf]
        %v354 = vld [vmem:[#allocation6 + $0x10] sm:$0xf]
        %v355 = vld [vmem:[#allocation6 + $0x14] sm:$0xf]
        %v356 = vld [vmem:[#allocation6 + $0x18] sm:$0xf]
        %v357 = vld [vmem:[#allocation6 + $0x1c] sm:$0xf]
        %v358 = vld [vmem:[#allocation6 + $0x20] sm:$0xf]
        %v359 = vld [vmem:[#allocation6 + $0x24] sm:$0xf]
        %v360 = vld [vmem:[#allocation6 + $0x28] sm:$0xf]
        %v361 = vld [vmem:[#allocation6 + $0x2c] sm:$0xf]
        %v362 = vld [vmem:[#allocation6 + $0x30] sm:$0xf]
        %v363 = vld [vmem:[#allocation6 + $0x34] sm:$0xf]
        %v364 = vld [vmem:[#allocation6 + $0x38] sm:$0xf]
        %v365 = vld [vmem:[#allocation6 + $0x3c] sm:$0xf]
        %v366 = vld [vmem:[%s2] sm:$0x1]
        %v368 = vlaneseq
        %v369 = vshrl.u32 %v368, 7
        %v370 = vsub.s32 0, %v369
        %v371 = vrot.slane %v366, %v370
        %v381 = vunpack.c.l.b16 %v342
        %v382 = vunpack.c.l.b16 %v343
        %v383 = vunpack.c.l.b16 %v344
        %v384 = vunpack.c.l.b16 %v345
        %v385 = vunpack.c.l.b16 %v346
        %v386 = vunpack.c.l.b16 %v347
        %v387 = vunpack.c.l.b16 %v348
        %v388 = vunpack.c.l.b16 %v349
        %v389 = vpack.c.b16 %v382, %v381
        %v390 = vpack.c.b16 %v384, %v383
        %v391 = vpack.c.b16 %v386, %v385
        %v392 = vpack.c.b16 %v388, %v387
        %v413 = vunpack.c.l.b16 %v350
        %v414 = vunpack.c.l.b16 %v351
        %v415 = vunpack.c.l.b16 %v352
        %v416 = vunpack.c.l.b16 %v353
        %v417 = vunpack.c.l.b16 %v354
        %v418 = vunpack.c.l.b16 %v355
        %v419 = vunpack.c.l.b16 %v356
        %v420 = vunpack.c.l.b16 %v357
        %v421 = vunpack.c.l.b16 %v358
        %v422 = vunpack.c.l.b16 %v359
        %v423 = vunpack.c.l.b16 %v360
        %v424 = vunpack.c.l.b16 %v361
        %v425 = vunpack.c.l.b16 %v362
        %v426 = vunpack.c.l.b16 %v363
        %v427 = vunpack.c.l.b16 %v364
        %v428 = vunpack.c.l.b16 %v365
        %v429 = vpack.c.b16 %v414, %v413
        %v430 = vpack.c.b16 %v416, %v415
        %v431 = vpack.c.b16 %v418, %v417
        %v432 = vpack.c.b16 %v420, %v419
        %v433 = vpack.c.b16 %v422, %v421
        %v434 = vpack.c.b16 %v424, %v423
        %v435 = vpack.c.b16 %v426, %v425
        %v436 = vpack.c.b16 %v428, %v427
        %445 = vmatprep.subr.bf16.mxu0 0
        %446 = vmatpush1.bf16.msra.mxu0 %v429
        %447 = vmatprep.subr.bf16.mxu0 0
        %448 = vmatpush1.bf16.msra.mxu0 %v430
        %449 = vmatprep.subr.bf16.mxu0 0
        %450 = vmatpush1.bf16.msra.mxu0 %v431
        %451 = vmatprep.subr.bf16.mxu0 0
        %452 = vmatpush1.bf16.msra.mxu0 %v432
        %453 = vmatprep.subr.bf16.mxu0 0
        %454 = vmatpush1.bf16.msra.mxu0 %v433
        %455 = vmatprep.subr.bf16.mxu0 0
        %456 = vmatpush1.bf16.msra.mxu0 %v434
        %457 = vmatprep.subr.bf16.mxu0 0
        %458 = vmatpush1.bf16.msra.mxu0 %v435
        %459 = vmatprep.subr.bf16.mxu0 0
        %460 = vmatpush1.bf16.msra.mxu0 %v436
        %461 = vmatprep.subr.bf16.mxu0 0
        %462 = vmatpush1.bf16.msra.mxu0 0
        %463 = vmatprep.subr.bf16.mxu0 0
        %464 = vmatpush1.bf16.msra.mxu0 0
        %465 = vmatprep.subr.bf16.mxu0 0
        %466 = vmatpush1.bf16.msra.mxu0 0
        %467 = vmatprep.subr.bf16.mxu0 0
        %468 = vmatpush1.bf16.msra.mxu0 0
        %469 = vmatprep.subr.bf16.mxu0 0
        %470 = vmatpush1.bf16.msra.mxu0 0
        %471 = vmatprep.subr.bf16.mxu0 0
        %472 = vmatpush1.bf16.msra.mxu0 0
        %473 = vmatprep.subr.bf16.mxu0 0
        %474 = vmatpush1.bf16.msra.mxu0 0
        %475 = vmatprep.subr.bf16.mxu0 0
        %476 = vmatpush1.bf16.msra.mxu0 0
        %477 = vmatprep.mubr.bf16.mxu0 0
        %478 = vmatmul.mubr.bf16.gmra.mrb[0].mxu0 %v389
        %v479 = vpop.f32.mrb[0].mxu0
        %v480 = vadd.f32 %v371, %v479
        %v481 = vpop.f32.mrb[0].mxu0
        %v482 = vpop.f32.mrb[0].mxu0
        %v483 = vadd.f32 %v371, %v482
        %v484 = vpop.f32.mrb[0].mxu0
        %485 = vmatprep.mubr.bf16.mxu0 0
        %486 = vmatmul.mubr.bf16.gmra.mrb[0].mxu0 %v390
        %v487 = vpop.f32.mrb[0].mxu0
        %v488 = vadd.f32 %v371, %v487
        %v489 = vpop.f32.mrb[0].mxu0
        %v490 = vpop.f32.mrb[0].mxu0
        %v491 = vadd.f32 %v371, %v490
        %v492 = vpop.f32.mrb[0].mxu0
        %493 = vmatprep.mubr.bf16.mxu0 0
        %494 = vmatmul.mubr.bf16.gmra.mrb[0].mxu0 %v391
        %v495 = vpop.f32.mrb[0].mxu0
        %v496 = vadd.f32 %v371, %v495
        %v497 = vpop.f32.mrb[0].mxu0
        %v498 = vpop.f32.mrb[0].mxu0
        %v499 = vadd.f32 %v371, %v498
        %v500 = vpop.f32.mrb[0].mxu0
        %501 = vmatprep.mubr.bf16.mxu0 0
        %502 = vmatmul.mubr.bf16.gmra.mrb[0].mxu0 %v392
        %v503 = vpop.f32.mrb[0].mxu0
        %v504 = vadd.f32 %v371, %v503
        %v505 = vpop.f32.mrb[0].mxu0
        %v506 = vpop.f32.mrb[0].mxu0
        %v507 = vadd.f32 %v371, %v506
        %v508 = vpop.f32.mrb[0].mxu0
        %509 = vdwg.mxu0
        %v510 = vmax.f32 %v480, 0.0
        %v511 = vmax.f32 %v483, 0.0
        %v512 = vmax.f32 %v488, 0.0
        %v513 = vmax.f32 %v491, 0.0
        %v514 = vmax.f32 %v496, 0.0
        %v515 = vmax.f32 %v499, 0.0
        %v516 = vmax.f32 %v504, 0.0
        %v517 = vmax.f32 %v507, 0.0
        %518 = vst [vmem:[#allocation2] sm:$0xff] 0.0
        %519 = vst [vmem:[#allocation2 + $0x8] sm:$0xff] 0.0
        %520 = vst [vmem:[#allocation2 + $0x50] sm:$0xff] 0.0
        %521 = vst [vmem:[#allocation2 + $0x58] sm:$0xff] 0.0
        %522 = vst [vmem:[#allocation2 + $0x10] sm:$0xff] %v510
        %523 = vst [vmem:[#allocation2 + $0x18] sm:$0xff] %v511
        %524 = vst [vmem:[#allocation2 + $0x20] sm:$0xff] %v512
        %525 = vst [vmem:[#allocation2 + $0x28] sm:$0xff] %v513
        %526 = vst [vmem:[#allocation2 + $0x30] sm:$0xff] %v514
        %527 = vst [vmem:[#allocation2 + $0x38] sm:$0xff] %v515
        %528 = vst [vmem:[#allocation2 + $0x40] sm:$0xff] %v516
        %529 = vst [vmem:[#allocation2 + $0x48] sm:$0xff] %v517
        %v530 = vlaneseq
        %v531 = vshrl.u32 %v530, 7
        %v532 = vadd.s32 %v531, 8
        %v533 = vadd.s32 %v531, 16
        %v534 = vadd.s32 %v531, 24
        %v535 = vadd.s32 %v531, 32
        %v536 = vadd.s32 %v531, 40
        %v537 = vadd.s32 %v531, 48
        %v538 = vadd.s32 %v531, 56
        %vm539 = vcmp.lt.s32.totalorder %v531, 0
        %v540 = vsub.s32 0, %v531
        %v541 = vsel %vm539, %v540, %v531
        %v542 = vshrl.u32 %v541, 3
        %v543 = vand.u32 %v541, 7
        %v544 = vsub.s32 0, %v543
        %v545 = vsel %vm539, %v544, %v543
        %vm546 = vcmp.lt.s32.totalorder %v532, 0
        %v547 = vsub.s32 0, %v532
        %v548 = vsel %vm546, %v547, %v532
        %v549 = vshrl.u32 %v548, 3
        %v550 = vand.u32 %v548, 7
        %v551 = vsub.s32 0, %v550
        %v552 = vsel %vm546, %v551, %v550
        %vm553 = vcmp.lt.s32.totalorder %v533, 0
        %v554 = vsub.s32 0, %v533
        %v555 = vsel %vm553, %v554, %v533
        %v556 = vshrl.u32 %v555, 3
        %v557 = vand.u32 %v555, 7
        %v558 = vsub.s32 0, %v557
        %v559 = vsel %vm553, %v558, %v557
        %vm560 = vcmp.lt.s32.totalorder %v534, 0
        %v561 = vsub.s32 0, %v534
        %v562 = vsel %vm560, %v561, %v534
        %v563 = vshrl.u32 %v562, 3
        %v564 = vand.u32 %v562, 7
        %v565 = vsub.s32 0, %v564
        %v566 = vsel %vm560, %v565, %v564
        %vm567 = vcmp.lt.s32.totalorder %v535, 0
        %v568 = vsub.s32 0, %v535
        %v569 = vsel %vm567, %v568, %v535
        %v570 = vshrl.u32 %v569, 3
        %v571 = vand.u32 %v569, 7
        %v572 = vsub.s32 0, %v571
        %v573 = vsel %vm567, %v572, %v571
        %vm574 = vcmp.lt.s32.totalorder %v536, 0
        %v575 = vsub.s32 0, %v536
        %v576 = vsel %vm574, %v575, %v536
        %v577 = vshrl.u32 %v576, 3
        %v578 = vand.u32 %v576, 7
        %v579 = vsub.s32 0, %v578
        %v580 = vsel %vm574, %v579, %v578
        %vm581 = vcmp.lt.s32.totalorder %v537, 0
        %v582 = vsub.s32 0, %v537
        %v583 = vsel %vm581, %v582, %v537
        %v584 = vshrl.u32 %v583, 3
        %v585 = vand.u32 %v583, 7
        %v586 = vsub.s32 0, %v585
        %v587 = vsel %vm581, %v586, %v585
        %vm588 = vcmp.lt.s32.totalorder %v538, 0
        %v589 = vsub.s32 0, %v538
        %v590 = vsel %vm588, %v589, %v538
        %v591 = vshrl.u32 %v590, 3
        %v592 = vand.u32 %v590, 7
        %v593 = vsub.s32 0, %v592
        %v594 = vsel %vm588, %v593, %v592
        %vm595 = vcmp.ne.s32.totalorder %v545, 0
        %vm596 = vcmp.ne.s32.totalorder %v552, 0
        %vm597 = vcmp.ne.s32.totalorder %v559, 0
        %vm598 = vcmp.ne.s32.totalorder %v566, 0
        %vm599 = vcmp.ne.s32.totalorder %v573, 0
        %vm600 = vcmp.ne.s32.totalorder %v580, 0
        %vm601 = vcmp.ne.s32.totalorder %v587, 0
        %vm602 = vcmp.ne.s32.totalorder %v594, 0
        %vm603 = vcmp.lt.s32.totalorder %v545, 0
        %vm604 = vcmp.lt.s32.totalorder %v552, 0
        %vm605 = vcmp.lt.s32.totalorder %v559, 0
        %vm606 = vcmp.lt.s32.totalorder %v566, 0
        %vm607 = vcmp.lt.s32.totalorder %v573, 0
        %vm608 = vcmp.lt.s32.totalorder %v580, 0
        %vm609 = vcmp.lt.s32.totalorder %v587, 0
        %vm610 = vcmp.lt.s32.totalorder %v594, 0
        %vm611 = vmand %vm603, %vm595
        %vm612 = vmand %vm604, %vm596
        %vm613 = vmand %vm605, %vm597
        %vm614 = vmand %vm606, %vm598
        %vm615 = vmand %vm607, %vm599
        %vm616 = vmand %vm608, %vm600
        %vm617 = vmand %vm609, %vm601
        %vm618 = vmand %vm610, %vm602
        %v619 = vadd.s32 %v545, 8
        %v620 = vadd.s32 %v552, 8
        %v621 = vadd.s32 %v559, 8
        %v622 = vadd.s32 %v566, 8
        %v623 = vadd.s32 %v573, 8
        %v624 = vadd.s32 %v580, 8
        %v625 = vadd.s32 %v587, 8
        %v626 = vadd.s32 %v594, 8
        %v627 = vsel %vm611, %v619, %v545
        %v628 = vsel %vm612, %v620, %v552
        %v629 = vsel %vm613, %v621, %v559
        %v630 = vsel %vm614, %v622, %v566
        %v631 = vsel %vm615, %v623, %v573
        %v632 = vsel %vm616, %v624, %v580
        %v633 = vsel %vm617, %v625, %v587
        %v634 = vsel %vm618, %v626, %v594
        %vm635 = vcmp.ge.s32.totalorder %v627, 1
        %vm636 = vcmp.ge.s32.totalorder %v628, 1
        %vm637 = vcmp.ge.s32.totalorder %v629, 1
        %vm638 = vcmp.ge.s32.totalorder %v630, 1
        %vm639 = vcmp.ge.s32.totalorder %v631, 1
        %vm640 = vcmp.ge.s32.totalorder %v632, 1
        %vm641 = vcmp.ge.s32.totalorder %v633, 1
        %vm642 = vcmp.ge.s32.totalorder %v634, 1
        %vm643 = vcmp.le.s32.totalorder %v627, 6
        %vm644 = vcmp.le.s32.totalorder %v628, 6
        %vm645 = vcmp.le.s32.totalorder %v629, 6
        %vm646 = vcmp.le.s32.totalorder %v630, 6
        %vm647 = vcmp.le.s32.totalorder %v631, 6
        %vm648 = vcmp.le.s32.totalorder %v632, 6
        %vm649 = vcmp.le.s32.totalorder %v633, 6
        %vm650 = vcmp.le.s32.totalorder %v634, 6
        %v651 = vpack.c.bf16 %v511, %v510
        %v652 = vpack.c.bf16 %v513, %v512
        %v653 = vpack.c.bf16 %v515, %v514
        %v654 = vpack.c.bf16 %v517, %v516
        %s655 = scalar_lea.vmem [#allocation8], 256
        %v656 = vld [vmem:[%s655] sm:$0xf]
        %v657 = vld [vmem:[%s655 + $0x4] sm:$0xf]
        %v658 = vld [vmem:[%s655 + $0x8] sm:$0xf]
        %v659 = vld [vmem:[%s655 + $0xc] sm:$0xf]
        %v660 = vld [vmem:[%s655 + $0x10] sm:$0xf]
        %v661 = vld [vmem:[%s655 + $0x14] sm:$0xf]
        %v662 = vld [vmem:[%s655 + $0x18] sm:$0xf]
        %v663 = vld [vmem:[%s655 + $0x1c] sm:$0xf]
        %v664 = vld [vmem:[%s655 + $0x20] sm:$0xf]
        %v665 = vld [vmem:[%s655 + $0x24] sm:$0xf]
        %v666 = vld [vmem:[%s655 + $0x28] sm:$0xf]
        %v667 = vld [vmem:[%s655 + $0x2c] sm:$0xf]
        %v668 = vld [vmem:[%s655 + $0x30] sm:$0xf]
        %v669 = vld [vmem:[%s655 + $0x34] sm:$0xf]
        %v670 = vld [vmem:[%s655 + $0x38] sm:$0xf]
        %v671 = vld [vmem:[%s655 + $0x3c] sm:$0xf]
        %v672 = vld [vmem:[#allocation2 + $0x7] sm:$0xff]
        %v673 = vld [vmem:[#allocation2 + $0xf] sm:$0xff]
        %v674 = vld [vmem:[#allocation2 + $0x17] sm:$0xff]
        %v675 = vld [vmem:[#allocation2 + $0x1f] sm:$0xff]
        %v676 = vld [vmem:[#allocation2 + $0x27] sm:$0xff]
        %v677 = vld [vmem:[#allocation2 + $0x2f] sm:$0xff]
        %v678 = vld [vmem:[#allocation2 + $0x37] sm:$0xff]
        %v679 = vld [vmem:[#allocation2 + $0x3f] sm:$0xff]
        %v680 = vsel %vm635, 1, 0
        %v681 = vsel %vm636, 1, 0
        %v682 = vsel %vm637, 1, 0
        %v683 = vsel %vm638, 1, 0
        %v684 = vsel %vm639, 1, 0
        %v685 = vsel %vm640, 1, 0
        %v686 = vsel %vm641, 1, 0
        %v687 = vsel %vm642, 1, 0
        %vm688 = vcmp.eq.s32.totalorder %v680, 1
        %vm689 = vcmp.eq.s32.totalorder %v681, 1
        %vm690 = vcmp.eq.s32.totalorder %v682, 1
        %vm691 = vcmp.eq.s32.totalorder %v683, 1
        %vm692 = vcmp.eq.s32.totalorder %v684, 1
        %vm693 = vcmp.eq.s32.totalorder %v685, 1
        %vm694 = vcmp.eq.s32.totalorder %v686, 1
        %vm695 = vcmp.eq.s32.totalorder %v687, 1
        %v696 = vsel %vm688, %v672, 0.0
        %v697 = vsel %vm689, %v673, 0.0
        %v698 = vsel %vm690, %v674, 0.0
        %v699 = vsel %vm691, %v675, 0.0
        %v700 = vsel %vm692, %v676, 0.0
        %v701 = vsel %vm693, %v677, 0.0
        %v702 = vsel %vm694, %v678, 0.0
        %v703 = vsel %vm695, %v679, 0.0
        %v704 = vpack.c.bf16 %v697, %v696
        %v705 = vpack.c.bf16 %v699, %v698
        %v706 = vpack.c.bf16 %v701, %v700
        %v707 = vpack.c.bf16 %v703, %v702
        %v708 = vld [vmem:[#allocation8] sm:$0xf]
        %v709 = vld [vmem:[#allocation8 + $0x4] sm:$0xf]
        %v710 = vld [vmem:[#allocation8 + $0x8] sm:$0xf]
        %v711 = vld [vmem:[#allocation8 + $0xc] sm:$0xf]
        %v712 = vld [vmem:[#allocation8 + $0x10] sm:$0xf]
        %v713 = vld [vmem:[#allocation8 + $0x14] sm:$0xf]
        %v714 = vld [vmem:[#allocation8 + $0x18] sm:$0xf]
        %v715 = vld [vmem:[#allocation8 + $0x1c] sm:$0xf]
        %v716 = vld [vmem:[#allocation8 + $0x20] sm:$0xf]
        %v717 = vld [vmem:[#allocation8 + $0x24] sm:$0xf]
        %v718 = vld [vmem:[#allocation8 + $0x28] sm:$0xf]
        %v719 = vld [vmem:[#allocation8 + $0x2c] sm:$0xf]
        %v720 = vld [vmem:[#allocation8 + $0x30] sm:$0xf]
        %v721 = vld [vmem:[#allocation8 + $0x34] sm:$0xf]
        %v722 = vld [vmem:[#allocation8 + $0x38] sm:$0xf]
        %v723 = vld [vmem:[#allocation8 + $0x3c] sm:$0xf]
        %v740 = vunpack.c.l.b16 %v708
        %v741 = vunpack.c.l.b16 %v709
        %v742 = vunpack.c.l.b16 %v710
        %v743 = vunpack.c.l.b16 %v711
        %v744 = vunpack.c.l.b16 %v712
        %v745 = vunpack.c.l.b16 %v713
        %v746 = vunpack.c.l.b16 %v714
        %v747 = vunpack.c.l.b16 %v715
        %v748 = vunpack.c.l.b16 %v716
        %v749 = vunpack.c.l.b16 %v717
        %v750 = vunpack.c.l.b16 %v718
        %v751 = vunpack.c.l.b16 %v719
        %v752 = vunpack.c.l.b16 %v720
        %v753 = vunpack.c.l.b16 %v721
        %v754 = vunpack.c.l.b16 %v722
        %v755 = vunpack.c.l.b16 %v723
        %v756 = vpack.c.b16 %v741, %v740
        %v757 = vpack.c.b16 %v743, %v742
        %v758 = vpack.c.b16 %v745, %v744
        %v759 = vpack.c.b16 %v747, %v746
        %v760 = vpack.c.b16 %v749, %v748
        %v761 = vpack.c.b16 %v751, %v750
        %v762 = vpack.c.b16 %v753, %v752
        %v763 = vpack.c.b16 %v755, %v754
        %772 = vmatprep.subr.bf16.mxu0 0
        %773 = vmatpush1.bf16.msra.mxu0 %v756
        %774 = vmatprep.subr.bf16.mxu0 0
        %775 = vmatpush1.bf16.msra.mxu0 %v757
        %776 = vmatprep.subr.bf16.mxu0 0
        %777 = vmatpush1.bf16.msra.mxu0 %v758
        %778 = vmatprep.subr.bf16.mxu0 0
        %779 = vmatpush1.bf16.msra.mxu0 %v759
        %780 = vmatprep.subr.bf16.mxu0 0
        %781 = vmatpush1.bf16.msra.mxu0 %v760
        %782 = vmatprep.subr.bf16.mxu0 0
        %783 = vmatpush1.bf16.msra.mxu0 %v761
        %784 = vmatprep.subr.bf16.mxu0 0
        %785 = vmatpush1.bf16.msra.mxu0 %v762
        %786 = vmatprep.subr.bf16.mxu0 0
        %787 = vmatpush1.bf16.msra.mxu0 %v763
        %788 = vmatprep.subr.bf16.mxu0 0
        %789 = vmatpush1.bf16.msra.mxu0 0
        %790 = vmatprep.subr.bf16.mxu0 0
        %791 = vmatpush1.bf16.msra.mxu0 0
        %792 = vmatprep.subr.bf16.mxu0 0
        %793 = vmatpush1.bf16.msra.mxu0 0
        %794 = vmatprep.subr.bf16.mxu0 0
        %795 = vmatpush1.bf16.msra.mxu0 0
        %796 = vmatprep.subr.bf16.mxu0 0
        %797 = vmatpush1.bf16.msra.mxu0 0
        %798 = vmatprep.subr.bf16.mxu0 0
        %799 = vmatpush1.bf16.msra.mxu0 0
        %800 = vmatprep.subr.bf16.mxu0 0
        %801 = vmatpush1.bf16.msra.mxu0 0
        %802 = vmatprep.subr.bf16.mxu0 0
        %803 = vmatpush1.bf16.msra.mxu0 0
        %804 = vmatprep.mubr.bf16.mxu0 0
        %805 = vmatmul.mubr.bf16.gmra.mrb[0].mxu0 %v704
        %v806 = vpop.f32.mrb[0].mxu0
        %v807 = vadd.f32 0.0, %v806
        %v808 = vpop.f32.mrb[0].mxu0
        %v809 = vpop.f32.mrb[0].mxu0
        %v810 = vadd.f32 0.0, %v809
        %v811 = vpop.f32.mrb[0].mxu0
        %812 = vmatprep.mubr.bf16.mxu0 0
        %813 = vmatmul.mubr.bf16.gmra.mrb[0].mxu0 %v705
        %v814 = vpop.f32.mrb[0].mxu0
        %v815 = vadd.f32 0.0, %v814
        %v816 = vpop.f32.mrb[0].mxu0
        %v817 = vpop.f32.mrb[0].mxu0
        %v818 = vadd.f32 0.0, %v817
        %v819 = vpop.f32.mrb[0].mxu0
        %820 = vmatprep.mubr.bf16.mxu0 0
        %821 = vmatmul.mubr.bf16.gmra.mrb[0].mxu0 %v706
        %v822 = vpop.f32.mrb[0].mxu0
        %v823 = vadd.f32 0.0, %v822
        %v824 = vpop.f32.mrb[0].mxu0
        %v825 = vpop.f32.mrb[0].mxu0
        %v826 = vadd.f32 0.0, %v825
        %v827 = vpop.f32.mrb[0].mxu0
        %828 = vmatprep.mubr.bf16.mxu0 0
        %829 = vmatmul.mubr.bf16.gmra.mrb[0].mxu0 %v707
        %v830 = vpop.f32.mrb[0].mxu0
        %v831 = vadd.f32 0.0, %v830
        %v832 = vpop.f32.mrb[0].mxu0
        %v833 = vpop.f32.mrb[0].mxu0
        %v834 = vadd.f32 0.0, %v833
        %v835 = vpop.f32.mrb[0].mxu0
        %836 = vdwg.mxu0
        %v853 = vunpack.c.l.b16 %v656
        %v854 = vunpack.c.l.b16 %v657
        %v855 = vunpack.c.l.b16 %v658
        %v856 = vunpack.c.l.b16 %v659
        %v857 = vunpack.c.l.b16 %v660
        %v858 = vunpack.c.l.b16 %v661
        %v859 = vunpack.c.l.b16 %v662
        %v860 = vunpack.c.l.b16 %v663
        %v861 = vunpack.c.l.b16 %v664
        %v862 = vunpack.c.l.b16 %v665
        %v863 = vunpack.c.l.b16 %v666
        %v864 = vunpack.c.l.b16 %v667
        %v865 = vunpack.c.l.b16 %v668
        %v866 = vunpack.c.l.b16 %v669
        %v867 = vunpack.c.l.b16 %v670
        %v868 = vunpack.c.l.b16 %v671
        %v869 = vpack.c.b16 %v854, %v853
        %v870 = vpack.c.b16 %v856, %v855
        %v871 = vpack.c.b16 %v858, %v857
        %v872 = vpack.c.b16 %v860, %v859
        %v873 = vpack.c.b16 %v862, %v861
        %v874 = vpack.c.b16 %v864, %v863
        %v875 = vpack.c.b16 %v866, %v865
        %v876 = vpack.c.b16 %v868, %v867
        %885 = vmatprep.subr.bf16.mxu0 0
        %886 = vmatpush1.bf16.msra.mxu0 %v869
        %887 = vmatprep.subr.bf16.mxu0 0
        %888 = vmatpush1.bf16.msra.mxu0 %v870
        %889 = vmatprep.subr.bf16.mxu0 0
        %890 = vmatpush1.bf16.msra.mxu0 %v871
        %891 = vmatprep.subr.bf16.mxu0 0
        %892 = vmatpush1.bf16.msra.mxu0 %v872
        %893 = vmatprep.subr.bf16.mxu0 0
        %894 = vmatpush1.bf16.msra.mxu0 %v873
        %895 = vmatprep.subr.bf16.mxu0 0
        %896 = vmatpush1.bf16.msra.mxu0 %v874
        %897 = vmatprep.subr.bf16.mxu0 0
        %898 = vmatpush1.bf16.msra.mxu0 %v875
        %899 = vmatprep.subr.bf16.mxu0 0
        %900 = vmatpush1.bf16.msra.mxu0 %v876
        %901 = vmatprep.subr.bf16.mxu0 0
        %902 = vmatpush1.bf16.msra.mxu0 0
        %903 = vmatprep.subr.bf16.mxu0 0
        %904 = vmatpush1.bf16.msra.mxu0 0
        %905 = vmatprep.subr.bf16.mxu0 0
        %906 = vmatpush1.bf16.msra.mxu0 0
        %907 = vmatprep.subr.bf16.mxu0 0
        %908 = vmatpush1.bf16.msra.mxu0 0
        %909 = vmatprep.subr.bf16.mxu0 0
        %910 = vmatpush1.bf16.msra.mxu0 0
        %911 = vmatprep.subr.bf16.mxu0 0
        %912 = vmatpush1.bf16.msra.mxu0 0
        %913 = vmatprep.subr.bf16.mxu0 0
        %914 = vmatpush1.bf16.msra.mxu0 0
        %915 = vmatprep.subr.bf16.mxu0 0
        %916 = vmatpush1.bf16.msra.mxu0 0
        %917 = vmatprep.mubr.bf16.mxu0 0
        %918 = vmatmul.mubr.bf16.gmra.mrb[0].mxu0 %v651
        %v919 = vpop.f32.mrb[0].mxu0
        %v920 = vadd.f32 %v807, %v919
        %v921 = vpop.f32.mrb[0].mxu0
        %v922 = vpop.f32.mrb[0].mxu0
        %v923 = vadd.f32 %v810, %v922
        %v924 = vpop.f32.mrb[0].mxu0
        %925 = vmatprep.mubr.bf16.mxu0 0
        %926 = vmatmul.mubr.bf16.gmra.mrb[0].mxu0 %v652
        %v927 = vpop.f32.mrb[0].mxu0
        %v928 = vadd.f32 %v815, %v927
        %v929 = vpop.f32.mrb[0].mxu0
        %v930 = vpop.f32.mrb[0].mxu0
        %v931 = vadd.f32 %v818, %v930
        %v932 = vpop.f32.mrb[0].mxu0
        %933 = vmatprep.mubr.bf16.mxu0 0
        %934 = vmatmul.mubr.bf16.gmra.mrb[0].mxu0 %v653
        %v935 = vpop.f32.mrb[0].mxu0
        %v936 = vadd.f32 %v823, %v935
        %v937 = vpop.f32.mrb[0].mxu0
        %v938 = vpop.f32.mrb[0].mxu0
        %v939 = vadd.f32 %v826, %v938
        %v940 = vpop.f32.mrb[0].mxu0
        %941 = vmatprep.mubr.bf16.mxu0 0
        %942 = vmatmul.mubr.bf16.gmra.mrb[0].mxu0 %v654
        %v943 = vpop.f32.mrb[0].mxu0
        %v944 = vadd.f32 %v831, %v943
        %v945 = vpop.f32.mrb[0].mxu0
        %v946 = vpop.f32.mrb[0].mxu0
        %v947 = vadd.f32 %v834, %v946
        %v948 = vpop.f32.mrb[0].mxu0
        %949 = vdwg.mxu0
        %v950 = vld [vmem:[#allocation2 + $0x8] sm:$0xff]
        %v951 = vld [vmem:[#allocation2 + $0x10] sm:$0xff]
        %v952 = vld [vmem:[#allocation2 + $0x18] sm:$0xff]
        %v953 = vld [vmem:[#allocation2 + $0x20] sm:$0xff]
        %v954 = vld [vmem:[#allocation2 + $0x28] sm:$0xff]
        %v955 = vld [vmem:[#allocation2 + $0x30] sm:$0xff]
        %v956 = vld [vmem:[#allocation2 + $0x38] sm:$0xff]
        %v957 = vld [vmem:[#allocation2 + $0x40] sm:$0xff]
        %v958 = vpack.c.bf16 %v951, %v950
        %v959 = vpack.c.bf16 %v953, %v952
        %v960 = vpack.c.bf16 %v955, %v954
        %v961 = vpack.c.bf16 %v957, %v956
        %s962 = scalar_lea.vmem [#allocation8], 64
        %v963 = vld [vmem:[%s962] sm:$0xf]
        %v964 = vld [vmem:[%s962 + $0x4] sm:$0xf]
        %v965 = vld [vmem:[%s962 + $0x8] sm:$0xf]
        %v966 = vld [vmem:[%s962 + $0xc] sm:$0xf]
        %v967 = vld [vmem:[%s962 + $0x10] sm:$0xf]
        %v968 = vld [vmem:[%s962 + $0x14] sm:$0xf]
        %v969 = vld [vmem:[%s962 + $0x18] sm:$0xf]
        %v970 = vld [vmem:[%s962 + $0x1c] sm:$0xf]
        %v971 = vld [vmem:[%s962 + $0x20] sm:$0xf]
        %v972 = vld [vmem:[%s962 + $0x24] sm:$0xf]
        %v973 = vld [vmem:[%s962 + $0x28] sm:$0xf]
        %v974 = vld [vmem:[%s962 + $0x2c] sm:$0xf]
        %v975 = vld [vmem:[%s962 + $0x30] sm:$0xf]
        %v976 = vld [vmem:[%s962 + $0x34] sm:$0xf]
        %v977 = vld [vmem:[%s962 + $0x38] sm:$0xf]
        %v978 = vld [vmem:[%s962 + $0x3c] sm:$0xf]
        %v995 = vunpack.c.l.b16 %v963
        %v996 = vunpack.c.l.b16 %v964
        %v997 = vunpack.c.l.b16 %v965
        %v998 = vunpack.c.l.b16 %v966
        %v999 = vunpack.c.l.b16 %v967
        %v1000 = vunpack.c.l.b16 %v968
        %v1001 = vunpack.c.l.b16 %v969
        %v1002 = vunpack.c.l.b16 %v970
        %v1003 = vunpack.c.l.b16 %v971
        %v1004 = vunpack.c.l.b16 %v972
        %v1005 = vunpack.c.l.b16 %v973
        %v1006 = vunpack.c.l.b16 %v974
        %v1007 = vunpack.c.l.b16 %v975
        %v1008 = vunpack.c.l.b16 %v976
        %v1009 = vunpack.c.l.b16 %v977
        %v1010 = vunpack.c.l.b16 %v978
        %v1011 = vpack.c.b16 %v996, %v995
        %v1012 = vpack.c.b16 %v998, %v997
        %v1013 = vpack.c.b16 %v1000, %v999
        %v1014 = vpack.c.b16 %v1002, %v1001
        %v1015 = vpack.c.b16 %v1004, %v1003
        %v1016 = vpack.c.b16 %v1006, %v1005
        %v1017 = vpack.c.b16 %v1008, %v1007
        %v1018 = vpack.c.b16 %v1010, %v1009
        %1027 = vmatprep.subr.bf16.mxu0 0
        %1028 = vmatpush1.bf16.msra.mxu0 %v1011
        %1029 = vmatprep.subr.bf16.mxu0 0
        %1030 = vmatpush1.bf16.msra.mxu0 %v1012
        %1031 = vmatprep.subr.bf16.mxu0 0
        %1032 = vmatpush1.bf16.msra.mxu0 %v1013
        %1033 = vmatprep.subr.bf16.mxu0 0
        %1034 = vmatpush1.bf16.msra.mxu0 %v1014
        %1035 = vmatprep.subr.bf16.mxu0 0
        %1036 = vmatpush1.bf16.msra.mxu0 %v1015
        %1037 = vmatprep.subr.bf16.mxu0 0
        %1038 = vmatpush1.bf16.msra.mxu0 %v1016
        %1039 = vmatprep.subr.bf16.mxu0 0
        %1040 = vmatpush1.bf16.msra.mxu0 %v1017
        %1041 = vmatprep.subr.bf16.mxu0 0
        %1042 = vmatpush1.bf16.msra.mxu0 %v1018
        %1043 = vmatprep.subr.bf16.mxu0 0
        %1044 = vmatpush1.bf16.msra.mxu0 0
        %1045 = vmatprep.subr.bf16.mxu0 0
        %1046 = vmatpush1.bf16.msra.mxu0 0
        %1047 = vmatprep.subr.bf16.mxu0 0
        %1048 = vmatpush1.bf16.msra.mxu0 0
        %1049 = vmatprep.subr.bf16.mxu0 0
        %1050 = vmatpush1.bf16.msra.mxu0 0
        %1051 = vmatprep.subr.bf16.mxu0 0
        %1052 = vmatpush1.bf16.msra.mxu0 0
        %1053 = vmatprep.subr.bf16.mxu0 0
        %1054 = vmatpush1.bf16.msra.mxu0 0
        %1055 = vmatprep.subr.bf16.mxu0 0
        %1056 = vmatpush1.bf16.msra.mxu0 0
        %1057 = vmatprep.subr.bf16.mxu0 0
        %1058 = vmatpush1.bf16.msra.mxu0 0
        %1059 = vmatprep.mubr.bf16.mxu0 0
        %1060 = vmatmul.mubr.bf16.gmra.mrb[0].mxu0 %v958
        %v1061 = vpop.f32.mrb[0].mxu0
        %v1062 = vadd.f32 0.0, %v1061
        %v1063 = vpop.f32.mrb[0].mxu0
        %v1064 = vpop.f32.mrb[0].mxu0
        %v1065 = vadd.f32 0.0, %v1064
        %v1066 = vpop.f32.mrb[0].mxu0
        %1067 = vmatprep.mubr.bf16.mxu0 0
        %1068 = vmatmul.mubr.bf16.gmra.mrb[0].mxu0 %v959
        %v1069 = vpop.f32.mrb[0].mxu0
        %v1070 = vadd.f32 0.0, %v1069
        %v1071 = vpop.f32.mrb[0].mxu0
        %v1072 = vpop.f32.mrb[0].mxu0
        %v1073 = vadd.f32 0.0, %v1072
        %v1074 = vpop.f32.mrb[0].mxu0
        %1075 = vmatprep.mubr.bf16.mxu0 0
        %1076 = vmatmul.mubr.bf16.gmra.mrb[0].mxu0 %v960
        %v1077 = vpop.f32.mrb[0].mxu0
        %v1078 = vadd.f32 0.0, %v1077
        %v1079 = vpop.f32.mrb[0].mxu0
        %v1080 = vpop.f32.mrb[0].mxu0
        %v1081 = vadd.f32 0.0, %v1080
        %v1082 = vpop.f32.mrb[0].mxu0
        %1083 = vmatprep.mubr.bf16.mxu0 0
        %1084 = vmatmul.mubr.bf16.gmra.mrb[0].mxu0 %v961
        %v1085 = vpop.f32.mrb[0].mxu0
        %v1086 = vadd.f32 0.0, %v1085
        %v1087 = vpop.f32.mrb[0].mxu0
        %v1088 = vpop.f32.mrb[0].mxu0
        %v1089 = vadd.f32 0.0, %v1088
        %v1090 = vpop.f32.mrb[0].mxu0
        %1091 = vdwg.mxu0
        %v1092 = vadd.f32 %v920, %v1062
        %v1093 = vadd.f32 %v923, %v1065
        %v1094 = vadd.f32 %v928, %v1070
        %v1095 = vadd.f32 %v931, %v1073
        %v1096 = vadd.f32 %v936, %v1078
        %v1097 = vadd.f32 %v939, %v1081
        %v1098 = vadd.f32 %v944, %v1086
        %v1099 = vadd.f32 %v947, %v1089
        %v1100 = vld [vmem:[#allocation2 + $0x9] sm:$0xff]
        %v1101 = vld [vmem:[#allocation2 + $0x11] sm:$0xff]
        %v1102 = vld [vmem:[#allocation2 + $0x19] sm:$0xff]
        %v1103 = vld [vmem:[#allocation2 + $0x21] sm:$0xff]
        %v1104 = vld [vmem:[#allocation2 + $0x29] sm:$0xff]
        %v1105 = vld [vmem:[#allocation2 + $0x31] sm:$0xff]
        %v1106 = vld [vmem:[#allocation2 + $0x39] sm:$0xff]
        %v1107 = vld [vmem:[#allocation2 + $0x41] sm:$0xff]
        %v1108 = vsel %vm643, 1, 0
        %v1109 = vsel %vm644, 1, 0
        %v1110 = vsel %vm645, 1, 0
        %v1111 = vsel %vm646, 1, 0
        %v1112 = vsel %vm647, 1, 0
        %v1113 = vsel %vm648, 1, 0
        %v1114 = vsel %vm649, 1, 0
        %v1115 = vsel %vm650, 1, 0
        %vm1116 = vcmp.eq.s32.totalorder %v1108, 1
        %vm1117 = vcmp.eq.s32.totalorder %v1109, 1
        %vm1118 = vcmp.eq.s32.totalorder %v1110, 1
        %vm1119 = vcmp.eq.s32.totalorder %v1111, 1
        %vm1120 = vcmp.eq.s32.totalorder %v1112, 1
        %vm1121 = vcmp.eq.s32.totalorder %v1113, 1
        %vm1122 = vcmp.eq.s32.totalorder %v1114, 1
        %vm1123 = vcmp.eq.s32.totalorder %v1115, 1
        %v1124 = vsel %vm1116, %v1100, 0.0
        %v1125 = vsel %vm1117, %v1101, 0.0
        %v1126 = vsel %vm1118, %v1102, 0.0
        %v1127 = vsel %vm1119, %v1103, 0.0
        %v1128 = vsel %vm1120, %v1104, 0.0
        %v1129 = vsel %vm1121, %v1105, 0.0
        %v1130 = vsel %vm1122, %v1106, 0.0
        %v1131 = vsel %vm1123, %v1107, 0.0
        %v1132 = vpack.c.bf16 %v1125, %v1124
        %v1133 = vpack.c.bf16 %v1127, %v1126
        %v1134 = vpack.c.bf16 %v1129, %v1128
        %v1135 = vpack.c.bf16 %v1131, %v1130
        %s1136 = scalar_lea.vmem [#allocation8], 128
        %v1137 = vld [vmem:[%s1136] sm:$0xf]
        %v1138 = vld [vmem:[%s1136 + $0x4] sm:$0xf]
        %v1139 = vld [vmem:[%s1136 + $0x8] sm:$0xf]
        %v1140 = vld [vmem:[%s1136 + $0xc] sm:$0xf]
        %v1141 = vld [vmem:[%s1136 + $0x10] sm:$0xf]
        %v1142 = vld [vmem:[%s1136 + $0x14] sm:$0xf]
        %v1143 = vld [vmem:[%s1136 + $0x18] sm:$0xf]
        %v1144 = vld [vmem:[%s1136 + $0x1c] sm:$0xf]
        %v1145 = vld [vmem:[%s1136 + $0x20] sm:$0xf]
        %v1146 = vld [vmem:[%s1136 + $0x24] sm:$0xf]
        %v1147 = vld [vmem:[%s1136 + $0x28] sm:$0xf]
        %v1148 = vld [vmem:[%s1136 + $0x2c] sm:$0xf]
        %v1149 = vld [vmem:[%s1136 + $0x30] sm:$0xf]
        %v1150 = vld [vmem:[%s1136 + $0x34] sm:$0xf]
        %v1151 = vld [vmem:[%s1136 + $0x38] sm:$0xf]
        %v1152 = vld [vmem:[%s1136 + $0x3c] sm:$0xf]
        %v1169 = vunpack.c.l.b16 %v1137
        %v1170 = vunpack.c.l.b16 %v1138
        %v1171 = vunpack.c.l.b16 %v1139
        %v1172 = vunpack.c.l.b16 %v1140
        %v1173 = vunpack.c.l.b16 %v1141
        %v1174 = vunpack.c.l.b16 %v1142
        %v1175 = vunpack.c.l.b16 %v1143
        %v1176 = vunpack.c.l.b16 %v1144
        %v1177 = vunpack.c.l.b16 %v1145
        %v1178 = vunpack.c.l.b16 %v1146
        %v1179 = vunpack.c.l.b16 %v1147
        %v1180 = vunpack.c.l.b16 %v1148
        %v1181 = vunpack.c.l.b16 %v1149
        %v1182 = vunpack.c.l.b16 %v1150
        %v1183 = vunpack.c.l.b16 %v1151
        %v1184 = vunpack.c.l.b16 %v1152
        %v1185 = vpack.c.b16 %v1170, %v1169
        %v1186 = vpack.c.b16 %v1172, %v1171
        %v1187 = vpack.c.b16 %v1174, %v1173
        %v1188 = vpack.c.b16 %v1176, %v1175
        %v1189 = vpack.c.b16 %v1178, %v1177
        %v1190 = vpack.c.b16 %v1180, %v1179
        %v1191 = vpack.c.b16 %v1182, %v1181
        %v1192 = vpack.c.b16 %v1184, %v1183
        %1201 = vmatprep.subr.bf16.mxu0 0
        %1202 = vmatpush1.bf16.msra.mxu0 %v1185
        %1203 = vmatprep.subr.bf16.mxu0 0
        %1204 = vmatpush1.bf16.msra.mxu0 %v1186
        %1205 = vmatprep.subr.bf16.mxu0 0
        %1206 = vmatpush1.bf16.msra.mxu0 %v1187
        %1207 = vmatprep.subr.bf16.mxu0 0
        %1208 = vmatpush1.bf16.msra.mxu0 %v1188
        %1209 = vmatprep.subr.bf16.mxu0 0
        %1210 = vmatpush1.bf16.msra.mxu0 %v1189
        %1211 = vmatprep.subr.bf16.mxu0 0
        %1212 = vmatpush1.bf16.msra.mxu0 %v1190
        %1213 = vmatprep.subr.bf16.mxu0 0
        %1214 = vmatpush1.bf16.msra.mxu0 %v1191
        %1215 = vmatprep.subr.bf16.mxu0 0
        %1216 = vmatpush1.bf16.msra.mxu0 %v1192
        %1217 = vmatprep.subr.bf16.mxu0 0
        %1218 = vmatpush1.bf16.msra.mxu0 0
        %1219 = vmatprep.subr.bf16.mxu0 0
        %1220 = vmatpush1.bf16.msra.mxu0 0
        %1221 = vmatprep.subr.bf16.mxu0 0
        %1222 = vmatpush1.bf16.msra.mxu0 0
        %1223 = vmatprep.subr.bf16.mxu0 0
        %1224 = vmatpush1.bf16.msra.mxu0 0
        %1225 = vmatprep.subr.bf16.mxu0 0
        %1226 = vmatpush1.bf16.msra.mxu0 0
        %1227 = vmatprep.subr.bf16.mxu0 0
        %1228 = vmatpush1.bf16.msra.mxu0 0
        %1229 = vmatprep.subr.bf16.mxu0 0
        %1230 = vmatpush1.bf16.msra.mxu0 0
        %1231 = vmatprep.subr.bf16.mxu0 0
        %1232 = vmatpush1.bf16.msra.mxu0 0
        %1233 = vmatprep.mubr.bf16.mxu0 0
        %1234 = vmatmul.mubr.bf16.gmra.mrb[0].mxu0 %v1132
        %v1235 = vpop.f32.mrb[0].mxu0
        %v1236 = vadd.f32 0.0, %v1235
        %v1237 = vpop.f32.mrb[0].mxu0
        %v1238 = vpop.f32.mrb[0].mxu0
        %v1239 = vadd.f32 0.0, %v1238
        %v1240 = vpop.f32.mrb[0].mxu0
        %1241 = vmatprep.mubr.bf16.mxu0 0
        %1242 = vmatmul.mubr.bf16.gmra.mrb[0].mxu0 %v1133
        %v1243 = vpop.f32.mrb[0].mxu0
        %v1244 = vadd.f32 0.0, %v1243
        %v1245 = vpop.f32.mrb[0].mxu0
        %v1246 = vpop.f32.mrb[0].mxu0
        %v1247 = vadd.f32 0.0, %v1246
        %v1248 = vpop.f32.mrb[0].mxu0
        %1249 = vmatprep.mubr.bf16.mxu0 0
        %1250 = vmatmul.mubr.bf16.gmra.mrb[0].mxu0 %v1134
        %v1251 = vpop.f32.mrb[0].mxu0
        %v1252 = vadd.f32 0.0, %v1251
        %v1253 = vpop.f32.mrb[0].mxu0
        %v1254 = vpop.f32.mrb[0].mxu0
        %v1255 = vadd.f32 0.0, %v1254
        %v1256 = vpop.f32.mrb[0].mxu0
        %1257 = vmatprep.mubr.bf16.mxu0 0
        %1258 = vmatmul.mubr.bf16.gmra.mrb[0].mxu0 %v1135
        %v1259 = vpop.f32.mrb[0].mxu0
        %v1260 = vadd.f32 0.0, %v1259
        %v1261 = vpop.f32.mrb[0].mxu0
        %v1262 = vpop.f32.mrb[0].mxu0
        %v1263 = vadd.f32 0.0, %v1262
        %v1264 = vpop.f32.mrb[0].mxu0
        %1265 = vdwg.mxu0
        %v1266 = vadd.f32 %v1092, %v1236
        %v1267 = vadd.f32 %v1093, %v1239
        %v1268 = vadd.f32 %v1094, %v1244
        %v1269 = vadd.f32 %v1095, %v1247
        %v1270 = vadd.f32 %v1096, %v1252
        %v1271 = vadd.f32 %v1097, %v1255
        %v1272 = vadd.f32 %v1098, %v1260
        %v1273 = vadd.f32 %v1099, %v1263
        %v1274 = vld [vmem:[#allocation2 + $0xf] sm:$0xff]
        %v1275 = vld [vmem:[#allocation2 + $0x17] sm:$0xff]
        %v1276 = vld [vmem:[#allocation2 + $0x1f] sm:$0xff]
        %v1277 = vld [vmem:[#allocation2 + $0x27] sm:$0xff]
        %v1278 = vld [vmem:[#allocation2 + $0x2f] sm:$0xff]
        %v1279 = vld [vmem:[#allocation2 + $0x37] sm:$0xff]
        %v1280 = vld [vmem:[#allocation2 + $0x3f] sm:$0xff]
        %v1281 = vld [vmem:[#allocation2 + $0x47] sm:$0xff]
        %v1282 = vsel %vm688, %v1274, 0.0
        %v1283 = vsel %vm689, %v1275, 0.0
        %v1284 = vsel %vm690, %v1276, 0.0
        %v1285 = vsel %vm691, %v1277, 0.0
        %v1286 = vsel %vm692, %v1278, 0.0
        %v1287 = vsel %vm693, %v1279, 0.0
        %v1288 = vsel %vm694, %v1280, 0.0
        %v1289 = vsel %vm695, %v1281, 0.0
        %v1290 = vpack.c.bf16 %v1283, %v1282
        %v1291 = vpack.c.bf16 %v1285, %v1284
        %v1292 = vpack.c.bf16 %v1287, %v1286
        %v1293 = vpack.c.bf16 %v1289, %v1288
        %s1294 = scalar_lea.vmem [#allocation8], 192
        %v1295 = vld [vmem:[%s1294] sm:$0xf]
        %v1296 = vld [vmem:[%s1294 + $0x4] sm:$0xf]
        %v1297 = vld [vmem:[%s1294 + $0x8] sm:$0xf]
        %v1298 = vld [vmem:[%s1294 + $0xc] sm:$0xf]
        %v1299 = vld [vmem:[%s1294 + $0x10] sm:$0xf]
        %v1300 = vld [vmem:[%s1294 + $0x14] sm:$0xf]
        %v1301 = vld [vmem:[%s1294 + $0x18] sm:$0xf]
        %v1302 = vld [vmem:[%s1294 + $0x1c] sm:$0xf]
        %v1303 = vld [vmem:[%s1294 + $0x20] sm:$0xf]
        %v1304 = vld [vmem:[%s1294 + $0x24] sm:$0xf]
        %v1305 = vld [vmem:[%s1294 + $0x28] sm:$0xf]
        %v1306 = vld [vmem:[%s1294 + $0x2c] sm:$0xf]
        %v1307 = vld [vmem:[%s1294 + $0x30] sm:$0xf]
        %v1308 = vld [vmem:[%s1294 + $0x34] sm:$0xf]
        %v1309 = vld [vmem:[%s1294 + $0x38] sm:$0xf]
        %v1310 = vld [vmem:[%s1294 + $0x3c] sm:$0xf]
        %v1327 = vunpack.c.l.b16 %v1295
        %v1328 = vunpack.c.l.b16 %v1296
        %v1329 = vunpack.c.l.b16 %v1297
        %v1330 = vunpack.c.l.b16 %v1298
        %v1331 = vunpack.c.l.b16 %v1299
        %v1332 = vunpack.c.l.b16 %v1300
        %v1333 = vunpack.c.l.b16 %v1301
        %v1334 = vunpack.c.l.b16 %v1302
        %v1335 = vunpack.c.l.b16 %v1303
        %v1336 = vunpack.c.l.b16 %v1304
        %v1337 = vunpack.c.l.b16 %v1305
        %v1338 = vunpack.c.l.b16 %v1306
        %v1339 = vunpack.c.l.b16 %v1307
        %v1340 = vunpack.c.l.b16 %v1308
        %v1341 = vunpack.c.l.b16 %v1309
        %v1342 = vunpack.c.l.b16 %v1310
        %v1343 = vpack.c.b16 %v1328, %v1327
        %v1344 = vpack.c.b16 %v1330, %v1329
        %v1345 = vpack.c.b16 %v1332, %v1331
        %v1346 = vpack.c.b16 %v1334, %v1333
        %v1347 = vpack.c.b16 %v1336, %v1335
        %v1348 = vpack.c.b16 %v1338, %v1337
        %v1349 = vpack.c.b16 %v1340, %v1339
        %v1350 = vpack.c.b16 %v1342, %v1341
        %1359 = vmatprep.subr.bf16.mxu0 0
        %1360 = vmatpush1.bf16.msra.mxu0 %v1343
        %1361 = vmatprep.subr.bf16.mxu0 0
        %1362 = vmatpush1.bf16.msra.mxu0 %v1344
        %1363 = vmatprep.subr.bf16.mxu0 0
        %1364 = vmatpush1.bf16.msra.mxu0 %v1345
        %1365 = vmatprep.subr.bf16.mxu0 0
        %1366 = vmatpush1.bf16.msra.mxu0 %v1346
        %1367 = vmatprep.subr.bf16.mxu0 0
        %1368 = vmatpush1.bf16.msra.mxu0 %v1347
        %1369 = vmatprep.subr.bf16.mxu0 0
        %1370 = vmatpush1.bf16.msra.mxu0 %v1348
        %1371 = vmatprep.subr.bf16.mxu0 0
        %1372 = vmatpush1.bf16.msra.mxu0 %v1349
        %1373 = vmatprep.subr.bf16.mxu0 0
        %1374 = vmatpush1.bf16.msra.mxu0 %v1350
        %1375 = vmatprep.subr.bf16.mxu0 0
        %1376 = vmatpush1.bf16.msra.mxu0 0
        %1377 = vmatprep.subr.bf16.mxu0 0
        %1378 = vmatpush1.bf16.msra.mxu0 0
        %1379 = vmatprep.subr.bf16.mxu0 0
        %1380 = vmatpush1.bf16.msra.mxu0 0
        %1381 = vmatprep.subr.bf16.mxu0 0
        %1382 = vmatpush1.bf16.msra.mxu0 0
        %1383 = vmatprep.subr.bf16.mxu0 0
        %1384 = vmatpush1.bf16.msra.mxu0 0
        %1385 = vmatprep.subr.bf16.mxu0 0
        %1386 = vmatpush1.bf16.msra.mxu0 0
        %1387 = vmatprep.subr.bf16.mxu0 0
        %1388 = vmatpush1.bf16.msra.mxu0 0
        %1389 = vmatprep.subr.bf16.mxu0 0
        %1390 = vmatpush1.bf16.msra.mxu0 0
        %1391 = vmatprep.mubr.bf16.mxu0 0
        %1392 = vmatmul.mubr.bf16.gmra.mrb[0].mxu0 %v1290
        %v1393 = vpop.f32.mrb[0].mxu0
        %v1394 = vadd.f32 0.0, %v1393
        %v1395 = vpop.f32.mrb[0].mxu0
        %v1396 = vpop.f32.mrb[0].mxu0
        %v1397 = vadd.f32 0.0, %v1396
        %v1398 = vpop.f32.mrb[0].mxu0
        %1399 = vmatprep.mubr.bf16.mxu0 0
        %1400 = vmatmul.mubr.bf16.gmra.mrb[0].mxu0 %v1291
        %v1401 = vpop.f32.mrb[0].mxu0
        %v1402 = vadd.f32 0.0, %v1401
        %v1403 = vpop.f32.mrb[0].mxu0
        %v1404 = vpop.f32.mrb[0].mxu0
        %v1405 = vadd.f32 0.0, %v1404
        %v1406 = vpop.f32.mrb[0].mxu0
        %1407 = vmatprep.mubr.bf16.mxu0 0
        %1408 = vmatmul.mubr.bf16.gmra.mrb[0].mxu0 %v1292
        %v1409 = vpop.f32.mrb[0].mxu0
        %v1410 = vadd.f32 0.0, %v1409
        %v1411 = vpop.f32.mrb[0].mxu0
        %v1412 = vpop.f32.mrb[0].mxu0
        %v1413 = vadd.f32 0.0, %v1412
        %v1414 = vpop.f32.mrb[0].mxu0
        %1415 = vmatprep.mubr.bf16.mxu0 0
        %1416 = vmatmul.mubr.bf16.gmra.mrb[0].mxu0 %v1293
        %v1417 = vpop.f32.mrb[0].mxu0
        %v1418 = vadd.f32 0.0, %v1417
        %v1419 = vpop.f32.mrb[0].mxu0
        %v1420 = vpop.f32.mrb[0].mxu0
        %v1421 = vadd.f32 0.0, %v1420
        %v1422 = vpop.f32.mrb[0].mxu0
        %1423 = vdwg.mxu0
        %v1424 = vadd.f32 %v1266, %v1394
        %v1425 = vadd.f32 %v1267, %v1397
        %v1426 = vadd.f32 %v1268, %v1402
        %v1427 = vadd.f32 %v1269, %v1405
        %v1428 = vadd.f32 %v1270, %v1410
        %v1429 = vadd.f32 %v1271, %v1413
        %v1430 = vadd.f32 %v1272, %v1418
        %v1431 = vadd.f32 %v1273, %v1421
        %v1432 = vld [vmem:[#allocation2 + $0x11] sm:$0xff]
        %v1433 = vld [vmem:[#allocation2 + $0x19] sm:$0xff]
        %v1434 = vld [vmem:[#allocation2 + $0x21] sm:$0xff]
        %v1435 = vld [vmem:[#allocation2 + $0x29] sm:$0xff]
        %v1436 = vld [vmem:[#allocation2 + $0x31] sm:$0xff]
        %v1437 = vld [vmem:[#allocation2 + $0x39] sm:$0xff]
        %v1438 = vld [vmem:[#allocation2 + $0x41] sm:$0xff]
        %v1439 = vld [vmem:[#allocation2 + $0x49] sm:$0xff]
        %v1440 = vsel %vm1116, %v1432, 0.0
        %v1441 = vsel %vm1117, %v1433, 0.0
        %v1442 = vsel %vm1118, %v1434, 0.0
        %v1443 = vsel %vm1119, %v1435, 0.0
        %v1444 = vsel %vm1120, %v1436, 0.0
        %v1445 = vsel %vm1121, %v1437, 0.0
        %v1446 = vsel %vm1122, %v1438, 0.0
        %v1447 = vsel %vm1123, %v1439, 0.0
        %v1448 = vpack.c.bf16 %v1441, %v1440
        %v1449 = vpack.c.bf16 %v1443, %v1442
        %v1450 = vpack.c.bf16 %v1445, %v1444
        %v1451 = vpack.c.bf16 %v1447, %v1446
        %s1452 = scalar_lea.vmem [#allocation8], 320
        %v1453 = vld [vmem:[%s1452] sm:$0xf]
        %v1454 = vld [vmem:[%s1452 + $0x4] sm:$0xf]
        %v1455 = vld [vmem:[%s1452 + $0x8] sm:$0xf]
        %v1456 = vld [vmem:[%s1452 + $0xc] sm:$0xf]
        %v1457 = vld [vmem:[%s1452 + $0x10] sm:$0xf]
        %v1458 = vld [vmem:[%s1452 + $0x14] sm:$0xf]
        %v1459 = vld [vmem:[%s1452 + $0x18] sm:$0xf]
        %v1460 = vld [vmem:[%s1452 + $0x1c] sm:$0xf]
        %v1461 = vld [vmem:[%s1452 + $0x20] sm:$0xf]
        %v1462 = vld [vmem:[%s1452 + $0x24] sm:$0xf]
        %v1463 = vld [vmem:[%s1452 + $0x28] sm:$0xf]
        %v1464 = vld [vmem:[%s1452 + $0x2c] sm:$0xf]
        %v1465 = vld [vmem:[%s1452 + $0x30] sm:$0xf]
        %v1466 = vld [vmem:[%s1452 + $0x34] sm:$0xf]
        %v1467 = vld [vmem:[%s1452 + $0x38] sm:$0xf]
        %v1468 = vld [vmem:[%s1452 + $0x3c] sm:$0xf]
        %v1485 = vunpack.c.l.b16 %v1453
        %v1486 = vunpack.c.l.b16 %v1454
        %v1487 = vunpack.c.l.b16 %v1455
        %v1488 = vunpack.c.l.b16 %v1456
        %v1489 = vunpack.c.l.b16 %v1457
        %v1490 = vunpack.c.l.b16 %v1458
        %v1491 = vunpack.c.l.b16 %v1459
        %v1492 = vunpack.c.l.b16 %v1460
        %v1493 = vunpack.c.l.b16 %v1461
        %v1494 = vunpack.c.l.b16 %v1462
        %v1495 = vunpack.c.l.b16 %v1463
        %v1496 = vunpack.c.l.b16 %v1464
        %v1497 = vunpack.c.l.b16 %v1465
        %v1498 = vunpack.c.l.b16 %v1466
        %v1499 = vunpack.c.l.b16 %v1467
        %v1500 = vunpack.c.l.b16 %v1468
        %v1501 = vpack.c.b16 %v1486, %v1485
        %v1502 = vpack.c.b16 %v1488, %v1487
        %v1503 = vpack.c.b16 %v1490, %v1489
        %v1504 = vpack.c.b16 %v1492, %v1491
        %v1505 = vpack.c.b16 %v1494, %v1493
        %v1506 = vpack.c.b16 %v1496, %v1495
        %v1507 = vpack.c.b16 %v1498, %v1497
        %v1508 = vpack.c.b16 %v1500, %v1499
        %1517 = vmatprep.subr.bf16.mxu0 0
        %1518 = vmatpush1.bf16.msra.mxu0 %v1501
        %1519 = vmatprep.subr.bf16.mxu0 0
        %1520 = vmatpush1.bf16.msra.mxu0 %v1502
        %1521 = vmatprep.subr.bf16.mxu0 0
        %1522 = vmatpush1.bf16.msra.mxu0 %v1503
        %1523 = vmatprep.subr.bf16.mxu0 0
        %1524 = vmatpush1.bf16.msra.mxu0 %v1504
        %1525 = vmatprep.subr.bf16.mxu0 0
        %1526 = vmatpush1.bf16.msra.mxu0 %v1505
        %1527 = vmatprep.subr.bf16.mxu0 0
        %1528 = vmatpush1.bf16.msra.mxu0 %v1506
        %1529 = vmatprep.subr.bf16.mxu0 0
        %1530 = vmatpush1.bf16.msra.mxu0 %v1507
        %1531 = vmatprep.subr.bf16.mxu0 0
        %1532 = vmatpush1.bf16.msra.mxu0 %v1508
        %1533 = vmatprep.subr.bf16.mxu0 0
        %1534 = vmatpush1.bf16.msra.mxu0 0
        %1535 = vmatprep.subr.bf16.mxu0 0
        %1536 = vmatpush1.bf16.msra.mxu0 0
        %1537 = vmatprep.subr.bf16.mxu0 0
        %1538 = vmatpush1.bf16.msra.mxu0 0
        %1539 = vmatprep.subr.bf16.mxu0 0
        %1540 = vmatpush1.bf16.msra.mxu0 0
        %1541 = vmatprep.subr.bf16.mxu0 0
        %1542 = vmatpush1.bf16.msra.mxu0 0
        %1543 = vmatprep.subr.bf16.mxu0 0
        %1544 = vmatpush1.bf16.msra.mxu0 0
        %1545 = vmatprep.subr.bf16.mxu0 0
        %1546 = vmatpush1.bf16.msra.mxu0 0
        %1547 = vmatprep.subr.bf16.mxu0 0
        %1548 = vmatpush1.bf16.msra.mxu0 0
        %1549 = vmatprep.mubr.bf16.mxu0 0
        %1550 = vmatmul.mubr.bf16.gmra.mrb[0].mxu0 %v1448
        %v1551 = vpop.f32.mrb[0].mxu0
        %v1552 = vadd.f32 0.0, %v1551
        %v1553 = vpop.f32.mrb[0].mxu0
        %v1554 = vpop.f32.mrb[0].mxu0
        %v1555 = vadd.f32 0.0, %v1554
        %v1556 = vpop.f32.mrb[0].mxu0
        %1557 = vmatprep.mubr.bf16.mxu0 0
        %1558 = vmatmul.mubr.bf16.gmra.mrb[0].mxu0 %v1449
        %v1559 = vpop.f32.mrb[0].mxu0
        %v1560 = vadd.f32 0.0, %v1559
        %v1561 = vpop.f32.mrb[0].mxu0
        %v1562 = vpop.f32.mrb[0].mxu0
        %v1563 = vadd.f32 0.0, %v1562
        %v1564 = vpop.f32.mrb[0].mxu0
        %1565 = vmatprep.mubr.bf16.mxu0 0
        %1566 = vmatmul.mubr.bf16.gmra.mrb[0].mxu0 %v1450
        %v1567 = vpop.f32.mrb[0].mxu0
        %v1568 = vadd.f32 0.0, %v1567
        %v1569 = vpop.f32.mrb[0].mxu0
        %v1570 = vpop.f32.mrb[0].mxu0
        %v1571 = vadd.f32 0.0, %v1570
        %v1572 = vpop.f32.mrb[0].mxu0
        %1573 = vmatprep.mubr.bf16.mxu0 0
        %1574 = vmatmul.mubr.bf16.gmra.mrb[0].mxu0 %v1451
        %v1575 = vpop.f32.mrb[0].mxu0
        %v1576 = vadd.f32 0.0, %v1575
        %v1577 = vpop.f32.mrb[0].mxu0
        %v1578 = vpop.f32.mrb[0].mxu0
        %v1579 = vadd.f32 0.0, %v1578
        %v1580 = vpop.f32.mrb[0].mxu0
        %1581 = vdwg.mxu0
        %v1582 = vadd.f32 %v1424, %v1552
        %v1583 = vadd.f32 %v1425, %v1555
        %v1584 = vadd.f32 %v1426, %v1560
        %v1585 = vadd.f32 %v1427, %v1563
        %v1586 = vadd.f32 %v1428, %v1568
        %v1587 = vadd.f32 %v1429, %v1571
        %v1588 = vadd.f32 %v1430, %v1576
        %v1589 = vadd.f32 %v1431, %v1579
        %v1590 = vld [vmem:[#allocation2 + $0x17] sm:$0xff]
        %v1591 = vld [vmem:[#allocation2 + $0x1f] sm:$0xff]
        %v1592 = vld [vmem:[#allocation2 + $0x27] sm:$0xff]
        %v1593 = vld [vmem:[#allocation2 + $0x2f] sm:$0xff]
        %v1594 = vld [vmem:[#allocation2 + $0x37] sm:$0xff]
        %v1595 = vld [vmem:[#allocation2 + $0x3f] sm:$0xff]
        %v1596 = vld [vmem:[#allocation2 + $0x47] sm:$0xff]
        %v1597 = vld [vmem:[#allocation2 + $0x4f] sm:$0xff]
        %v1598 = vsel %vm688, %v1590, 0.0
        %v1599 = vsel %vm689, %v1591, 0.0
        %v1600 = vsel %vm690, %v1592, 0.0
        %v1601 = vsel %vm691, %v1593, 0.0
        %v1602 = vsel %vm692, %v1594, 0.0
        %v1603 = vsel %vm693, %v1595, 0.0
        %v1604 = vsel %vm694, %v1596, 0.0
        %v1605 = vsel %vm695, %v1597, 0.0
        %v1606 = vpack.c.bf16 %v1599, %v1598
        %v1607 = vpack.c.bf16 %v1601, %v1600
        %v1608 = vpack.c.bf16 %v1603, %v1602
        %v1609 = vpack.c.bf16 %v1605, %v1604
        %s1610 = scalar_lea.vmem [#allocation8], 384
        %v1611 = vld [vmem:[%s1610] sm:$0xf]
        %v1612 = vld [vmem:[%s1610 + $0x4] sm:$0xf]
        %v1613 = vld [vmem:[%s1610 + $0x8] sm:$0xf]
        %v1614 = vld [vmem:[%s1610 + $0xc] sm:$0xf]
        %v1615 = vld [vmem:[%s1610 + $0x10] sm:$0xf]
        %v1616 = vld [vmem:[%s1610 + $0x14] sm:$0xf]
        %v1617 = vld [vmem:[%s1610 + $0x18] sm:$0xf]
        %v1618 = vld [vmem:[%s1610 + $0x1c] sm:$0xf]
        %v1619 = vld [vmem:[%s1610 + $0x20] sm:$0xf]
        %v1620 = vld [vmem:[%s1610 + $0x24] sm:$0xf]
        %v1621 = vld [vmem:[%s1610 + $0x28] sm:$0xf]
        %v1622 = vld [vmem:[%s1610 + $0x2c] sm:$0xf]
        %v1623 = vld [vmem:[%s1610 + $0x30] sm:$0xf]
        %v1624 = vld [vmem:[%s1610 + $0x34] sm:$0xf]
        %v1625 = vld [vmem:[%s1610 + $0x38] sm:$0xf]
        %v1626 = vld [vmem:[%s1610 + $0x3c] sm:$0xf]
        %v1643 = vunpack.c.l.b16 %v1611
        %v1644 = vunpack.c.l.b16 %v1612
        %v1645 = vunpack.c.l.b16 %v1613
        %v1646 = vunpack.c.l.b16 %v1614
        %v1647 = vunpack.c.l.b16 %v1615
        %v1648 = vunpack.c.l.b16 %v1616
        %v1649 = vunpack.c.l.b16 %v1617
        %v1650 = vunpack.c.l.b16 %v1618
        %v1651 = vunpack.c.l.b16 %v1619
        %v1652 = vunpack.c.l.b16 %v1620
        %v1653 = vunpack.c.l.b16 %v1621
        %v1654 = vunpack.c.l.b16 %v1622
        %v1655 = vunpack.c.l.b16 %v1623
        %v1656 = vunpack.c.l.b16 %v1624
        %v1657 = vunpack.c.l.b16 %v1625
        %v1658 = vunpack.c.l.b16 %v1626
        %v1659 = vpack.c.b16 %v1644, %v1643
        %v1660 = vpack.c.b16 %v1646, %v1645
        %v1661 = vpack.c.b16 %v1648, %v1647
        %v1662 = vpack.c.b16 %v1650, %v1649
        %v1663 = vpack.c.b16 %v1652, %v1651
        %v1664 = vpack.c.b16 %v1654, %v1653
        %v1665 = vpack.c.b16 %v1656, %v1655
        %v1666 = vpack.c.b16 %v1658, %v1657
        %1675 = vmatprep.subr.bf16.mxu0 0
        %1676 = vmatpush1.bf16.msra.mxu0 %v1659
        %1677 = vmatprep.subr.bf16.mxu0 0
        %1678 = vmatpush1.bf16.msra.mxu0 %v1660
        %1679 = vmatprep.subr.bf16.mxu0 0
        %1680 = vmatpush1.bf16.msra.mxu0 %v1661
        %1681 = vmatprep.subr.bf16.mxu0 0
        %1682 = vmatpush1.bf16.msra.mxu0 %v1662
        %1683 = vmatprep.subr.bf16.mxu0 0
        %1684 = vmatpush1.bf16.msra.mxu0 %v1663
        %1685 = vmatprep.subr.bf16.mxu0 0
        %1686 = vmatpush1.bf16.msra.mxu0 %v1664
        %1687 = vmatprep.subr.bf16.mxu0 0
        %1688 = vmatpush1.bf16.msra.mxu0 %v1665
        %1689 = vmatprep.subr.bf16.mxu0 0
        %1690 = vmatpush1.bf16.msra.mxu0 %v1666
        %1691 = vmatprep.subr.bf16.mxu0 0
        %1692 = vmatpush1.bf16.msra.mxu0 0
        %1693 = vmatprep.subr.bf16.mxu0 0
        %1694 = vmatpush1.bf16.msra.mxu0 0
        %1695 = vmatprep.subr.bf16.mxu0 0
        %1696 = vmatpush1.bf16.msra.mxu0 0
        %1697 = vmatprep.subr.bf16.mxu0 0
        %1698 = vmatpush1.bf16.msra.mxu0 0
        %1699 = vmatprep.subr.bf16.mxu0 0
        %1700 = vmatpush1.bf16.msra.mxu0 0
        %1701 = vmatprep.subr.bf16.mxu0 0
        %1702 = vmatpush1.bf16.msra.mxu0 0
        %1703 = vmatprep.subr.bf16.mxu0 0
        %1704 = vmatpush1.bf16.msra.mxu0 0
        %1705 = vmatprep.subr.bf16.mxu0 0
        %1706 = vmatpush1.bf16.msra.mxu0 0
        %1707 = vmatprep.mubr.bf16.mxu0 0
        %1708 = vmatmul.mubr.bf16.gmra.mrb[0].mxu0 %v1606
        %v1709 = vpop.f32.mrb[0].mxu0
        %v1710 = vadd.f32 0.0, %v1709
        %v1711 = vpop.f32.mrb[0].mxu0
        %v1712 = vpop.f32.mrb[0].mxu0
        %v1713 = vadd.f32 0.0, %v1712
        %v1714 = vpop.f32.mrb[0].mxu0
        %1715 = vmatprep.mubr.bf16.mxu0 0
        %1716 = vmatmul.mubr.bf16.gmra.mrb[0].mxu0 %v1607
        %v1717 = vpop.f32.mrb[0].mxu0
        %v1718 = vadd.f32 0.0, %v1717
        %v1719 = vpop.f32.mrb[0].mxu0
        %v1720 = vpop.f32.mrb[0].mxu0
        %v1721 = vadd.f32 0.0, %v1720
        %v1722 = vpop.f32.mrb[0].mxu0
        %1723 = vmatprep.mubr.bf16.mxu0 0
        %1724 = vmatmul.mubr.bf16.gmra.mrb[0].mxu0 %v1608
        %v1725 = vpop.f32.mrb[0].mxu0
        %v1726 = vadd.f32 0.0, %v1725
        %v1727 = vpop.f32.mrb[0].mxu0
        %v1728 = vpop.f32.mrb[0].mxu0
        %v1729 = vadd.f32 0.0, %v1728
        %v1730 = vpop.f32.mrb[0].mxu0
        %1731 = vmatprep.mubr.bf16.mxu0 0
        %1732 = vmatmul.mubr.bf16.gmra.mrb[0].mxu0 %v1609
        %v1733 = vpop.f32.mrb[0].mxu0
        %v1734 = vadd.f32 0.0, %v1733
        %v1735 = vpop.f32.mrb[0].mxu0
        %v1736 = vpop.f32.mrb[0].mxu0
        %v1737 = vadd.f32 0.0, %v1736
        %v1738 = vpop.f32.mrb[0].mxu0
        %1739 = vdwg.mxu0
        %v1740 = vadd.f32 %v1582, %v1710
        %v1741 = vadd.f32 %v1583, %v1713
        %v1742 = vadd.f32 %v1584, %v1718
        %v1743 = vadd.f32 %v1585, %v1721
        %v1744 = vadd.f32 %v1586, %v1726
        %v1745 = vadd.f32 %v1587, %v1729
        %v1746 = vadd.f32 %v1588, %v1734
        %v1747 = vadd.f32 %v1589, %v1737
        %v1748 = vld [vmem:[#allocation2 + $0x18] sm:$0xff]
        %v1749 = vld [vmem:[#allocation2 + $0x20] sm:$0xff]
        %v1750 = vld [vmem:[#allocation2 + $0x28] sm:$0xff]
        %v1751 = vld [vmem:[#allocation2 + $0x30] sm:$0xff]
        %v1752 = vld [vmem:[#allocation2 + $0x38] sm:$0xff]
        %v1753 = vld [vmem:[#allocation2 + $0x40] sm:$0xff]
        %v1754 = vld [vmem:[#allocation2 + $0x48] sm:$0xff]
        %v1755 = vld [vmem:[#allocation2 + $0x50] sm:$0xff]
        %v1756 = vpack.c.bf16 %v1749, %v1748
        %v1757 = vpack.c.bf16 %v1751, %v1750
        %v1758 = vpack.c.bf16 %v1753, %v1752
        %v1759 = vpack.c.bf16 %v1755, %v1754
        %s1760 = scalar_lea.vmem [#allocation8], 448
        %v1761 = vld [vmem:[%s1760] sm:$0xf]
        %v1762 = vld [vmem:[%s1760 + $0x4] sm:$0xf]
        %v1763 = vld [vmem:[%s1760 + $0x8] sm:$0xf]
        %v1764 = vld [vmem:[%s1760 + $0xc] sm:$0xf]
        %v1765 = vld [vmem:[%s1760 + $0x10] sm:$0xf]
        %v1766 = vld [vmem:[%s1760 + $0x14] sm:$0xf]
        %v1767 = vld [vmem:[%s1760 + $0x18] sm:$0xf]
        %v1768 = vld [vmem:[%s1760 + $0x1c] sm:$0xf]
        %v1769 = vld [vmem:[%s1760 + $0x20] sm:$0xf]
        %v1770 = vld [vmem:[%s1760 + $0x24] sm:$0xf]
        %v1771 = vld [vmem:[%s1760 + $0x28] sm:$0xf]
        %v1772 = vld [vmem:[%s1760 + $0x2c] sm:$0xf]
        %v1773 = vld [vmem:[%s1760 + $0x30] sm:$0xf]
        %v1774 = vld [vmem:[%s1760 + $0x34] sm:$0xf]
        %v1775 = vld [vmem:[%s1760 + $0x38] sm:$0xf]
        %v1776 = vld [vmem:[%s1760 + $0x3c] sm:$0xf]
        %v1793 = vunpack.c.l.b16 %v1761
        %v1794 = vunpack.c.l.b16 %v1762
        %v1795 = vunpack.c.l.b16 %v1763
        %v1796 = vunpack.c.l.b16 %v1764
        %v1797 = vunpack.c.l.b16 %v1765
        %v1798 = vunpack.c.l.b16 %v1766
        %v1799 = vunpack.c.l.b16 %v1767
        %v1800 = vunpack.c.l.b16 %v1768
        %v1801 = vunpack.c.l.b16 %v1769
        %v1802 = vunpack.c.l.b16 %v1770
        %v1803 = vunpack.c.l.b16 %v1771
        %v1804 = vunpack.c.l.b16 %v1772
        %v1805 = vunpack.c.l.b16 %v1773
        %v1806 = vunpack.c.l.b16 %v1774
        %v1807 = vunpack.c.l.b16 %v1775
        %v1808 = vunpack.c.l.b16 %v1776
        %v1809 = vpack.c.b16 %v1794, %v1793
        %v1810 = vpack.c.b16 %v1796, %v1795
        %v1811 = vpack.c.b16 %v1798, %v1797
        %v1812 = vpack.c.b16 %v1800, %v1799
        %v1813 = vpack.c.b16 %v1802, %v1801
        %v1814 = vpack.c.b16 %v1804, %v1803
        %v1815 = vpack.c.b16 %v1806, %v1805
        %v1816 = vpack.c.b16 %v1808, %v1807
        %1825 = vmatprep.subr.bf16.mxu0 0
        %1826 = vmatpush1.bf16.msra.mxu0 %v1809
        %1827 = vmatprep.subr.bf16.mxu0 0
        %1828 = vmatpush1.bf16.msra.mxu0 %v1810
        %1829 = vmatprep.subr.bf16.mxu0 0
        %1830 = vmatpush1.bf16.msra.mxu0 %v1811
        %1831 = vmatprep.subr.bf16.mxu0 0
        %1832 = vmatpush1.bf16.msra.mxu0 %v1812
        %1833 = vmatprep.subr.bf16.mxu0 0
        %1834 = vmatpush1.bf16.msra.mxu0 %v1813
        %1835 = vmatprep.subr.bf16.mxu0 0
        %1836 = vmatpush1.bf16.msra.mxu0 %v1814
        %1837 = vmatprep.subr.bf16.mxu0 0
        %1838 = vmatpush1.bf16.msra.mxu0 %v1815
        %1839 = vmatprep.subr.bf16.mxu0 0
        %1840 = vmatpush1.bf16.msra.mxu0 %v1816
        %1841 = vmatprep.subr.bf16.mxu0 0
        %1842 = vmatpush1.bf16.msra.mxu0 0
        %1843 = vmatprep.subr.bf16.mxu0 0
        %1844 = vmatpush1.bf16.msra.mxu0 0
        %1845 = vmatprep.subr.bf16.mxu0 0
        %1846 = vmatpush1.bf16.msra.mxu0 0
        %1847 = vmatprep.subr.bf16.mxu0 0
        %1848 = vmatpush1.bf16.msra.mxu0 0
        %1849 = vmatprep.subr.bf16.mxu0 0
        %1850 = vmatpush1.bf16.msra.mxu0 0
        %1851 = vmatprep.subr.bf16.mxu0 0
        %1852 = vmatpush1.bf16.msra.mxu0 0
        %1853 = vmatprep.subr.bf16.mxu0 0
        %1854 = vmatpush1.bf16.msra.mxu0 0
        %1855 = vmatprep.subr.bf16.mxu0 0
        %1856 = vmatpush1.bf16.msra.mxu0 0
        %1857 = vmatprep.mubr.bf16.mxu0 0
        %1858 = vmatmul.mubr.bf16.gmra.mrb[0].mxu0 %v1756
        %v1859 = vpop.f32.mrb[0].mxu0
        %v1860 = vadd.f32 0.0, %v1859
        %v1861 = vpop.f32.mrb[0].mxu0
        %v1862 = vpop.f32.mrb[0].mxu0
        %v1863 = vadd.f32 0.0, %v1862
        %v1864 = vpop.f32.mrb[0].mxu0
        %1865 = vmatprep.mubr.bf16.mxu0 0
        %1866 = vmatmul.mubr.bf16.gmra.mrb[0].mxu0 %v1757
        %v1867 = vpop.f32.mrb[0].mxu0
        %v1868 = vadd.f32 0.0, %v1867
        %v1869 = vpop.f32.mrb[0].mxu0
        %v1870 = vpop.f32.mrb[0].mxu0
        %v1871 = vadd.f32 0.0, %v1870
        %v1872 = vpop.f32.mrb[0].mxu0
        %1873 = vmatprep.mubr.bf16.mxu0 0
        %1874 = vmatmul.mubr.bf16.gmra.mrb[0].mxu0 %v1758
        %v1875 = vpop.f32.mrb[0].mxu0
        %v1876 = vadd.f32 0.0, %v1875
        %v1877 = vpop.f32.mrb[0].mxu0
        %v1878 = vpop.f32.mrb[0].mxu0
        %v1879 = vadd.f32 0.0, %v1878
        %v1880 = vpop.f32.mrb[0].mxu0
        %1881 = vmatprep.mubr.bf16.mxu0 0
        %1882 = vmatmul.mubr.bf16.gmra.mrb[0].mxu0 %v1759
        %v1883 = vpop.f32.mrb[0].mxu0
        %v1884 = vadd.f32 0.0, %v1883
        %v1885 = vpop.f32.mrb[0].mxu0
        %v1886 = vpop.f32.mrb[0].mxu0
        %v1887 = vadd.f32 0.0, %v1886
        %v1888 = vpop.f32.mrb[0].mxu0
        %1889 = vdwg.mxu0
        %v1890 = vadd.f32 %v1740, %v1860
        %v1891 = vadd.f32 %v1741, %v1863
        %v1892 = vadd.f32 %v1742, %v1868
        %v1893 = vadd.f32 %v1743, %v1871
        %v1894 = vadd.f32 %v1744, %v1876
        %v1895 = vadd.f32 %v1745, %v1879
        %v1896 = vadd.f32 %v1746, %v1884
        %v1897 = vadd.f32 %v1747, %v1887
        %v1898 = vld [vmem:[#allocation2 + $0x19] sm:$0xff]
        %v1899 = vld [vmem:[#allocation2 + $0x21] sm:$0xff]
        %v1900 = vld [vmem:[#allocation2 + $0x29] sm:$0xff]
        %v1901 = vld [vmem:[#allocation2 + $0x31] sm:$0xff]
        %v1902 = vld [vmem:[#allocation2 + $0x39] sm:$0xff]
        %v1903 = vld [vmem:[#allocation2 + $0x41] sm:$0xff]
        %v1904 = vld [vmem:[#allocation2 + $0x49] sm:$0xff]
        %v1905 = vld [vmem:[#allocation2 + $0x51] sm:$0xff]
        %v1906 = vsel %vm1116, %v1898, 0.0
        %v1907 = vsel %vm1117, %v1899, 0.0
        %v1908 = vsel %vm1118, %v1900, 0.0
        %v1909 = vsel %vm1119, %v1901, 0.0
        %v1910 = vsel %vm1120, %v1902, 0.0
        %v1911 = vsel %vm1121, %v1903, 0.0
        %v1912 = vsel %vm1122, %v1904, 0.0
        %v1913 = vsel %vm1123, %v1905, 0.0
        %v1914 = vpack.c.bf16 %v1907, %v1906
        %v1915 = vpack.c.bf16 %v1909, %v1908
        %v1916 = vpack.c.bf16 %v1911, %v1910
        %v1917 = vpack.c.bf16 %v1913, %v1912
        %s1918 = scalar_lea.vmem [#allocation8], 512
        %v1919 = vld [vmem:[%s1918] sm:$0xf]
        %v1920 = vld [vmem:[%s1918 + $0x4] sm:$0xf]
        %v1921 = vld [vmem:[%s1918 + $0x8] sm:$0xf]
        %v1922 = vld [vmem:[%s1918 + $0xc] sm:$0xf]
        %v1923 = vld [vmem:[%s1918 + $0x10] sm:$0xf]
        %v1924 = vld [vmem:[%s1918 + $0x14] sm:$0xf]
        %v1925 = vld [vmem:[%s1918 + $0x18] sm:$0xf]
        %v1926 = vld [vmem:[%s1918 + $0x1c] sm:$0xf]
        %v1927 = vld [vmem:[%s1918 + $0x20] sm:$0xf]
        %v1928 = vld [vmem:[%s1918 + $0x24] sm:$0xf]
        %v1929 = vld [vmem:[%s1918 + $0x28] sm:$0xf]
        %v1930 = vld [vmem:[%s1918 + $0x2c] sm:$0xf]
        %v1931 = vld [vmem:[%s1918 + $0x30] sm:$0xf]
        %v1932 = vld [vmem:[%s1918 + $0x34] sm:$0xf]
        %v1933 = vld [vmem:[%s1918 + $0x38] sm:$0xf]
        %v1934 = vld [vmem:[%s1918 + $0x3c] sm:$0xf]
        %v1951 = vunpack.c.l.b16 %v1919
        %v1952 = vunpack.c.l.b16 %v1920
        %v1953 = vunpack.c.l.b16 %v1921
        %v1954 = vunpack.c.l.b16 %v1922
        %v1955 = vunpack.c.l.b16 %v1923
        %v1956 = vunpack.c.l.b16 %v1924
        %v1957 = vunpack.c.l.b16 %v1925
        %v1958 = vunpack.c.l.b16 %v1926
        %v1959 = vunpack.c.l.b16 %v1927
        %v1960 = vunpack.c.l.b16 %v1928
        %v1961 = vunpack.c.l.b16 %v1929
        %v1962 = vunpack.c.l.b16 %v1930
        %v1963 = vunpack.c.l.b16 %v1931
        %v1964 = vunpack.c.l.b16 %v1932
        %v1965 = vunpack.c.l.b16 %v1933
        %v1966 = vunpack.c.l.b16 %v1934
        %v1967 = vpack.c.b16 %v1952, %v1951
        %v1968 = vpack.c.b16 %v1954, %v1953
        %v1969 = vpack.c.b16 %v1956, %v1955
        %v1970 = vpack.c.b16 %v1958, %v1957
        %v1971 = vpack.c.b16 %v1960, %v1959
        %v1972 = vpack.c.b16 %v1962, %v1961
        %v1973 = vpack.c.b16 %v1964, %v1963
        %v1974 = vpack.c.b16 %v1966, %v1965
        %1983 = vmatprep.subr.bf16.mxu0 0
        %1984 = vmatpush1.bf16.msra.mxu0 %v1967
        %1985 = vmatprep.subr.bf16.mxu0 0
        %1986 = vmatpush1.bf16.msra.mxu0 %v1968
        %1987 = vmatprep.subr.bf16.mxu0 0
        %1988 = vmatpush1.bf16.msra.mxu0 %v1969
        %1989 = vmatprep.subr.bf16.mxu0 0
        %1990 = vmatpush1.bf16.msra.mxu0 %v1970
        %1991 = vmatprep.subr.bf16.mxu0 0
        %1992 = vmatpush1.bf16.msra.mxu0 %v1971
        %1993 = vmatprep.subr.bf16.mxu0 0
        %1994 = vmatpush1.bf16.msra.mxu0 %v1972
        %1995 = vmatprep.subr.bf16.mxu0 0
        %1996 = vmatpush1.bf16.msra.mxu0 %v1973
        %1997 = vmatprep.subr.bf16.mxu0 0
        %1998 = vmatpush1.bf16.msra.mxu0 %v1974
        %1999 = vmatprep.subr.bf16.mxu0 0
        %2000 = vmatpush1.bf16.msra.mxu0 0
        %2001 = vmatprep.subr.bf16.mxu0 0
        %2002 = vmatpush1.bf16.msra.mxu0 0
        %2003 = vmatprep.subr.bf16.mxu0 0
        %2004 = vmatpush1.bf16.msra.mxu0 0
        %2005 = vmatprep.subr.bf16.mxu0 0
        %2006 = vmatpush1.bf16.msra.mxu0 0
        %2007 = vmatprep.subr.bf16.mxu0 0
        %2008 = vmatpush1.bf16.msra.mxu0 0
        %2009 = vmatprep.subr.bf16.mxu0 0
        %2010 = vmatpush1.bf16.msra.mxu0 0
        %2011 = vmatprep.subr.bf16.mxu0 0
        %2012 = vmatpush1.bf16.msra.mxu0 0
        %2013 = vmatprep.subr.bf16.mxu0 0
        %2014 = vmatpush1.bf16.msra.mxu0 0
        %2015 = vmatprep.mubr.bf16.mxu0 0
        %2016 = vmatmul.mubr.bf16.gmra.mrb[0].mxu0 %v1914
        %v2017 = vpop.f32.mrb[0].mxu0
        %v2018 = vadd.f32 0.0, %v2017
        %v2019 = vpop.f32.mrb[0].mxu0
        %v2020 = vpop.f32.mrb[0].mxu0
        %v2021 = vadd.f32 0.0, %v2020
        %v2022 = vpop.f32.mrb[0].mxu0
        %2023 = vmatprep.mubr.bf16.mxu0 0
        %2024 = vmatmul.mubr.bf16.gmra.mrb[0].mxu0 %v1915
        %v2025 = vpop.f32.mrb[0].mxu0
        %v2026 = vadd.f32 0.0, %v2025
        %v2027 = vpop.f32.mrb[0].mxu0
        %v2028 = vpop.f32.mrb[0].mxu0
        %v2029 = vadd.f32 0.0, %v2028
        %v2030 = vpop.f32.mrb[0].mxu0
        %2031 = vmatprep.mubr.bf16.mxu0 0
        %2032 = vmatmul.mubr.bf16.gmra.mrb[0].mxu0 %v1916
        %v2033 = vpop.f32.mrb[0].mxu0
        %v2034 = vadd.f32 0.0, %v2033
        %v2035 = vpop.f32.mrb[0].mxu0
        %v2036 = vpop.f32.mrb[0].mxu0
        %v2037 = vadd.f32 0.0, %v2036
        %v2038 = vpop.f32.mrb[0].mxu0
        %2039 = vmatprep.mubr.bf16.mxu0 0
        %2040 = vmatmul.mubr.bf16.gmra.mrb[0].mxu0 %v1917
        %v2041 = vpop.f32.mrb[0].mxu0
        %v2042 = vadd.f32 0.0, %v2041
        %v2043 = vpop.f32.mrb[0].mxu0
        %v2044 = vpop.f32.mrb[0].mxu0
        %v2045 = vadd.f32 0.0, %v2044
        %v2046 = vpop.f32.mrb[0].mxu0
        %2047 = vdwg.mxu0
        %v2048 = vadd.f32 %v1890, %v2018
        %v2049 = vadd.f32 %v1891, %v2021
        %v2050 = vadd.f32 %v1892, %v2026
        %v2051 = vadd.f32 %v1893, %v2029
        %v2052 = vadd.f32 %v1894, %v2034
        %v2053 = vadd.f32 %v1895, %v2037
        %v2054 = vadd.f32 %v1896, %v2042
        %v2055 = vadd.f32 %v1897, %v2045
        %v2056 = vld [vmem:[%s4] sm:$0x1]
        %v2058 = vlaneseq
        %v2059 = vshrl.u32 %v2058, 7
        %v2060 = vsub.s32 0, %v2059
        %v2061 = vrot.slane %v2056, %v2060
        %v2063 = vadd.f32 %v2048, %v2061
        %v2064 = vadd.f32 %v2049, %v2061
        %v2065 = vadd.f32 %v2050, %v2061
        %v2066 = vadd.f32 %v2051, %v2061
        %v2067 = vadd.f32 %v2052, %v2061
        %v2068 = vadd.f32 %v2053, %v2061
        %v2069 = vadd.f32 %v2054, %v2061
        %v2070 = vadd.f32 %v2055, %v2061
        %v2071 = vmax.f32 %v2063, 0.0
        %v2072 = vmax.f32 %v2064, 0.0
        %v2073 = vmax.f32 %v2065, 0.0
        %v2074 = vmax.f32 %v2066, 0.0
        %v2075 = vmax.f32 %v2067, 0.0
        %v2076 = vmax.f32 %v2068, 0.0
        %v2077 = vmax.f32 %v2069, 0.0
        %v2078 = vmax.f32 %v2070, 0.0
        %v2079 = vpack.c.bf16 %v2072, %v2071
        %v2080 = vpack.c.bf16 %v2074, %v2073
        %v2081 = vpack.c.bf16 %v2076, %v2075
        %v2082 = vpack.c.bf16 %v2078, %v2077
        %v2083 = vld [vmem:[#allocation9] sm:$0xf]
        %v2084 = vld [vmem:[#allocation9 + $0x4] sm:$0xf]
        %v2085 = vld [vmem:[#allocation9 + $0x8] sm:$0xf]
        %v2086 = vld [vmem:[#allocation9 + $0xc] sm:$0xf]
        %v2087 = vld [vmem:[#allocation9 + $0x10] sm:$0xf]
        %v2088 = vld [vmem:[#allocation9 + $0x14] sm:$0xf]
        %v2089 = vld [vmem:[#allocation9 + $0x18] sm:$0xf]
        %v2090 = vld [vmem:[#allocation9 + $0x1c] sm:$0xf]
        %v2091 = vld [vmem:[#allocation9 + $0x20] sm:$0xf]
        %v2092 = vld [vmem:[#allocation9 + $0x24] sm:$0xf]
        %v2093 = vld [vmem:[#allocation9 + $0x28] sm:$0xf]
        %v2094 = vld [vmem:[#allocation9 + $0x2c] sm:$0xf]
        %v2095 = vld [vmem:[#allocation9 + $0x30] sm:$0xf]
        %v2096 = vld [vmem:[#allocation9 + $0x34] sm:$0xf]
        %v2097 = vld [vmem:[#allocation9 + $0x38] sm:$0xf]
        %v2098 = vld [vmem:[#allocation9 + $0x3c] sm:$0xf]
        %v2099 = vld [vmem:[%s6] sm:$0x1]
        %v2101 = vlaneseq
        %v2102 = vshrl.u32 %v2101, 7
        %v2103 = vsub.s32 0, %v2102
        %v2104 = vrot.slane %v2099, %v2103
        %v2122 = vunpack.c.l.b16 %v2083
        %v2123 = vunpack.c.l.b16 %v2084
        %v2124 = vunpack.c.l.b16 %v2085
        %v2125 = vunpack.c.l.b16 %v2086
        %v2126 = vunpack.c.l.b16 %v2087
        %v2127 = vunpack.c.l.b16 %v2088
        %v2128 = vunpack.c.l.b16 %v2089
        %v2129 = vunpack.c.l.b16 %v2090
        %v2130 = vunpack.c.l.b16 %v2091
        %v2131 = vunpack.c.l.b16 %v2092
        %v2132 = vunpack.c.l.b16 %v2093
        %v2133 = vunpack.c.l.b16 %v2094
        %v2134 = vunpack.c.l.b16 %v2095
        %v2135 = vunpack.c.l.b16 %v2096
        %v2136 = vunpack.c.l.b16 %v2097
        %v2137 = vunpack.c.l.b16 %v2098
        %v2138 = vpack.c.b16 %v2123, %v2122
        %v2139 = vpack.c.b16 %v2125, %v2124
        %v2140 = vpack.c.b16 %v2127, %v2126
        %v2141 = vpack.c.b16 %v2129, %v2128
        %v2142 = vpack.c.b16 %v2131, %v2130
        %v2143 = vpack.c.b16 %v2133, %v2132
        %v2144 = vpack.c.b16 %v2135, %v2134
        %v2145 = vpack.c.b16 %v2137, %v2136
        %2154 = vmatprep.subr.bf16.mxu0 0
        %2155 = vmatpush1.bf16.msra.mxu0 %v2138
        %2156 = vmatprep.subr.bf16.mxu0 0
        %2157 = vmatpush1.bf16.msra.mxu0 %v2139
        %2158 = vmatprep.subr.bf16.mxu0 0
        %2159 = vmatpush1.bf16.msra.mxu0 %v2140
        %2160 = vmatprep.subr.bf16.mxu0 0
        %2161 = vmatpush1.bf16.msra.mxu0 %v2141
        %2162 = vmatprep.subr.bf16.mxu0 0
        %2163 = vmatpush1.bf16.msra.mxu0 %v2142
        %2164 = vmatprep.subr.bf16.mxu0 0
        %2165 = vmatpush1.bf16.msra.mxu0 %v2143
        %2166 = vmatprep.subr.bf16.mxu0 0
        %2167 = vmatpush1.bf16.msra.mxu0 %v2144
        %2168 = vmatprep.subr.bf16.mxu0 0
        %2169 = vmatpush1.bf16.msra.mxu0 %v2145
        %2170 = vmatprep.subr.bf16.mxu0 0
        %2171 = vmatpush1.bf16.msra.mxu0 0
        %2172 = vmatprep.subr.bf16.mxu0 0
        %2173 = vmatpush1.bf16.msra.mxu0 0
        %2174 = vmatprep.subr.bf16.mxu0 0
        %2175 = vmatpush1.bf16.msra.mxu0 0
        %2176 = vmatprep.subr.bf16.mxu0 0
        %2177 = vmatpush1.bf16.msra.mxu0 0
        %2178 = vmatprep.subr.bf16.mxu0 0
        %2179 = vmatpush1.bf16.msra.mxu0 0
        %2180 = vmatprep.subr.bf16.mxu0 0
        %2181 = vmatpush1.bf16.msra.mxu0 0
        %2182 = vmatprep.subr.bf16.mxu0 0
        %2183 = vmatpush1.bf16.msra.mxu0 0
        %2184 = vmatprep.subr.bf16.mxu0 0
        %2185 = vmatpush1.bf16.msra.mxu0 0
        %2186 = vmatprep.mubr.bf16.mxu0 0
        %2187 = vmatmul.mubr.bf16.gmra.mrb[0].mxu0 %v2079
        %v2188 = vpop.f32.mrb[0].mxu0
        %v2189 = vadd.f32 %v2104, %v2188
        %v2190 = vpop.f32.mrb[0].mxu0
        %v2191 = vpop.f32.mrb[0].mxu0
        %v2192 = vadd.f32 %v2104, %v2191
        %v2193 = vpop.f32.mrb[0].mxu0
        %2194 = vmatprep.mubr.bf16.mxu0 0
        %2195 = vmatmul.mubr.bf16.gmra.mrb[0].mxu0 %v2080
        %v2196 = vpop.f32.mrb[0].mxu0
        %v2197 = vadd.f32 %v2104, %v2196
        %v2198 = vpop.f32.mrb[0].mxu0
        %v2199 = vpop.f32.mrb[0].mxu0
        %v2200 = vadd.f32 %v2104, %v2199
        %v2201 = vpop.f32.mrb[0].mxu0
        %2202 = vmatprep.mubr.bf16.mxu0 0
        %2203 = vmatmul.mubr.bf16.gmra.mrb[0].mxu0 %v2081
        %v2204 = vpop.f32.mrb[0].mxu0
        %v2205 = vadd.f32 %v2104, %v2204
        %v2206 = vpop.f32.mrb[0].mxu0
        %v2207 = vpop.f32.mrb[0].mxu0
        %v2208 = vadd.f32 %v2104, %v2207
        %v2209 = vpop.f32.mrb[0].mxu0
        %2210 = vmatprep.mubr.bf16.mxu0 0
        %2211 = vmatmul.mubr.bf16.gmra.mrb[0].mxu0 %v2082
        %v2212 = vpop.f32.mrb[0].mxu0
        %v2213 = vadd.f32 %v2104, %v2212
        %v2214 = vpop.f32.mrb[0].mxu0
        %v2215 = vpop.f32.mrb[0].mxu0
        %v2216 = vadd.f32 %v2104, %v2215
        %v2217 = vpop.f32.mrb[0].mxu0
        %2218 = vdwg.mxu0
        %v2219 = vld [vmem:[%s298] sm:$0xf]
        %v2220 = vld [vmem:[%s298 + $0x4] sm:$0xf]
        %v2221 = vld [vmem:[%s298 + $0x8] sm:$0xf]
        %v2222 = vld [vmem:[%s298 + $0xc] sm:$0xf]
        %v2223 = vld [vmem:[%s298 + $0x10] sm:$0xf]
        %v2224 = vld [vmem:[%s298 + $0x14] sm:$0xf]
        %v2225 = vld [vmem:[%s298 + $0x18] sm:$0xf]
        %v2226 = vld [vmem:[%s298 + $0x1c] sm:$0xf]
        %v2227 = vunpack.c.l.bf16 %v2219
        %v2228 = vunpack.c.l.bf16 %v2220
        %v2229 = vunpack.c.l.bf16 %v2221
        %v2230 = vunpack.c.l.bf16 %v2222
        %v2231 = vunpack.c.l.bf16 %v2223
        %v2232 = vunpack.c.l.bf16 %v2224
        %v2233 = vunpack.c.l.bf16 %v2225
        %v2234 = vunpack.c.l.bf16 %v2226
        %v2235 = vadd.f32 %v2189, %v2227
        %v2236 = vadd.f32 %v2192, %v2228
        %v2237 = vadd.f32 %v2197, %v2229
        %v2238 = vadd.f32 %v2200, %v2230
        %v2239 = vadd.f32 %v2205, %v2231
        %v2240 = vadd.f32 %v2208, %v2232
        %v2241 = vadd.f32 %v2213, %v2233
        %v2242 = vadd.f32 %v2216, %v2234
        %v2243 = vmax.f32 %v2235, 0.0
        %v2244 = vmax.f32 %v2236, 0.0
        %v2245 = vmax.f32 %v2237, 0.0
        %v2246 = vmax.f32 %v2238, 0.0
        %v2247 = vmax.f32 %v2239, 0.0
        %v2248 = vmax.f32 %v2240, 0.0
        %v2249 = vmax.f32 %v2241, 0.0
        %v2250 = vmax.f32 %v2242, 0.0
        %v2251 = vpack.c.bf16 %v2244, %v2243
        %v2252 = vpack.c.bf16 %v2246, %v2245
        %v2253 = vpack.c.bf16 %v2248, %v2247
        %v2254 = vpack.c.bf16 %v2250, %v2249
        %v2259 = vunpack.c.l.b16 %v2251
        %v2260 = vunpack.c.h.b16 %v2251
        %v2261 = vunpack.c.l.b16 %v2252
        %v2262 = vunpack.c.h.b16 %v2252
        %v2263 = vunpack.c.l.b16 %v2253
        %v2264 = vunpack.c.h.b16 %v2253
        %v2265 = vunpack.c.l.b16 %v2254
        %v2266 = vunpack.c.h.b16 %v2254
        %v2267 = vpack.c.b16 %v2259, %v2259
        %v2268 = vpack.c.b16 %v2260, %v2260
        %v2269 = vpack.c.b16 %v2261, %v2261
        %v2270 = vpack.c.b16 %v2262, %v2262
        %v2271 = vpack.c.b16 %v2263, %v2263
        %v2272 = vpack.c.b16 %v2264, %v2264
        %v2273 = vpack.c.b16 %v2265, %v2265
        %v2274 = vpack.c.b16 %v2266, %v2266
        %2283 = vst [vmem:[%s340] sm:$0xf] %v2267
        %2284 = vst [vmem:[%s340 + $0x4] sm:$0xf] %v2268
        %2285 = vst [vmem:[%s340 + $0x8] sm:$0xf] %v2269
        %2286 = vst [vmem:[%s340 + $0xc] sm:$0xf] %v2270
        %2287 = vst [vmem:[%s340 + $0x10] sm:$0xf] %v2271
        %2288 = vst [vmem:[%s340 + $0x14] sm:$0xf] %v2272
        %2289 = vst [vmem:[%s340 + $0x18] sm:$0xf] %v2273
        %2290 = vst [vmem:[%s340 + $0x1c] sm:$0xf] %v2274
        %s2291 = sand.u32 %s186, 1
        %s2292 = scalar_lea.sflag [#allocation5], %s2291
        %s2293 = sand.u32 %s186, 1
        %s2294 = smul.addr %s2293, 32
        %s2295 = scalar_lea.vmem [#allocation11], %s2294
        // Predicated region
        $region65: #{tpu_custom_call.1} parent=47 // pred_check
          %p2296 = pneg %p196
        $region66: #{tpu_custom_call.1} parent=47 // pred_check_branch
          %2298 = sbr.rel (%p2296) target = $region68
        $region67: #{tpu_custom_call.1} parent=47 // pred_region
          %s2300 = ssub.s32 512, 512
          %2301 = vsyncadd %s2292, %s2300
          %s2302 = smul.addr %s26, 8
          %s2303 = smul.addr %s2302, 64
          %s2304 = scalar_lea.hbm %s7, %s2303
          %s2305 = sshll.u32 %s2295, 4
          %s2306 = int_to_ptr.vmem [resolvable:$true] %s2305
          %2311 = dma.vmem_to_hbm [thread:$0]  %s2306, 512, %s2304, %s2292, 64, 64, 4
        $region68: #{tpu_custom_call.1} parent=47 // pred_fallthru
          _
      $region48: #{tpu_custom_call.1} parent=5 // pred_fallthru
        _
      %p2312 = scmp.le.s32.totalorder 2, %s21
      // Predicated region
      $region69: #{tpu_custom_call.1} parent=5 // pred_check
        %p2313 = pneg %p2312
      $region70: #{tpu_custom_call.1} parent=5 // pred_check_branch
        %2315 = sbr.rel (%p2313) target = $region72
      $region71: #{tpu_custom_call.1} parent=5 // pred_region
        %s2316 = ssub.s32 %s21, 2
        // Predicated region
        $region73: #{tpu_custom_call.1} parent=71 // pred_check
          %p2317 = pneg %p202
        $region74: #{tpu_custom_call.1} parent=71 // pred_check_branch
          %2319 = sbr.rel (%p2317) target = $region76
        $region75: #{tpu_custom_call.1} parent=71 // pred_region
          %s2320 = sand.u32 %s187, 1
          %s2321 = scalar_lea.sflag [#allocation5], %s2320
          %s2322 = sand.u32 %s187, 1
          %s2323 = smul.addr %s2322, 32
          %s2324 = scalar_lea.vmem [#allocation11], %s2323
          %2325 = dma.done %s2321, 512
        $region76: #{tpu_custom_call.1} parent=71 // pred_fallthru
          _
      $region72: #{tpu_custom_call.1} parent=5 // pred_fallthru
        _
    $region6: #{tpu_custom_call.1} parent=1 // loop_footer
      %s25 = sadd.s32 1, %s21
    $region7: #{tpu_custom_call.1} parent=1 // loop_footer_branch
      %20 = sbr.rel target = $region3
    $region8: #{tpu_custom_call.1} parent=1 // loop_exit
      _
    %2326 = vsyncpa [#allocation4], 1
    %s2327 = scalar_lea.sflag [#allocation4], 1
    %2328 = vsyncpa %s2327, 1
    %2329 = vsyncpa [#allocation7], 1
    %2330 = vsyncpa [#allocation10], 1
    %2331 = vsyncpa [#allocation5], 1
    %s2332 = scalar_lea.sflag [#allocation5], 1
    %2333 = vsyncpa %s2332, 1

</llo_original>
